<compile_context>
chip_gen: v5e
topology: v5e:2x2
jax: 0.10.0
libtpu: 0.0.40
codegen_flags: <defaults>
</compile_context>

<pallas_src>
import functools

import numpy as np
import jax
import jax.numpy as jnp
from jax import lax
from jax.experimental import pallas as pl
from jax.experimental.pallas import tpu as pltpu

_GELU_C = float(np.sqrt(2.0 / np.pi))
_NEG_BIG = -1e30
_LN_EPS = 1e-5


# ---------------------------------------------------------------------------
# Helpers
# ---------------------------------------------------------------------------
def _vmem_cap_bytes() -> int:
    """Per-TensorCore VMEM capacity, with a conservative fallback (v7x = 64 MiB)."""
    try:
        info = pltpu.get_tpu_info()
        cap = getattr(info, "vmem_capacity_bytes", None)
        if cap:
            return int(cap)
    except Exception:
        pass
    return 64 * 1024 * 1024


def _compiler_params(semantics, vmem_estimate_bytes):
    cap = int(0.85 * _vmem_cap_bytes())          # hardware-aware ceiling (never above physical)
    vmem = int(1.3 * vmem_estimate_bytes)        # +30% headroom for compiler internal scratch
    vmem = max(vmem, min(32 * 1024 * 1024, cap))
    vmem = min(vmem, cap)
    return pltpu.CompilerParams(dimension_semantics=semantics, vmem_limit_bytes=vmem)


def _choose_tile(total: int, preferred: int):
    """Largest tile <= preferred that evenly divides `total` (multiple of 8), else None.
    If `total` already fits in one tile, use the full extent (always layout-legal)."""
    if total <= preferred:
        return total
    t = (preferred // 8) * 8
    while t >= 8:
        if total % t == 0:
            return t
        t -= 8
    return None


def _layernorm_f32(x_f32, g_ref, b_ref, eps):
    """LayerNorm in f32 (matches the PyTorch Norm: mean-sub, rms-of-centered, affine)."""
    mu = jnp.mean(x_f32, axis=-1, keepdims=True)
    xc = x_f32 - mu
    var = jnp.mean(xc * xc, axis=-1, keepdims=True)
    return xc * lax.rsqrt(var + eps) * g_ref[...] + b_ref[...]


# ---------------------------------------------------------------------------
# Kernel 1: fused  X + out_proj(causal_MHA(LN1(X)))   (flash-style, online softmax)
#   grid = (batch, q_tiles, kv_tiles); kv is the last ("arbitrary") reduction axis.
# ---------------------------------------------------------------------------
def _attn_block_kernel(xq_ref, xk_ref, g1_ref, b1_ref,
                       wq_ref, bq_ref, wkv_ref, bkv_ref, wo_ref, bo_ref,
                       o_ref,
                       q_scr, m_scr, l_scr, acc_scr, merged_scr,
                       *, n_heads, d_head, q_scale, eps):
    qi = pl.program_id(1)
    ki = pl.program_id(2)
    tq = q_scr.shape[0]
    tk = xk_ref.shape[1]
    d_attn = n_heads * d_head
    cdt = q_scr.dtype

    @pl.when(ki == 0)
    def _init():
        xq = xq_ref[0].astype(jnp.float32)                      # (tq, D)
        lnq = _layernorm_f32(xq, g1_ref, b1_ref, eps)
        q = jnp.dot(lnq.astype(cdt), wq_ref[...], preferred_element_type=jnp.float32)
        q = (q + bq_ref[...]) * q_scale                          # full 1/sqrt(d_head) on Q only
        q_scr[...] = q.astype(cdt)
        m_scr[...] = jnp.full(m_scr.shape, -jnp.inf, dtype=m_scr.dtype)
        l_scr[...] = jnp.zeros(l_scr.shape, dtype=l_scr.dtype)
        acc_scr[...] = jnp.zeros(acc_scr.shape, dtype=acc_scr.dtype)

    # Skip kv tiles that lie entirely above the causal diagonal for this q tile.
    @pl.when(ki * tk <= qi * tq + (tq - 1))
    def _accumulate():
        xk = xk_ref[0].astype(jnp.float32)                       # (tk, D)
        lnk = _layernorm_f32(xk, g1_ref, b1_ref, eps)
        # Fused K|V projection: one matmul with N = 2*d_attn (good MXU occupancy).
        kv = jnp.dot(lnk.astype(cdt), wkv_ref[...], preferred_element_type=jnp.float32)
        kv = (kv + bkv_ref[...]).astype(cdt)                     # (tk, 2*d_attn)

        row = qi * tq + lax.broadcasted_iota(jnp.int32, (tq, tk), 0)
        col = ki * tk + lax.broadcasted_iota(jnp.int32, (tq, tk), 1)
        causal = col <= row

        for h in range(n_heads):                                 # static unroll
            q_h = q_scr[:, h * d_head:(h + 1) * d_head]                       # (tq, dh)
            k_h = kv[:, h * d_head:(h + 1) * d_head]                          # (tk, dh)
            v_h = kv[:, d_attn + h * d_head:d_attn + (h + 1) * d_head]        # (tk, dh)

            s = lax.dot_general(q_h, k_h, (((1,), (1,)), ((), ())),
                                preferred_element_type=jnp.float32)           # (tq, tk)
            s = jnp.where(causal, s, _NEG_BIG)

            m_prev = m_scr[h]
            m_new = jnp.maximum(m_prev, jnp.max(s, axis=-1, keepdims=True))
            alpha = jnp.exp(m_prev - m_new)
            p = jnp.exp(s - m_new)
            l_scr[h] = alpha * l_scr[h] + jnp.sum(p, axis=-1, keepdims=True)
            acc_scr[h] = alpha * acc_scr[h] + jnp.dot(
                p.astype(cdt), v_h, preferred_element_type=jnp.float32)
            m_scr[h] = m_new

    @pl.when(ki == pl.num_programs(2) - 1)
    def _finalize():
        # Deferred softmax normalization on the small (tq, d_head) accumulators.
        for h in range(n_heads):
            o_h = acc_scr[h] * (1.0 / l_scr[h])
            merged_scr[:, h * d_head:(h + 1) * d_head] = o_h.astype(cdt)
        # Output projection over the FULL d_attn contraction (all heads at once).
        delta = jnp.dot(merged_scr[...], wo_ref[...], preferred_element_type=jnp.float32)
        out = xq_ref[0].astype(jnp.float32) + bo_ref[...] + delta
        o_ref[0] = out.astype(o_ref.dtype)


def attn_block_forward(x, ln1_g, ln1_b, wq, bq, wk, bk, wv, bv, wo, bo, *,
                       n_heads, block_q=256, block_k=256):
    """x: [B, S, D]; wq/wk/wv: [D, d_attn] (pre-transposed vs. nn.Linear); wo: [d_attn, D].
    Returns X + causal_MHA(LN1(X)) projected back to the residual stream."""
    B, S, D = x.shape
    d_attn = wq.shape[1]
    assert wk.shape[1] == d_attn and wv.shape[1] == d_attn
    assert d_attn % n_heads == 0
    dh = d_attn // n_heads
    cdt = x.dtype

    tq = _choose_tile(S, block_q) or S
    tk = _choose_tile(S, block_k) or S
    # TODO(synk): sequences with no clean tile divisor fall back to one full-extent tile;
    # ragged-S masked stores are not implemented.

    wkv = jnp.concatenate([wk, wv], axis=1)                      # (D, 2*d_attn)
    bkv = jnp.concatenate([bk, bv], axis=0).reshape(1, 2 * d_attn)
    bq2 = bq.reshape(1, d_attn)
    bo2 = bo.reshape(1, D)
    g1 = ln1_g.reshape(1, D)
    b1 = ln1_b.reshape(1, D)

    itm = x.dtype.itemsize
    witm = wq.dtype.itemsize
    vmem_est = (
        2 * (tq * D + tk * D + tq * D) * itm                     # xq / xk / out tiles (dbl-buf)
        + 2 * (4 * D * d_attn + 3 * d_attn + 4 * D) * witm       # Wq|Wkv|Wo + biases + LN params
        + 2 * tq * d_attn * itm                                  # q_scr + merged_scr
        + (2 * n_heads * tq + n_heads * tq * dh) * 4             # m/l/acc scratch (f32)
        + (tk * D + tk * 2 * d_attn + tq * d_attn) * 4           # lnk / kv / q intermediates
        + 6 * tq * tk * 4                                        # per-head score/p temporaries
    )

    kernel = functools.partial(_attn_block_kernel, n_heads=n_heads, d_head=dh,
                               q_scale=float(1.0 / np.sqrt(dh)), eps=_LN_EPS)
    out = pl.pallas_call(
        kernel,
        out_shape=jax.ShapeDtypeStruct((B, S, D), x.dtype),
        grid_spec=pltpu.PrefetchScalarGridSpec(
            num_scalar_prefetch=0,
            grid=(B, S // tq, S // tk),
            in_specs=[
                pl.BlockSpec((1, tq, D), lambda b, qi, ki: (b, qi, 0)),   # X (query rows)
                pl.BlockSpec((1, tk, D), lambda b, qi, ki: (b, ki, 0)),   # X (key/value rows)
                pl.BlockSpec((1, D), lambda b, qi, ki: (0, 0)),           # ln1 weight
                pl.BlockSpec((1, D), lambda b, qi, ki: (0, 0)),           # ln1 bias
                pl.BlockSpec((D, d_attn), lambda b, qi, ki: (0, 0)),      # Wq (resident)
                pl.BlockSpec((1, d_attn), lambda b, qi, ki: (0, 0)),      # bq
                pl.BlockSpec((D, 2 * d_attn), lambda b, qi, ki: (0, 0)),  # W_kv fused (resident)
                pl.BlockSpec((1, 2 * d_attn), lambda b, qi, ki: (0, 0)),  # b_kv
                pl.BlockSpec((d_attn, D), lambda b, qi, ki: (0, 0)),      # Wo (resident)
                pl.BlockSpec((1, D), lambda b, qi, ki: (0, 0)),           # bo
            ],
            out_specs=pl.BlockSpec((1, tq, D), lambda b, qi, ki: (b, qi, 0)),
            scratch_shapes=[
                pltpu.VMEM((tq, d_attn), cdt),                   # scaled Q for this q tile
                pltpu.VMEM((n_heads, tq, 1), jnp.float32),       # online-softmax running max
                pltpu.VMEM((n_heads, tq, 1), jnp.float32),       # online-softmax running sum
                pltpu.VMEM((n_heads, tq, dh), jnp.float32),      # per-head output accumulator
                pltpu.VMEM((tq, d_attn), cdt),                   # merged heads (pre out-proj)
            ],
        ),
        compiler_params=_compiler_params(("parallel", "parallel", "arbitrary"), vmem_est),
    )(x, x, g1, b1, wq, bq2, wkv, bkv, wo, bo2)
    return out


# ---------------------------------------------------------------------------
# Kernel 2: fused  X + out_layer(gelu(in_layer(LN2(X))))
#   Resident path: grid = (row_tiles,), weights fetched once and kept in VMEM.
#   Streamed path: grid = (row_tiles, d_ff_chunks) with an f32 accumulator (fallback for
#   weights that do not fit the per-generation VMEM budget, e.g. large d_model on v7x).
# ---------------------------------------------------------------------------
def _mlp_resident_kernel(x_ref, g2_ref, b2_ref, w_in_ref, b_in_ref, w_out_ref, b_out_ref,
                         o_ref, *, eps):
    cdt = x_ref.dtype
    x = x_ref[...].astype(jnp.float32)                           # (tm, D)
    ln = _layernorm_f32(x, g2_ref, b2_ref, eps).astype(cdt)
    pre = jnp.dot(ln, w_in_ref[...], preferred_element_type=jnp.float32) + b_in_ref[...]
    a = 0.5 * pre * (1.0 + jnp.tanh(_GELU_C * (pre + 0.044715 * pre * pre * pre)))
    out = x + b_out_ref[...] + jnp.dot(a.astype(cdt), w_out_ref[...],
                                       preferred_element_type=jnp.float32)
    o_ref[...] = out.astype(o_ref.dtype)


def _mlp_streamed_kernel(x_ref, g2_ref, b2_ref, w_in_ref, b_in_ref, w_out_ref, b_out_ref,
                         o_ref, ln_scr, acc_scr, *, eps):
    kk = pl.program_id(1)

    @pl.when(kk == 0)
    def _init():
        x = x_ref[...].astype(jnp.float32)
        ln = _layernorm_f32(x, g2_ref, b2_ref, eps)
        ln_scr[...] = ln.astype(ln_scr.dtype)
        acc_scr[...] = x + b_out_ref[...]                        # residual + bias added once

    ln = ln_scr[...]
    pre = jnp.dot(ln, w_in_ref[...], preferred_element_type=jnp.float32) + b_in_ref[...]
    a = 0.5 * pre * (1.0 + jnp.tanh(_GELU_C * (pre + 0.044715 * pre * pre * pre)))
    acc_scr[...] += jnp.dot(a.astype(ln_scr.dtype), w_out_ref[...],
                            preferred_element_type=jnp.float32)

    @pl.when(kk == pl.num_programs(1) - 1)
    def _done():
        o_ref[...] = acc_scr[...].astype(o_ref.dtype)


def mlp_block_forward(x, ln2_g, ln2_b, w_in, b_in, w_out, b_out, *,
                      tm=512, tk=512, force_streamed=False):
    """x: [B, S, D]; w_in: [D, d_ff]; w_out: [d_ff, D]; returns X + mlp_delta."""
    B, S, D = x.shape
    d_ff = w_in.shape[1]
    cdt = x.dtype
    M = B * S
    itm = x.dtype.itemsize
    witm = w_in.dtype.itemsize

    x2d = x.reshape(M, D)
    row_tile = _choose_tile(M, tm)
    padded = False
    if row_tile is None:
        # Fallback only (ragged M with no clean divisor).  Zero-padded rows go through LN with
        # var=0 -> rsqrt(eps)-scaled bias rows; they stay finite and are sliced off below.
        row_tile = tm
        Mp = ((M + tm - 1) // tm) * tm
        x2d = jnp.pad(x2d, ((0, Mp - M), (0, 0)))
        padded = True
        M_run = Mp
    else:
        M_run = M

    g2 = ln2_g.reshape(1, D)
    b2 = ln2_b.reshape(1, D)
    b_in2 = b_in.reshape(1, d_ff)
    b_out2 = b_out.reshape(1, D)

    cap = int(0.85 * _vmem_cap_bytes())
    weight_bytes = 2 * (D * d_ff + d_ff + d_ff * D + D) * witm   # both weights + biases
    resident_est = (4 * row_tile * D * itm                       # x + out tiles (dbl-buffered)
                    + weight_bytes
                    + 2 * row_tile * d_ff * 4                    # pre / gelu intermediates
                    + 2 * row_tile * D * 4)                      # ln / out intermediates
    use_resident = (not force_streamed) and (int(1.3 * resident_est) <= cap)

    if use_resident:
        out2d = pl.pallas_call(
            functools.partial(_mlp_resident_kernel, eps=_LN_EPS),
            out_shape=jax.ShapeDtypeStruct((M_run, D), x.dtype),
            grid_spec=pltpu.PrefetchScalarGridSpec(
                num_scalar_prefetch=0,
                grid=(M_run // row_tile,),
                in_specs=[
                    pl.BlockSpec((row_tile, D), lambda i: (i, 0)),        # X row tile
                    pl.BlockSpec((1, D), lambda i: (0, 0)),               # ln2 weight
                    pl.BlockSpec((1, D), lambda i: (0, 0)),               # ln2 bias
                    pl.BlockSpec((D, d_ff), lambda i: (0, 0)),            # W_in (resident)
                    pl.BlockSpec((1, d_ff), lambda i: (0, 0)),            # b_in
                    pl.BlockSpec((d_ff, D), lambda i: (0, 0)),            # W_out (resident)
                    pl.BlockSpec((1, D), lambda i: (0, 0)),               # b_out
                ],
                out_specs=pl.BlockSpec((row_tile, D), lambda i: (i, 0)),
            ),
            compiler_params=_compiler_params(("parallel",), resident_est),
        )(x2d, g2, b2, w_in, b_in2, w_out, b_out2)
    else:
        ff_tile = _choose_tile(d_ff, tk) or d_ff
        vmem_est = (4 * row_tile * D * itm                       # x + out row tiles
                    + 2 * 2 * D * ff_tile * witm                 # streamed W_in/W_out chunks
                    + 2 * (ff_tile + 3 * D) * witm               # biases / LN params
                    + row_tile * D * (4 + itm)                   # acc + LN scratch
                    + 2 * row_tile * ff_tile * 4)                # pre / gelu intermediates
        out2d = pl.pallas_call(
            functools.partial(_mlp_streamed_kernel, eps=_LN_EPS),
            out_shape=jax.ShapeDtypeStruct((M_run, D), x.dtype),
            grid_spec=pltpu.PrefetchScalarGridSpec(
                num_scalar_prefetch=0,
                grid=(M_run // row_tile, d_ff // ff_tile),
                in_specs=[
                    pl.BlockSpec((row_tile, D), lambda i, k: (i, 0)),     # X row tile
                    pl.BlockSpec((1, D), lambda i, k: (0, 0)),            # ln2 weight
                    pl.BlockSpec((1, D), lambda i, k: (0, 0)),            # ln2 bias
                    pl.BlockSpec((D, ff_tile), lambda i, k: (0, k)),      # W_in chunk (streamed)
                    pl.BlockSpec((1, ff_tile), lambda i, k: (0, k)),      # b_in chunk
                    pl.BlockSpec((ff_tile, D), lambda i, k: (k, 0)),      # W_out chunk (streamed)
                    pl.BlockSpec((1, D), lambda i, k: (0, 0)),            # b_out
                ],
                out_specs=pl.BlockSpec((row_tile, D), lambda i, k: (i, 0)),
                scratch_shapes=[
                    pltpu.VMEM((row_tile, D), cdt),              # LN2(X) cached across chunks
                    pltpu.VMEM((row_tile, D), jnp.float32),      # f32 accumulator
                ],
            ),
            compiler_params=_compiler_params(("parallel", "arbitrary"), vmem_est),
        )(x2d, g2, b2, w_in, b_in2, w_out, b_out2)

    if padded:
        out2d = out2d[:M]
    return out2d.reshape(B, S, D)


def transformer_layer_forward(x, params, *, n_heads, block_q=256, block_k=256,
                              mlp_tm=512, mlp_tk=512, mlp_force_streamed=False):
    x = attn_block_forward(x, params["ln1_g"], params["ln1_b"],
                           params["wq"], params["bq"], params["wk"], params["bk"],
                           params["wv"], params["bv"], params["wo"], params["bo"],
                           n_heads=n_heads, block_q=block_q, block_k=block_k)
    x = mlp_block_forward(x, params["ln2_g"], params["ln2_b"],
                          params["w_in"], params["b_in"], params["w_out"], params["b_out"],
                          tm=mlp_tm, tk=mlp_tk, force_streamed=mlp_force_streamed)
    return x


# ---------------------------------------------------------------------------
# Pure-JAX references (mirror the PyTorch forward, f32, no KV cache / pad / hooks).
# ---------------------------------------------------------------------------
def _reference_layer(x, p, *, n_heads, eps=_LN_EPS):
    x = x.astype(jnp.float32)
    hp = "highest"

    def ln(v, g, b):
        mu = v.mean(-1, keepdims=True)
        vc = v - mu
        s = jnp.sqrt((vc * vc).mean(-1, keepdims=True) + eps)
        return (vc / s) * g + b

    B, S, D = x.shape
    h = ln(x, p["ln1_g"], p["ln1_b"])
    q = jnp.dot(h, p["wq"], precision=hp) + p["bq"]
    k = jnp.dot(h, p["wk"], precision=hp) + p["bk"]
    v = jnp.dot(h, p["wv"], precision=hp) + p["bv"]
    dh = q.shape[-1] // n_heads
    scale = 1.0 / np.sqrt(np.sqrt(dh))
    qh = q.reshape(B, S, n_heads, dh) * scale
    kh = k.reshape(B, S, n_heads, dh) * scale
    vh = v.reshape(B, S, n_heads, dh)
    scores = jnp.einsum("bqhd,bkhd->bhqk", qh, kh, precision=hp)
    mask = np.tril(np.ones((S, S), dtype=bool))
    scores = jnp.where(mask[None, None], scores, _NEG_BIG)
    attn = jax.nn.softmax(scores, axis=-1)
    out = jnp.einsum("bhqk,bkhd->bqhd", attn, vh, precision=hp).reshape(B, S, n_heads * dh)
    x = x + jnp.dot(out, p["wo"], precision=hp) + p["bo"]

    h2 = ln(x, p["ln2_g"], p["ln2_b"])
    pre = jnp.dot(h2, p["w_in"], precision=hp) + p["b_in"]
    a = 0.5 * pre * (1.0 + jnp.tanh(_GELU_C * (pre + 0.044715 * pre ** 3)))
    x = x + jnp.dot(a, p["w_out"], precision=hp) + p["b_out"]
    return x


def _reference_mlp_block(x, g, b, w_in, b_in, w_out, b_out, eps=_LN_EPS):
    x = x.astype(jnp.float32)
    mu = x.mean(-1, keepdims=True)
    xc = x - mu
    s = jnp.sqrt((xc * xc).mean(-1, keepdims=True) + eps)
    h = (xc / s) * g + b
    pre = jnp.dot(h, w_in, precision="highest") + b_in
    a = 0.5 * pre * (1.0 + jnp.tanh(_GELU_C * (pre + 0.044715 * pre ** 3)))
    return x + jnp.dot(a, w_out, precision="highest") + b_out


if __name__ == "__main__":
    # TransformerConfig-like small shapes: d_model=32, n_heads=8, m_attn=1, m_mlp=4.
    B, S, d_model, n_heads, m_mlp = 2, 16, 32, 8, 4
    d_attn = d_model
    d_ff = m_mlp * d_model

    key = jax.random.PRNGKey(0)
    ks = jax.random.split(key, 24)

    def uni(k, shape, fan_in):
        lim = 1.0 / np.sqrt(fan_in)
        return jax.random.uniform(k, shape, jnp.float32, -lim, lim)

    x = jax.random.normal(ks[0], (B, S, d_model), dtype=jnp.float32)

    params = dict(
        ln1_g=1.0 + 0.1 * jax.random.normal(ks[1], (d_model,), dtype=jnp.float32),
        ln1_b=0.1 * jax.random.normal(ks[2], (d_model,), dtype=jnp.float32),
        wq=uni(ks[3], (d_model, d_attn), d_model),
        bq=uni(ks[4], (d_attn,), d_model),
        wk=uni(ks[5], (d_model, d_attn), d_model),
        bk=uni(ks[6], (d_attn,), d_model),
        wv=uni(ks[7], (d_model, d_attn), d_model),
        bv=uni(ks[8], (d_attn,), d_model),
        wo=uni(ks[9], (d_attn, d_model), d_attn),
        bo=uni(ks[10], (d_model,), d_attn),
        ln2_g=1.0 + 0.1 * jax.random.normal(ks[11], (d_model,), dtype=jnp.float32),
        ln2_b=0.1 * jax.random.normal(ks[12], (d_model,), dtype=jnp.float32),
        w_in=uni(ks[13], (d_model, d_ff), d_model),
        b_in=uni(ks[14], (d_ff,), d_model),
        w_out=uni(ks[15], (d_ff, d_model), d_ff),
        b_out=uni(ks[16], (d_model,), d_ff),
    )

    ref = np.asarray(_reference_layer(x, params, n_heads=n_heads))

    # 1) f32, default tiling: single q/kv tile, VMEM-resident MLP weights.
    out = jax.block_until_ready(transformer_layer_forward(x, params, n_heads=n_heads))
    np.testing.assert_allclose(np.asarray(out), ref, rtol=2e-3, atol=2e-3)

    # 2) f32, flash tiling exercised: 2 q-tiles x 2 kv-tiles (incl. one skipped causal tile)
    #    plus the streamed-MLP kernel path.
    out_t = jax.block_until_ready(
        transformer_layer_forward(x, params, n_heads=n_heads, block_q=8, block_k=8,
                                  mlp_force_streamed=True))
    np.testing.assert_allclose(np.asarray(out_t), ref, rtol=2e-3, atol=2e-3)

    # 3) bf16 path (native bf16 MXU operands, f32 accumulation) — loose check vs f32 reference.
    x_bf = x.astype(jnp.bfloat16)
    params_bf = {k: v.astype(jnp.bfloat16) for k, v in params.items()}
    out_bf = jax.block_until_ready(transformer_layer_forward(x_bf, params_bf, n_heads=n_heads))
    np.testing.assert_allclose(np.asarray(out_bf.astype(jnp.float32)), ref, rtol=1e-1, atol=1e-1)

    # 4) Multi-chunk streamed MLP (d_ff=256 streamed in two 128-wide chunks).
    D2, dff2 = 32, 256
    xm = jax.random.normal(ks[17], (2, 8, D2), dtype=jnp.float32)
    g2m = 1.0 + 0.1 * jax.random.normal(ks[18], (D2,), dtype=jnp.float32)
    b2m = 0.1 * jax.random.normal(ks[19], (D2,), dtype=jnp.float32)
    w_in2 = uni(ks[20], (D2, dff2), D2)
    b_in2 = uni(ks[21], (dff2,), D2)
    w_out2 = uni(ks[22], (dff2, D2), dff2)
    b_out2 = uni(ks[23], (D2,), dff2)
    out_m = jax.block_until_ready(
        mlp_block_forward(xm, g2m, b2m, w_in2, b_in2, w_out2, b_out2,
                          tm=512, tk=128, force_streamed=True))
    ref_m = np.asarray(_reference_mlp_block(xm, g2m, b2m, w_in2, b_in2, w_out2, b_out2))
    np.testing.assert_allclose(np.asarray(out_m), ref_m, rtol=2e-3, atol=2e-3)

    print("KERNEL_OK")
</pallas_src>

<mosaic_0001>
module attributes {stable_mosaic.version = 11 : i64} {
  func.func @_attn_block_kernel(%arg0: i32, %arg1: i32, %arg2: i32, %arg3: memref<1x16x32xf32, #tpu.memory_space<vmem>>, %arg4: memref<1x16x32xf32, #tpu.memory_space<vmem>>, %arg5: memref<1x32xf32, #tpu.memory_space<vmem>>, %arg6: memref<1x32xf32, #tpu.memory_space<vmem>>, %arg7: memref<32x32xf32, #tpu.memory_space<vmem>>, %arg8: memref<1x32xf32, #tpu.memory_space<vmem>>, %arg9: memref<32x64xf32, #tpu.memory_space<vmem>>, %arg10: memref<1x64xf32, #tpu.memory_space<vmem>>, %arg11: memref<32x32xf32, #tpu.memory_space<vmem>>, %arg12: memref<1x32xf32, #tpu.memory_space<vmem>>, %arg13: memref<1x16x32xf32, #tpu.memory_space<vmem>>, %arg14: memref<16x32xf32, #tpu.memory_space<vmem>>, %arg15: memref<8x16x1xf32, #tpu.memory_space<vmem>>, %arg16: memref<8x16x1xf32, #tpu.memory_space<vmem>>, %arg17: memref<8x16x4xf32, #tpu.memory_space<vmem>>, %arg18: memref<16x32xf32, #tpu.memory_space<vmem>>) attributes {dimension_semantics = [#tpu.dimension_semantics<parallel>, #tpu.dimension_semantics<parallel>, #tpu.dimension_semantics<arbitrary>], iteration_bounds = array<i64: 2, 1, 1>, scalar_prefetch = 0 : i64, scratch_operands = 5 : i64, tpu.core_type = #tpu.core_type<tc>, window_params = [{transform_indices = @transform_0, window_bounds = array<i64: 1, 16, 32>}, {transform_indices = @transform_1, window_bounds = array<i64: 1, 16, 32>}, {pipeline_mode = #tpu.pipeline_mode<synchronous>, transform_indices = @transform_2, window_bounds = array<i64: 1, 32>}, {pipeline_mode = #tpu.pipeline_mode<synchronous>, transform_indices = @transform_3, window_bounds = array<i64: 1, 32>}, {pipeline_mode = #tpu.pipeline_mode<synchronous>, transform_indices = @transform_4, window_bounds = array<i64: 32, 32>}, {pipeline_mode = #tpu.pipeline_mode<synchronous>, transform_indices = @transform_5, window_bounds = array<i64: 1, 32>}, {pipeline_mode = #tpu.pipeline_mode<synchronous>, transform_indices = @transform_6, window_bounds = array<i64: 32, 64>}, {pipeline_mode = #tpu.pipeline_mode<synchronous>, transform_indices = @transform_7, window_bounds = array<i64: 1, 64>}, {pipeline_mode = #tpu.pipeline_mode<synchronous>, transform_indices = @transform_8, window_bounds = array<i64: 32, 32>}, {pipeline_mode = #tpu.pipeline_mode<synchronous>, transform_indices = @transform_9, window_bounds = array<i64: 1, 32>}, {transform_indices = @transform_10, window_bounds = array<i64: 1, 16, 32>}]} {
    %c0_i32 = arith.constant 0 : i32
    %0 = arith.cmpi eq, %arg2, %c0_i32 : i32
    %1 = arith.extui %0 : i1 to i32
    %c0_i32_0 = arith.constant 0 : i32
    %2 = arith.cmpi ne, %1, %c0_i32_0 : i32
    scf.if %2 {
      %c0 = arith.constant 0 : index
      %c0_5 = arith.constant 0 : index
      %c0_6 = arith.constant 0 : index
      %12 = vector.load %arg3[%c0, %c0_5, %c0_6] : memref<1x16x32xf32, #tpu.memory_space<vmem>>, vector<1x16x32xf32>
      %13 = vector.shape_cast %12 : vector<1x16x32xf32> to vector<16x32xf32>
      %cst = arith.constant dense<0.000000e+00> : vector<16xf32>
      %14 = vector.multi_reduction <add>, %13, %cst [1] : vector<16x32xf32> to vector<16xf32>
      %15 = vector.shape_cast %14 : vector<16xf32> to vector<16x1xf32>
      %cst_7 = arith.constant 3.200000e+01 : f32
      %16 = vector.broadcast %cst_7 : f32 to vector<16x1xf32>
      %17 = arith.divf %15, %16 : vector<16x1xf32>
      %18 = vector.broadcast %17 : vector<16x1xf32> to vector<16x32xf32>
      %19 = arith.subf %13, %18 : vector<16x32xf32>
      %20 = arith.mulf %19, %19 : vector<16x32xf32>
      %cst_8 = arith.constant dense<0.000000e+00> : vector<16xf32>
      %21 = vector.multi_reduction <add>, %20, %cst_8 [1] : vector<16x32xf32> to vector<16xf32>
      %22 = vector.shape_cast %21 : vector<16xf32> to vector<16x1xf32>
      %cst_9 = arith.constant 3.200000e+01 : f32
      %23 = vector.broadcast %cst_9 : f32 to vector<16x1xf32>
      %24 = arith.divf %22, %23 : vector<16x1xf32>
      %cst_10 = arith.constant 9.99999974E-6 : f32
      %25 = vector.broadcast %cst_10 : f32 to vector<16x1xf32>
      %26 = arith.addf %24, %25 : vector<16x1xf32>
      %27 = math.rsqrt %26 : vector<16x1xf32>
      %28 = vector.broadcast %27 : vector<16x1xf32> to vector<16x32xf32>
      %29 = arith.mulf %19, %28 : vector<16x32xf32>
      %c0_11 = arith.constant 0 : index
      %c0_12 = arith.constant 0 : index
      %30 = vector.load %arg5[%c0_11, %c0_12] : memref<1x32xf32, #tpu.memory_space<vmem>>, vector<1x32xf32>
      %31 = vector.broadcast %30 : vector<1x32xf32> to vector<16x32xf32>
      %32 = arith.mulf %29, %31 : vector<16x32xf32>
      %c0_13 = arith.constant 0 : index
      %c0_14 = arith.constant 0 : index
      %33 = vector.load %arg6[%c0_13, %c0_14] : memref<1x32xf32, #tpu.memory_space<vmem>>, vector<1x32xf32>
      %34 = vector.broadcast %33 : vector<1x32xf32> to vector<16x32xf32>
      %35 = arith.addf %32, %34 : vector<16x32xf32>
      %c0_15 = arith.constant 0 : index
      %c0_16 = arith.constant 0 : index
      %36 = vector.load %arg7[%c0_15, %c0_16] : memref<32x32xf32, #tpu.memory_space<vmem>>, vector<32x32xf32>
      %cst_17 = arith.constant dense<0.000000e+00> : vector<16x32xf32>
      %37 = tpu.matmul %35, %36, %cst_17 {dimension_numbers = #tpu.dot_dimension_numbers<[1], [0], [0], [1], [0, 0, 1, 1], [], []>} : vector<16x32xf32>, vector<32x32xf32>, vector<16x32xf32> -> vector<16x32xf32>
      %c0_18 = arith.constant 0 : index
      %c0_19 = arith.constant 0 : index
      %38 = vector.load %arg8[%c0_18, %c0_19] : memref<1x32xf32, #tpu.memory_space<vmem>>, vector<1x32xf32>
      %39 = vector.broadcast %38 : vector<1x32xf32> to vector<16x32xf32>
      %40 = arith.addf %37, %39 : vector<16x32xf32>
      %cst_20 = arith.constant 5.000000e-01 : f32
      %41 = vector.broadcast %cst_20 : f32 to vector<16x32xf32>
      %42 = arith.mulf %40, %41 : vector<16x32xf32>
      %c0_21 = arith.constant 0 : index
      %c0_22 = arith.constant 0 : index
      %43 = vector.load %arg14[%c0_21, %c0_22] : memref<16x32xf32, #tpu.memory_space<vmem>>, vector<16x32xf32>
      tpu.vector_store %arg14[%c0_21, %c0_22], %42 {strides = array<i32>} : memref<16x32xf32, #tpu.memory_space<vmem>>, vector<16x32xf32>,
      %cst_23 = arith.constant 0xFF800000 : f32
      %44 = vector.broadcast %cst_23 : f32 to vector<8x16x1xf32>
      %c0_24 = arith.constant 0 : index
      %c0_25 = arith.constant 0 : index
      %c0_26 = arith.constant 0 : index
      %45 = vector.load %arg15[%c0_24, %c0_25, %c0_26] : memref<8x16x1xf32, #tpu.memory_space<vmem>>, vector<8x16x1xf32>
      tpu.vector_store %arg15[%c0_24, %c0_25, %c0_26], %44 {strides = array<i32>} : memref<8x16x1xf32, #tpu.memory_space<vmem>>, vector<8x16x1xf32>,
      %cst_27 = arith.constant 0.000000e+00 : f32
      %46 = vector.broadcast %cst_27 : f32 to vector<8x16x1xf32>
      %c0_28 = arith.constant 0 : index
      %c0_29 = arith.constant 0 : index
      %c0_30 = arith.constant 0 : index
      %47 = vector.load %arg16[%c0_28, %c0_29, %c0_30] : memref<8x16x1xf32, #tpu.memory_space<vmem>>, vector<8x16x1xf32>
      tpu.vector_store %arg16[%c0_28, %c0_29, %c0_30], %46 {strides = array<i32>} : memref<8x16x1xf32, #tpu.memory_space<vmem>>, vector<8x16x1xf32>,
      %cst_31 = arith.constant 0.000000e+00 : f32
      %48 = vector.broadcast %cst_31 : f32 to vector<8x16x4xf32>
      %c0_32 = arith.constant 0 : index
      %c0_33 = arith.constant 0 : index
      %c0_34 = arith.constant 0 : index
      %49 = vector.load %arg17[%c0_32, %c0_33, %c0_34] : memref<8x16x4xf32, #tpu.memory_space<vmem>>, vector<8x16x4xf32>
      tpu.vector_store %arg17[%c0_32, %c0_33, %c0_34], %48 {strides = array<i32>} : memref<8x16x4xf32, #tpu.memory_space<vmem>>, vector<8x16x4xf32>,
    } else {
    }
    %c16_i32 = arith.constant 16 : i32
    %3 = arith.muli %arg2, %c16_i32 : i32
    %c16_i32_1 = arith.constant 16 : i32
    %4 = arith.muli %arg1, %c16_i32_1 : i32
    %c15_i32 = arith.constant 15 : i32
    %5 = arith.addi %4, %c15_i32 : i32
    %6 = arith.cmpi sle, %3, %5 : i32
    %7 = arith.extui %6 : i1 to i32
    %c0_i32_2 = arith.constant 0 : i32
    %8 = arith.cmpi ne, %7, %c0_i32_2 : i32
    scf.if %8 {
      %c0 = arith.constant 0 : index
      %c0_5 = arith.constant 0 : index
      %c0_6 = arith.constant 0 : index
      %12 = vector.load %arg4[%c0, %c0_5, %c0_6] : memref<1x16x32xf32, #tpu.memory_space<vmem>>, vector<1x16x32xf32>
      %13 = vector.shape_cast %12 : vector<1x16x32xf32> to vector<16x32xf32>
      %cst = arith.constant dense<0.000000e+00> : vector<16xf32>
      %14 = vector.multi_reduction <add>, %13, %cst [1] : vector<16x32xf32> to vector<16xf32>
      %15 = vector.shape_cast %14 : vector<16xf32> to vector<16x1xf32>
      %cst_7 = arith.constant 3.200000e+01 : f32
      %16 = vector.broadcast %cst_7 : f32 to vector<16x1xf32>
      %17 = arith.divf %15, %16 : vector<16x1xf32>
      %18 = vector.broadcast %17 : vector<16x1xf32> to vector<16x32xf32>
      %19 = arith.subf %13, %18 : vector<16x32xf32>
      %20 = arith.mulf %19, %19 : vector<16x32xf32>
      %cst_8 = arith.constant dense<0.000000e+00> : vector<16xf32>
      %21 = vector.multi_reduction <add>, %20, %cst_8 [1] : vector<16x32xf32> to vector<16xf32>
      %22 = vector.shape_cast %21 : vector<16xf32> to vector<16x1xf32>
      %cst_9 = arith.constant 3.200000e+01 : f32
      %23 = vector.broadcast %cst_9 : f32 to vector<16x1xf32>
      %24 = arith.divf %22, %23 : vector<16x1xf32>
      %cst_10 = arith.constant 9.99999974E-6 : f32
      %25 = vector.broadcast %cst_10 : f32 to vector<16x1xf32>
      %26 = arith.addf %24, %25 : vector<16x1xf32>
      %27 = math.rsqrt %26 : vector<16x1xf32>
      %28 = vector.broadcast %27 : vector<16x1xf32> to vector<16x32xf32>
      %29 = arith.mulf %19, %28 : vector<16x32xf32>
      %c0_11 = arith.constant 0 : index
      %c0_12 = arith.constant 0 : index
      %30 = vector.load %arg5[%c0_11, %c0_12] : memref<1x32xf32, #tpu.memory_space<vmem>>, vector<1x32xf32>
      %31 = vector.broadcast %30 : vector<1x32xf32> to vector<16x32xf32>
      %32 = arith.mulf %29, %31 : vector<16x32xf32>
      %c0_13 = arith.constant 0 : index
      %c0_14 = arith.constant 0 : index
      %33 = vector.load %arg6[%c0_13, %c0_14] : memref<1x32xf32, #tpu.memory_space<vmem>>, vector<1x32xf32>
      %34 = vector.broadcast %33 : vector<1x32xf32> to vector<16x32xf32>
      %35 = arith.addf %32, %34 : vector<16x32xf32>
      %c0_15 = arith.constant 0 : index
      %c0_16 = arith.constant 0 : index
      %36 = vector.load %arg9[%c0_15, %c0_16] : memref<32x64xf32, #tpu.memory_space<vmem>>, vector<32x64xf32>
      %cst_17 = arith.constant dense<0.000000e+00> : vector<16x64xf32>
      %37 = tpu.matmul %35, %36, %cst_17 {dimension_numbers = #tpu.dot_dimension_numbers<[1], [0], [0], [1], [0, 0, 1, 1], [], []>} : vector<16x32xf32>, vector<32x64xf32>, vector<16x64xf32> -> vector<16x64xf32>
      %c0_18 = arith.constant 0 : index
      %c0_19 = arith.constant 0 : index
      %38 = vector.load %arg10[%c0_18, %c0_19] : memref<1x64xf32, #tpu.memory_space<vmem>>, vector<1x64xf32>
      %39 = vector.broadcast %38 : vector<1x64xf32> to vector<16x64xf32>
      %40 = arith.addf %37, %39 : vector<16x64xf32>
      %c16_i32_20 = arith.constant 16 : i32
      %41 = arith.muli %arg1, %c16_i32_20 : i32
      %42 = tpu.iota {dimensions = array<i32: 0>} : vector<16x16xi32>
      %43 = vector.broadcast %41 : i32 to vector<16x16xi32>
      %44 = arith.addi %43, %42 : vector<16x16xi32>
      %c16_i32_21 = arith.constant 16 : i32
      %45 = arith.muli %arg2, %c16_i32_21 : i32
      %46 = tpu.iota {dimensions = array<i32: 1>} : vector<16x16xi32>
      %47 = vector.broadcast %45 : i32 to vector<16x16xi32>
      %48 = arith.addi %47, %46 : vector<16x16xi32>
      %49 = arith.cmpi sle, %48, %44 : vector<16x16xi32>
      %c0_22 = arith.constant 0 : index
      %c0_23 = arith.constant 0 : index
      %50 = vector.load %arg14[%c0_22, %c0_23] : memref<16x32xf32, #tpu.memory_space<vmem>>, vector<16x4xf32>
      %51 = vector.extract_strided_slice %40 {offsets = [0, 0], sizes = [16, 4], strides = [1, 1]} : vector<16x64xf32> to vector<16x4xf32>
      %52 = vector.extract_strided_slice %40 {offsets = [0, 32], sizes = [16, 4], strides = [1, 1]} : vector<16x64xf32> to vector<16x4xf32>
      %cst_24 = arith.constant dense<0.000000e+00> : vector<16x16xf32>
      %53 = tpu.matmul %50, %51, %cst_24 {dimension_numbers = #tpu.dot_dimension_numbers<[1], [1], [0], [0], [0, 0, 1, 0], [], []>} : vector<16x4xf32>, vector<16x4xf32>, vector<16x16xf32> -> vector<16x16xf32>
      %cst_25 = arith.constant -1.000000e+30 : f32
      %54 = vector.broadcast %cst_25 : f32 to vector<16x16xf32>
      %55 = arith.select %49, %53, %54 : vector<16x16xi1>, vector<16x16xf32>
      %c0_26 = arith.constant 0 : index
      %c0_27 = arith.constant 0 : index
      %c0_28 = arith.constant 0 : index
      %56 = vector.load %arg15[%c0_26, %c0_27, %c0_28] : memref<8x16x1xf32, #tpu.memory_space<vmem>>, vector<1x16x1xf32>
      %57 = vector.shape_cast %56 : vector<1x16x1xf32> to vector<16x1xf32>
      %cst_29 = arith.constant dense<0xFF800000> : vector<16xf32>
      %58 = vector.multi_reduction <maximumf>, %55, %cst_29 [1] : vector<16x16xf32> to vector<16xf32>
      %59 = vector.shape_cast %58 : vector<16xf32> to vector<16x1xf32>
      %60 = arith.maximumf %57, %59 : vector<16x1xf32>
      %61 = arith.subf %57, %60 : vector<16x1xf32>
      %62 = math.exp %61 : vector<16x1xf32>
      %63 = vector.broadcast %60 : vector<16x1xf32> to vector<16x16xf32>
      %64 = arith.subf %55, %63 : vector<16x16xf32>
      %65 = math.exp %64 : vector<16x16xf32>
      %c0_30 = arith.constant 0 : index
      %c0_31 = arith.constant 0 : index
      %c0_32 = arith.constant 0 : index
      %66 = vector.load %arg16[%c0_30, %c0_31, %c0_32] : memref<8x16x1xf32, #tpu.memory_space<vmem>>, vector<1x16x1xf32>
      %67 = vector.shape_cast %66 : vector<1x16x1xf32> to vector<16x1xf32>
      %68 = arith.mulf %62, %67 : vector<16x1xf32>
      %cst_33 = arith.constant dense<0.000000e+00> : vector<16xf32>
      %69 = vector.multi_reduction <add>, %65, %cst_33 [1] : vector<16x16xf32> to vector<16xf32>
      %70 = vector.shape_cast %69 : vector<16xf32> to vector<16x1xf32>
      %71 = arith.addf %68, %70 : vector<16x1xf32>
      %c0_34 = arith.constant 0 : index
      %c0_35 = arith.constant 0 : index
      %c0_36 = arith.constant 0 : index
      %72 = vector.load %arg16[%c0_34, %c0_35, %c0_36] : memref<8x16x1xf32, #tpu.memory_space<vmem>>, vector<1x16x1xf32>
      %73 = vector.shape_cast %72 : vector<1x16x1xf32> to vector<16x1xf32>
      %74 = vector.shape_cast %71 : vector<16x1xf32> to vector<1x16x1xf32>
      tpu.vector_store %arg16[%c0_34, %c0_35, %c0_36], %74 {strides = array<i32>} : memref<8x16x1xf32, #tpu.memory_space<vmem>>, vector<1x16x1xf32>,
      %c0_37 = arith.constant 0 : index
      %c0_38 = arith.constant 0 : index
      %c0_39 = arith.constant 0 : index
      %75 = vector.load %arg17[%c0_37, %c0_38, %c0_39] : memref<8x16x4xf32, #tpu.memory_space<vmem>>, vector<1x16x4xf32>
      %76 = vector.shape_cast %75 : vector<1x16x4xf32> to vector<16x4xf32>
      %77 = vector.broadcast %62 : vector<16x1xf32> to vector<16x4xf32>
      %78 = arith.mulf %77, %76 : vector<16x4xf32>
      %cst_40 = arith.constant dense<0.000000e+00> : vector<16x4xf32>
      %79 = tpu.matmul %65, %52, %cst_40 {dimension_numbers = #tpu.dot_dimension_numbers<[1], [0], [0], [1], [0, 0, 1, 1], [], []>} : vector<16x16xf32>, vector<16x4xf32>, vector<16x4xf32> -> vector<16x4xf32>
      %80 = arith.addf %78, %79 : vector<16x4xf32>
      %c0_41 = arith.constant 0 : index
      %c0_42 = arith.constant 0 : index
      %c0_43 = arith.constant 0 : index
      %81 = vector.load %arg17[%c0_41, %c0_42, %c0_43] : memref<8x16x4xf32, #tpu.memory_space<vmem>>, vector<1x16x4xf32>
      %82 = vector.shape_cast %81 : vector<1x16x4xf32> to vector<16x4xf32>
      %83 = vector.shape_cast %80 : vector<16x4xf32> to vector<1x16x4xf32>
      tpu.vector_store %arg17[%c0_41, %c0_42, %c0_43], %83 {strides = array<i32>} : memref<8x16x4xf32, #tpu.memory_space<vmem>>, vector<1x16x4xf32>,
      %c0_44 = arith.constant 0 : index
      %c0_45 = arith.constant 0 : index
      %c0_46 = arith.constant 0 : index
      %84 = vector.load %arg15[%c0_44, %c0_45, %c0_46] : memref<8x16x1xf32, #tpu.memory_space<vmem>>, vector<1x16x1xf32>
      %85 = vector.shape_cast %84 : vector<1x16x1xf32> to vector<16x1xf32>
      %86 = vector.shape_cast %60 : vector<16x1xf32> to vector<1x16x1xf32>
      tpu.vector_store %arg15[%c0_44, %c0_45, %c0_46], %86 {strides = array<i32>} : memref<8x16x1xf32, #tpu.memory_space<vmem>>, vector<1x16x1xf32>,
      %c0_47 = arith.constant 0 : index
      %c4 = arith.constant 4 : index
      %87 = vector.load %arg14[%c0_47, %c4] : memref<16x32xf32, #tpu.memory_space<vmem>>, vector<16x4xf32>
      %88 = vector.extract_strided_slice %40 {offsets = [0, 4], sizes = [16, 4], strides = [1, 1]} : vector<16x64xf32> to vector<16x4xf32>
      %89 = vector.extract_strided_slice %40 {offsets = [0, 36], sizes = [16, 4], strides = [1, 1]} : vector<16x64xf32> to vector<16x4xf32>
      %cst_48 = arith.constant dense<0.000000e+00> : vector<16x16xf32>
      %90 = tpu.matmul %87, %88, %cst_48 {dimension_numbers = #tpu.dot_dimension_numbers<[1], [1], [0], [0], [0, 0, 1, 0], [], []>} : vector<16x4xf32>, vector<16x4xf32>, vector<16x16xf32> -> vector<16x16xf32>
      %cst_49 = arith.constant -1.000000e+30 : f32
      %91 = vector.broadcast %cst_49 : f32 to vector<16x16xf32>
      %92 = arith.select %49, %90, %91 : vector<16x16xi1>, vector<16x16xf32>
      %c1 = arith.constant 1 : index
      %c0_50 = arith.constant 0 : index
      %c0_51 = arith.constant 0 : index
      %93 = vector.load %arg15[%c1, %c0_50, %c0_51] : memref<8x16x1xf32, #tpu.memory_space<vmem>>, vector<1x16x1xf32>
      %94 = vector.shape_cast %93 : vector<1x16x1xf32> to vector<16x1xf32>
      %cst_52 = arith.constant dense<0xFF800000> : vector<16xf32>
      %95 = vector.multi_reduction <maximumf>, %92, %cst_52 [1] : vector<16x16xf32> to vector<16xf32>
      %96 = vector.shape_cast %95 : vector<16xf32> to vector<16x1xf32>
      %97 = arith.maximumf %94, %96 : vector<16x1xf32>
      %98 = arith.subf %94, %97 : vector<16x1xf32>
      %99 = math.exp %98 : vector<16x1xf32>
      %100 = vector.broadcast %97 : vector<16x1xf32> to vector<16x16xf32>
      %101 = arith.subf %92, %100 : vector<16x16xf32>
      %102 = math.exp %101 : vector<16x16xf32>
      %c1_53 = arith.constant 1 : index
      %c0_54 = arith.constant 0 : index
      %c0_55 = arith.constant 0 : index
      %103 = vector.load %arg16[%c1_53, %c0_54, %c0_55] : memref<8x16x1xf32, #tpu.memory_space<vmem>>, vector<1x16x1xf32>
      %104 = vector.shape_cast %103 : vector<1x16x1xf32> to vector<16x1xf32>
      %105 = arith.mulf %99, %104 : vector<16x1xf32>
      %cst_56 = arith.constant dense<0.000000e+00> : vector<16xf32>
      %106 = vector.multi_reduction <add>, %102, %cst_56 [1] : vector<16x16xf32> to vector<16xf32>
      %107 = vector.shape_cast %106 : vector<16xf32> to vector<16x1xf32>
      %108 = arith.addf %105, %107 : vector<16x1xf32>
      %c1_57 = arith.constant 1 : index
      %c0_58 = arith.constant 0 : index
      %c0_59 = arith.constant 0 : index
      %109 = vector.load %arg16[%c1_57, %c0_58, %c0_59] : memref<8x16x1xf32, #tpu.memory_space<vmem>>, vector<1x16x1xf32>
      %110 = vector.shape_cast %109 : vector<1x16x1xf32> to vector<16x1xf32>
      %111 = vector.shape_cast %108 : vector<16x1xf32> to vector<1x16x1xf32>
      tpu.vector_store %arg16[%c1_57, %c0_58, %c0_59], %111 {strides = array<i32>} : memref<8x16x1xf32, #tpu.memory_space<vmem>>, vector<1x16x1xf32>,
      %c1_60 = arith.constant 1 : index
      %c0_61 = arith.constant 0 : index
      %c0_62 = arith.constant 0 : index
      %112 = vector.load %arg17[%c1_60, %c0_61, %c0_62] : memref<8x16x4xf32, #tpu.memory_space<vmem>>, vector<1x16x4xf32>
      %113 = vector.shape_cast %112 : vector<1x16x4xf32> to vector<16x4xf32>
      %114 = vector.broadcast %99 : vector<16x1xf32> to vector<16x4xf32>
      %115 = arith.mulf %114, %113 : vector<16x4xf32>
      %cst_63 = arith.constant dense<0.000000e+00> : vector<16x4xf32>
      %116 = tpu.matmul %102, %89, %cst_63 {dimension_numbers = #tpu.dot_dimension_numbers<[1], [0], [0], [1], [0, 0, 1, 1], [], []>} : vector<16x16xf32>, vector<16x4xf32>, vector<16x4xf32> -> vector<16x4xf32>
      %117 = arith.addf %115, %116 : vector<16x4xf32>
      %c1_64 = arith.constant 1 : index
      %c0_65 = arith.constant 0 : index
      %c0_66 = arith.constant 0 : index
      %118 = vector.load %arg17[%c1_64, %c0_65, %c0_66] : memref<8x16x4xf32, #tpu.memory_space<vmem>>, vector<1x16x4xf32>
      %119 = vector.shape_cast %118 : vector<1x16x4xf32> to vector<16x4xf32>
      %120 = vector.shape_cast %117 : vector<16x4xf32> to vector<1x16x4xf32>
      tpu.vector_store %arg17[%c1_64, %c0_65, %c0_66], %120 {strides = array<i32>} : memref<8x16x4xf32, #tpu.memory_space<vmem>>, vector<1x16x4xf32>,
      %c1_67 = arith.constant 1 : index
      %c0_68 = arith.constant 0 : index
      %c0_69 = arith.constant 0 : index
      %121 = vector.load %arg15[%c1_67, %c0_68, %c0_69] : memref<8x16x1xf32, #tpu.memory_space<vmem>>, vector<1x16x1xf32>
      %122 = vector.shape_cast %121 : vector<1x16x1xf32> to vector<16x1xf32>
      %123 = vector.shape_cast %97 : vector<16x1xf32> to vector<1x16x1xf32>
      tpu.vector_store %arg15[%c1_67, %c0_68, %c0_69], %123 {strides = array<i32>} : memref<8x16x1xf32, #tpu.memory_space<vmem>>, vector<1x16x1xf32>,
      %c0_70 = arith.constant 0 : index
      %c8 = arith.constant 8 : index
      %124 = vector.load %arg14[%c0_70, %c8] : memref<16x32xf32, #tpu.memory_space<vmem>>, vector<16x4xf32>
      %125 = vector.extract_strided_slice %40 {offsets = [0, 8], sizes = [16, 4], strides = [1, 1]} : vector<16x64xf32> to vector<16x4xf32>
      %126 = vector.extract_strided_slice %40 {offsets = [0, 40], sizes = [16, 4], strides = [1, 1]} : vector<16x64xf32> to vector<16x4xf32>
      %cst_71 = arith.constant dense<0.000000e+00> : vector<16x16xf32>
      %127 = tpu.matmul %124, %125, %cst_71 {dimension_numbers = #tpu.dot_dimension_numbers<[1], [1], [0], [0], [0, 0, 1, 0], [], []>} : vector<16x4xf32>, vector<16x4xf32>, vector<16x16xf32> -> vector<16x16xf32>
      %cst_72 = arith.constant -1.000000e+30 : f32
      %128 = vector.broadcast %cst_72 : f32 to vector<16x16xf32>
      %129 = arith.select %49, %127, %128 : vector<16x16xi1>, vector<16x16xf32>
      %c2 = arith.constant 2 : index
      %c0_73 = arith.constant 0 : index
      %c0_74 = arith.constant 0 : index
      %130 = vector.load %arg15[%c2, %c0_73, %c0_74] : memref<8x16x1xf32, #tpu.memory_space<vmem>>, vector<1x16x1xf32>
      %131 = vector.shape_cast %130 : vector<1x16x1xf32> to vector<16x1xf32>
      %cst_75 = arith.constant dense<0xFF800000> : vector<16xf32>
      %132 = vector.multi_reduction <maximumf>, %129, %cst_75 [1] : vector<16x16xf32> to vector<16xf32>
      %133 = vector.shape_cast %132 : vector<16xf32> to vector<16x1xf32>
      %134 = arith.maximumf %131, %133 : vector<16x1xf32>
      %135 = arith.subf %131, %134 : vector<16x1xf32>
      %136 = math.exp %135 : vector<16x1xf32>
      %137 = vector.broadcast %134 : vector<16x1xf32> to vector<16x16xf32>
      %138 = arith.subf %129, %137 : vector<16x16xf32>
      %139 = math.exp %138 : vector<16x16xf32>
      %c2_76 = arith.constant 2 : index
      %c0_77 = arith.constant 0 : index
      %c0_78 = arith.constant 0 : index
      %140 = vector.load %arg16[%c2_76, %c0_77, %c0_78] : memref<8x16x1xf32, #tpu.memory_space<vmem>>, vector<1x16x1xf32>
      %141 = vector.shape_cast %140 : vector<1x16x1xf32> to vector<16x1xf32>
      %142 = arith.mulf %136, %141 : vector<16x1xf32>
      %cst_79 = arith.constant dense<0.000000e+00> : vector<16xf32>
      %143 = vector.multi_reduction <add>, %139, %cst_79 [1] : vector<16x16xf32> to vector<16xf32>
      %144 = vector.shape_cast %143 : vector<16xf32> to vector<16x1xf32>
      %145 = arith.addf %142, %144 : vector<16x1xf32>
      %c2_80 = arith.constant 2 : index
      %c0_81 = arith.constant 0 : index
      %c0_82 = arith.constant 0 : index
      %146 = vector.load %arg16[%c2_80, %c0_81, %c0_82] : memref<8x16x1xf32, #tpu.memory_space<vmem>>, vector<1x16x1xf32>
      %147 = vector.shape_cast %146 : vector<1x16x1xf32> to vector<16x1xf32>
      %148 = vector.shape_cast %145 : vector<16x1xf32> to vector<1x16x1xf32>
      tpu.vector_store %arg16[%c2_80, %c0_81, %c0_82], %148 {strides = array<i32>} : memref<8x16x1xf32, #tpu.memory_space<vmem>>, vector<1x16x1xf32>,
      %c2_83 = arith.constant 2 : index
      %c0_84 = arith.constant 0 : index
      %c0_85 = arith.constant 0 : index
      %149 = vector.load %arg17[%c2_83, %c0_84, %c0_85] : memref<8x16x4xf32, #tpu.memory_space<vmem>>, vector<1x16x4xf32>
      %150 = vector.shape_cast %149 : vector<1x16x4xf32> to vector<16x4xf32>
      %151 = vector.broadcast %136 : vector<16x1xf32> to vector<16x4xf32>
      %152 = arith.mulf %151, %150 : vector<16x4xf32>
      %cst_86 = arith.constant dense<0.000000e+00> : vector<16x4xf32>
      %153 = tpu.matmul %139, %126, %cst_86 {dimension_numbers = #tpu.dot_dimension_numbers<[1], [0], [0], [1], [0, 0, 1, 1], [], []>} : vector<16x16xf32>, vector<16x4xf32>, vector<16x4xf32> -> vector<16x4xf32>
      %154 = arith.addf %152, %153 : vector<16x4xf32>
      %c2_87 = arith.constant 2 : index
      %c0_88 = arith.constant 0 : index
      %c0_89 = arith.constant 0 : index
      %155 = vector.load %arg17[%c2_87, %c0_88, %c0_89] : memref<8x16x4xf32, #tpu.memory_space<vmem>>, vector<1x16x4xf32>
      %156 = vector.shape_cast %155 : vector<1x16x4xf32> to vector<16x4xf32>
      %157 = vector.shape_cast %154 : vector<16x4xf32> to vector<1x16x4xf32>
      tpu.vector_store %arg17[%c2_87, %c0_88, %c0_89], %157 {strides = array<i32>} : memref<8x16x4xf32, #tpu.memory_space<vmem>>, vector<1x16x4xf32>,
      %c2_90 = arith.constant 2 : index
      %c0_91 = arith.constant 0 : index
      %c0_92 = arith.constant 0 : index
      %158 = vector.load %arg15[%c2_90, %c0_91, %c0_92] : memref<8x16x1xf32, #tpu.memory_space<vmem>>, vector<1x16x1xf32>
      %159 = vector.shape_cast %158 : vector<1x16x1xf32> to vector<16x1xf32>
      %160 = vector.shape_cast %134 : vector<16x1xf32> to vector<1x16x1xf32>
      tpu.vector_store %arg15[%c2_90, %c0_91, %c0_92], %160 {strides = array<i32>} : memref<8x16x1xf32, #tpu.memory_space<vmem>>, vector<1x16x1xf32>,
      %c0_93 = arith.constant 0 : index
      %c12 = arith.constant 12 : index
      %161 = vector.load %arg14[%c0_93, %c12] : memref<16x32xf32, #tpu.memory_space<vmem>>, vector<16x4xf32>
      %162 = vector.extract_strided_slice %40 {offsets = [0, 12], sizes = [16, 4], strides = [1, 1]} : vector<16x64xf32> to vector<16x4xf32>
      %163 = vector.extract_strided_slice %40 {offsets = [0, 44], sizes = [16, 4], strides = [1, 1]} : vector<16x64xf32> to vector<16x4xf32>
      %cst_94 = arith.constant dense<0.000000e+00> : vector<16x16xf32>
      %164 = tpu.matmul %161, %162, %cst_94 {dimension_numbers = #tpu.dot_dimension_numbers<[1], [1], [0], [0], [0, 0, 1, 0], [], []>} : vector<16x4xf32>, vector<16x4xf32>, vector<16x16xf32> -> vector<16x16xf32>
      %cst_95 = arith.constant -1.000000e+30 : f32
      %165 = vector.broadcast %cst_95 : f32 to vector<16x16xf32>
      %166 = arith.select %49, %164, %165 : vector<16x16xi1>, vector<16x16xf32>
      %c3 = arith.constant 3 : index
      %c0_96 = arith.constant 0 : index
      %c0_97 = arith.constant 0 : index
      %167 = vector.load %arg15[%c3, %c0_96, %c0_97] : memref<8x16x1xf32, #tpu.memory_space<vmem>>, vector<1x16x1xf32>
      %168 = vector.shape_cast %167 : vector<1x16x1xf32> to vector<16x1xf32>
      %cst_98 = arith.constant dense<0xFF800000> : vector<16xf32>
      %169 = vector.multi_reduction <maximumf>, %166, %cst_98 [1] : vector<16x16xf32> to vector<16xf32>
      %170 = vector.shape_cast %169 : vector<16xf32> to vector<16x1xf32>
      %171 = arith.maximumf %168, %170 : vector<16x1xf32>
      %172 = arith.subf %168, %171 : vector<16x1xf32>
      %173 = math.exp %172 : vector<16x1xf32>
      %174 = vector.broadcast %171 : vector<16x1xf32> to vector<16x16xf32>
      %175 = arith.subf %166, %174 : vector<16x16xf32>
      %176 = math.exp %175 : vector<16x16xf32>
      %c3_99 = arith.constant 3 : index
      %c0_100 = arith.constant 0 : index
      %c0_101 = arith.constant 0 : index
      %177 = vector.load %arg16[%c3_99, %c0_100, %c0_101] : memref<8x16x1xf32, #tpu.memory_space<vmem>>, vector<1x16x1xf32>
      %178 = vector.shape_cast %177 : vector<1x16x1xf32> to vector<16x1xf32>
      %179 = arith.mulf %173, %178 : vector<16x1xf32>
      %cst_102 = arith.constant dense<0.000000e+00> : vector<16xf32>
      %180 = vector.multi_reduction <add>, %176, %cst_102 [1] : vector<16x16xf32> to vector<16xf32>
      %181 = vector.shape_cast %180 : vector<16xf32> to vector<16x1xf32>
      %182 = arith.addf %179, %181 : vector<16x1xf32>
      %c3_103 = arith.constant 3 : index
      %c0_104 = arith.constant 0 : index
      %c0_105 = arith.constant 0 : index
      %183 = vector.load %arg16[%c3_103, %c0_104, %c0_105] : memref<8x16x1xf32, #tpu.memory_space<vmem>>, vector<1x16x1xf32>
      %184 = vector.shape_cast %183 : vector<1x16x1xf32> to vector<16x1xf32>
      %185 = vector.shape_cast %182 : vector<16x1xf32> to vector<1x16x1xf32>
      tpu.vector_store %arg16[%c3_103, %c0_104, %c0_105], %185 {strides = array<i32>} : memref<8x16x1xf32, #tpu.memory_space<vmem>>, vector<1x16x1xf32>,
      %c3_106 = arith.constant 3 : index
      %c0_107 = arith.constant 0 : index
      %c0_108 = arith.constant 0 : index
      %186 = vector.load %arg17[%c3_106, %c0_107, %c0_108] : memref<8x16x4xf32, #tpu.memory_space<vmem>>, vector<1x16x4xf32>
      %187 = vector.shape_cast %186 : vector<1x16x4xf32> to vector<16x4xf32>
      %188 = vector.broadcast %173 : vector<16x1xf32> to vector<16x4xf32>
      %189 = arith.mulf %188, %187 : vector<16x4xf32>
      %cst_109 = arith.constant dense<0.000000e+00> : vector<16x4xf32>
      %190 = tpu.matmul %176, %163, %cst_109 {dimension_numbers = #tpu.dot_dimension_numbers<[1], [0], [0], [1], [0, 0, 1, 1], [], []>} : vector<16x16xf32>, vector<16x4xf32>, vector<16x4xf32> -> vector<16x4xf32>
      %191 = arith.addf %189, %190 : vector<16x4xf32>
      %c3_110 = arith.constant 3 : index
      %c0_111 = arith.constant 0 : index
      %c0_112 = arith.constant 0 : index
      %192 = vector.load %arg17[%c3_110, %c0_111, %c0_112] : memref<8x16x4xf32, #tpu.memory_space<vmem>>, vector<1x16x4xf32>
      %193 = vector.shape_cast %192 : vector<1x16x4xf32> to vector<16x4xf32>
      %194 = vector.shape_cast %191 : vector<16x4xf32> to vector<1x16x4xf32>
      tpu.vector_store %arg17[%c3_110, %c0_111, %c0_112], %194 {strides = array<i32>} : memref<8x16x4xf32, #tpu.memory_space<vmem>>, vector<1x16x4xf32>,
      %c3_113 = arith.constant 3 : index
      %c0_114 = arith.constant 0 : index
      %c0_115 = arith.constant 0 : index
      %195 = vector.load %arg15[%c3_113, %c0_114, %c0_115] : memref<8x16x1xf32, #tpu.memory_space<vmem>>, vector<1x16x1xf32>
      %196 = vector.shape_cast %195 : vector<1x16x1xf32> to vector<16x1xf32>
      %197 = vector.shape_cast %171 : vector<16x1xf32> to vector<1x16x1xf32>
      tpu.vector_store %arg15[%c3_113, %c0_114, %c0_115], %197 {strides = array<i32>} : memref<8x16x1xf32, #tpu.memory_space<vmem>>, vector<1x16x1xf32>,
      %c0_116 = arith.constant 0 : index
      %c16 = arith.constant 16 : index
      %198 = vector.load %arg14[%c0_116, %c16] : memref<16x32xf32, #tpu.memory_space<vmem>>, vector<16x4xf32>
      %199 = vector.extract_strided_slice %40 {offsets = [0, 16], sizes = [16, 4], strides = [1, 1]} : vector<16x64xf32> to vector<16x4xf32>
      %200 = vector.extract_strided_slice %40 {offsets = [0, 48], sizes = [16, 4], strides = [1, 1]} : vector<16x64xf32> to vector<16x4xf32>
      %cst_117 = arith.constant dense<0.000000e+00> : vector<16x16xf32>
      %201 = tpu.matmul %198, %199, %cst_117 {dimension_numbers = #tpu.dot_dimension_numbers<[1], [1], [0], [0], [0, 0, 1, 0], [], []>} : vector<16x4xf32>, vector<16x4xf32>, vector<16x16xf32> -> vector<16x16xf32>
      %cst_118 = arith.constant -1.000000e+30 : f32
      %202 = vector.broadcast %cst_118 : f32 to vector<16x16xf32>
      %203 = arith.select %49, %201, %202 : vector<16x16xi1>, vector<16x16xf32>
      %c4_119 = arith.constant 4 : index
      %c0_120 = arith.constant 0 : index
      %c0_121 = arith.constant 0 : index
      %204 = vector.load %arg15[%c4_119, %c0_120, %c0_121] : memref<8x16x1xf32, #tpu.memory_space<vmem>>, vector<1x16x1xf32>
      %205 = vector.shape_cast %204 : vector<1x16x1xf32> to vector<16x1xf32>
      %cst_122 = arith.constant dense<0xFF800000> : vector<16xf32>
      %206 = vector.multi_reduction <maximumf>, %203, %cst_122 [1] : vector<16x16xf32> to vector<16xf32>
      %207 = vector.shape_cast %206 : vector<16xf32> to vector<16x1xf32>
      %208 = arith.maximumf %205, %207 : vector<16x1xf32>
      %209 = arith.subf %205, %208 : vector<16x1xf32>
      %210 = math.exp %209 : vector<16x1xf32>
      %211 = vector.broadcast %208 : vector<16x1xf32> to vector<16x16xf32>
      %212 = arith.subf %203, %211 : vector<16x16xf32>
      %213 = math.exp %212 : vector<16x16xf32>
      %c4_123 = arith.constant 4 : index
      %c0_124 = arith.constant 0 : index
      %c0_125 = arith.constant 0 : index
      %214 = vector.load %arg16[%c4_123, %c0_124, %c0_125] : memref<8x16x1xf32, #tpu.memory_space<vmem>>, vector<1x16x1xf32>
      %215 = vector.shape_cast %214 : vector<1x16x1xf32> to vector<16x1xf32>
      %216 = arith.mulf %210, %215 : vector<16x1xf32>
      %cst_126 = arith.constant dense<0.000000e+00> : vector<16xf32>
      %217 = vector.multi_reduction <add>, %213, %cst_126 [1] : vector<16x16xf32> to vector<16xf32>
      %218 = vector.shape_cast %217 : vector<16xf32> to vector<16x1xf32>
      %219 = arith.addf %216, %218 : vector<16x1xf32>
      %c4_127 = arith.constant 4 : index
      %c0_128 = arith.constant 0 : index
      %c0_129 = arith.constant 0 : index
      %220 = vector.load %arg16[%c4_127, %c0_128, %c0_129] : memref<8x16x1xf32, #tpu.memory_space<vmem>>, vector<1x16x1xf32>
      %221 = vector.shape_cast %220 : vector<1x16x1xf32> to vector<16x1xf32>
      %222 = vector.shape_cast %219 : vector<16x1xf32> to vector<1x16x1xf32>
      tpu.vector_store %arg16[%c4_127, %c0_128, %c0_129], %222 {strides = array<i32>} : memref<8x16x1xf32, #tpu.memory_space<vmem>>, vector<1x16x1xf32>,
      %c4_130 = arith.constant 4 : index
      %c0_131 = arith.constant 0 : index
      %c0_132 = arith.constant 0 : index
      %223 = vector.load %arg17[%c4_130, %c0_131, %c0_132] : memref<8x16x4xf32, #tpu.memory_space<vmem>>, vector<1x16x4xf32>
      %224 = vector.shape_cast %223 : vector<1x16x4xf32> to vector<16x4xf32>
      %225 = vector.broadcast %210 : vector<16x1xf32> to vector<16x4xf32>
      %226 = arith.mulf %225, %224 : vector<16x4xf32>
      %cst_133 = arith.constant dense<0.000000e+00> : vector<16x4xf32>
      %227 = tpu.matmul %213, %200, %cst_133 {dimension_numbers = #tpu.dot_dimension_numbers<[1], [0], [0], [1], [0, 0, 1, 1], [], []>} : vector<16x16xf32>, vector<16x4xf32>, vector<16x4xf32> -> vector<16x4xf32>
      %228 = arith.addf %226, %227 : vector<16x4xf32>
      %c4_134 = arith.constant 4 : index
      %c0_135 = arith.constant 0 : index
      %c0_136 = arith.constant 0 : index
      %229 = vector.load %arg17[%c4_134, %c0_135, %c0_136] : memref<8x16x4xf32, #tpu.memory_space<vmem>>, vector<1x16x4xf32>
      %230 = vector.shape_cast %229 : vector<1x16x4xf32> to vector<16x4xf32>
      %231 = vector.shape_cast %228 : vector<16x4xf32> to vector<1x16x4xf32>
      tpu.vector_store %arg17[%c4_134, %c0_135, %c0_136], %231 {strides = array<i32>} : memref<8x16x4xf32, #tpu.memory_space<vmem>>, vector<1x16x4xf32>,
      %c4_137 = arith.constant 4 : index
      %c0_138 = arith.constant 0 : index
      %c0_139 = arith.constant 0 : index
      %232 = vector.load %arg15[%c4_137, %c0_138, %c0_139] : memref<8x16x1xf32, #tpu.memory_space<vmem>>, vector<1x16x1xf32>
      %233 = vector.shape_cast %232 : vector<1x16x1xf32> to vector<16x1xf32>
      %234 = vector.shape_cast %208 : vector<16x1xf32> to vector<1x16x1xf32>
      tpu.vector_store %arg15[%c4_137, %c0_138, %c0_139], %234 {strides = array<i32>} : memref<8x16x1xf32, #tpu.memory_space<vmem>>, vector<1x16x1xf32>,
      %c0_140 = arith.constant 0 : index
      %c20 = arith.constant 20 : index
      %235 = vector.load %arg14[%c0_140, %c20] : memref<16x32xf32, #tpu.memory_space<vmem>>, vector<16x4xf32>
      %236 = vector.extract_strided_slice %40 {offsets = [0, 20], sizes = [16, 4], strides = [1, 1]} : vector<16x64xf32> to vector<16x4xf32>
      %237 = vector.extract_strided_slice %40 {offsets = [0, 52], sizes = [16, 4], strides = [1, 1]} : vector<16x64xf32> to vector<16x4xf32>
      %cst_141 = arith.constant dense<0.000000e+00> : vector<16x16xf32>
      %238 = tpu.matmul %235, %236, %cst_141 {dimension_numbers = #tpu.dot_dimension_numbers<[1], [1], [0], [0], [0, 0, 1, 0], [], []>} : vector<16x4xf32>, vector<16x4xf32>, vector<16x16xf32> -> vector<16x16xf32>
      %cst_142 = arith.constant -1.000000e+30 : f32
      %239 = vector.broadcast %cst_142 : f32 to vector<16x16xf32>
      %240 = arith.select %49, %238, %239 : vector<16x16xi1>, vector<16x16xf32>
      %c5 = arith.constant 5 : index
      %c0_143 = arith.constant 0 : index
      %c0_144 = arith.constant 0 : index
      %241 = vector.load %arg15[%c5, %c0_143, %c0_144] : memref<8x16x1xf32, #tpu.memory_space<vmem>>, vector<1x16x1xf32>
      %242 = vector.shape_cast %241 : vector<1x16x1xf32> to vector<16x1xf32>
      %cst_145 = arith.constant dense<0xFF800000> : vector<16xf32>
      %243 = vector.multi_reduction <maximumf>, %240, %cst_145 [1] : vector<16x16xf32> to vector<16xf32>
      %244 = vector.shape_cast %243 : vector<16xf32> to vector<16x1xf32>
      %245 = arith.maximumf %242, %244 : vector<16x1xf32>
      %246 = arith.subf %242, %245 : vector<16x1xf32>
      %247 = math.exp %246 : vector<16x1xf32>
      %248 = vector.broadcast %245 : vector<16x1xf32> to vector<16x16xf32>
      %249 = arith.subf %240, %248 : vector<16x16xf32>
      %250 = math.exp %249 : vector<16x16xf32>
      %c5_146 = arith.constant 5 : index
      %c0_147 = arith.constant 0 : index
      %c0_148 = arith.constant 0 : index
      %251 = vector.load %arg16[%c5_146, %c0_147, %c0_148] : memref<8x16x1xf32, #tpu.memory_space<vmem>>, vector<1x16x1xf32>
      %252 = vector.shape_cast %251 : vector<1x16x1xf32> to vector<16x1xf32>
      %253 = arith.mulf %247, %252 : vector<16x1xf32>
      %cst_149 = arith.constant dense<0.000000e+00> : vector<16xf32>
      %254 = vector.multi_reduction <add>, %250, %cst_149 [1] : vector<16x16xf32> to vector<16xf32>
      %255 = vector.shape_cast %254 : vector<16xf32> to vector<16x1xf32>
      %256 = arith.addf %253, %255 : vector<16x1xf32>
      %c5_150 = arith.constant 5 : index
      %c0_151 = arith.constant 0 : index
      %c0_152 = arith.constant 0 : index
      %257 = vector.load %arg16[%c5_150, %c0_151, %c0_152] : memref<8x16x1xf32, #tpu.memory_space<vmem>>, vector<1x16x1xf32>
      %258 = vector.shape_cast %257 : vector<1x16x1xf32> to vector<16x1xf32>
      %259 = vector.shape_cast %256 : vector<16x1xf32> to vector<1x16x1xf32>
      tpu.vector_store %arg16[%c5_150, %c0_151, %c0_152], %259 {strides = array<i32>} : memref<8x16x1xf32, #tpu.memory_space<vmem>>, vector<1x16x1xf32>,
      %c5_153 = arith.constant 5 : index
      %c0_154 = arith.constant 0 : index
      %c0_155 = arith.constant 0 : index
      %260 = vector.load %arg17[%c5_153, %c0_154, %c0_155] : memref<8x16x4xf32, #tpu.memory_space<vmem>>, vector<1x16x4xf32>
      %261 = vector.shape_cast %260 : vector<1x16x4xf32> to vector<16x4xf32>
      %262 = vector.broadcast %247 : vector<16x1xf32> to vector<16x4xf32>
      %263 = arith.mulf %262, %261 : vector<16x4xf32>
      %cst_156 = arith.constant dense<0.000000e+00> : vector<16x4xf32>
      %264 = tpu.matmul %250, %237, %cst_156 {dimension_numbers = #tpu.dot_dimension_numbers<[1], [0], [0], [1], [0, 0, 1, 1], [], []>} : vector<16x16xf32>, vector<16x4xf32>, vector<16x4xf32> -> vector<16x4xf32>
      %265 = arith.addf %263, %264 : vector<16x4xf32>
      %c5_157 = arith.constant 5 : index
      %c0_158 = arith.constant 0 : index
      %c0_159 = arith.constant 0 : index
      %266 = vector.load %arg17[%c5_157, %c0_158, %c0_159] : memref<8x16x4xf32, #tpu.memory_space<vmem>>, vector<1x16x4xf32>
      %267 = vector.shape_cast %266 : vector<1x16x4xf32> to vector<16x4xf32>
      %268 = vector.shape_cast %265 : vector<16x4xf32> to vector<1x16x4xf32>
      tpu.vector_store %arg17[%c5_157, %c0_158, %c0_159], %268 {strides = array<i32>} : memref<8x16x4xf32, #tpu.memory_space<vmem>>, vector<1x16x4xf32>,
      %c5_160 = arith.constant 5 : index
      %c0_161 = arith.constant 0 : index
      %c0_162 = arith.constant 0 : index
      %269 = vector.load %arg15[%c5_160, %c0_161, %c0_162] : memref<8x16x1xf32, #tpu.memory_space<vmem>>, vector<1x16x1xf32>
      %270 = vector.shape_cast %269 : vector<1x16x1xf32> to vector<16x1xf32>
      %271 = vector.shape_cast %245 : vector<16x1xf32> to vector<1x16x1xf32>
      tpu.vector_store %arg15[%c5_160, %c0_161, %c0_162], %271 {strides = array<i32>} : memref<8x16x1xf32, #tpu.memory_space<vmem>>, vector<1x16x1xf32>,
      %c0_163 = arith.constant 0 : index
      %c24 = arith.constant 24 : index
      %272 = vector.load %arg14[%c0_163, %c24] : memref<16x32xf32, #tpu.memory_space<vmem>>, vector<16x4xf32>
      %273 = vector.extract_strided_slice %40 {offsets = [0, 24], sizes = [16, 4], strides = [1, 1]} : vector<16x64xf32> to vector<16x4xf32>
      %274 = vector.extract_strided_slice %40 {offsets = [0, 56], sizes = [16, 4], strides = [1, 1]} : vector<16x64xf32> to vector<16x4xf32>
      %cst_164 = arith.constant dense<0.000000e+00> : vector<16x16xf32>
      %275 = tpu.matmul %272, %273, %cst_164 {dimension_numbers = #tpu.dot_dimension_numbers<[1], [1], [0], [0], [0, 0, 1, 0], [], []>} : vector<16x4xf32>, vector<16x4xf32>, vector<16x16xf32> -> vector<16x16xf32>
      %cst_165 = arith.constant -1.000000e+30 : f32
      %276 = vector.broadcast %cst_165 : f32 to vector<16x16xf32>
      %277 = arith.select %49, %275, %276 : vector<16x16xi1>, vector<16x16xf32>
      %c6 = arith.constant 6 : index
      %c0_166 = arith.constant 0 : index
      %c0_167 = arith.constant 0 : index
      %278 = vector.load %arg15[%c6, %c0_166, %c0_167] : memref<8x16x1xf32, #tpu.memory_space<vmem>>, vector<1x16x1xf32>
      %279 = vector.shape_cast %278 : vector<1x16x1xf32> to vector<16x1xf32>
      %cst_168 = arith.constant dense<0xFF800000> : vector<16xf32>
      %280 = vector.multi_reduction <maximumf>, %277, %cst_168 [1] : vector<16x16xf32> to vector<16xf32>
      %281 = vector.shape_cast %280 : vector<16xf32> to vector<16x1xf32>
      %282 = arith.maximumf %279, %281 : vector<16x1xf32>
      %283 = arith.subf %279, %282 : vector<16x1xf32>
      %284 = math.exp %283 : vector<16x1xf32>
      %285 = vector.broadcast %282 : vector<16x1xf32> to vector<16x16xf32>
      %286 = arith.subf %277, %285 : vector<16x16xf32>
      %287 = math.exp %286 : vector<16x16xf32>
      %c6_169 = arith.constant 6 : index
      %c0_170 = arith.constant 0 : index
      %c0_171 = arith.constant 0 : index
      %288 = vector.load %arg16[%c6_169, %c0_170, %c0_171] : memref<8x16x1xf32, #tpu.memory_space<vmem>>, vector<1x16x1xf32>
      %289 = vector.shape_cast %288 : vector<1x16x1xf32> to vector<16x1xf32>
      %290 = arith.mulf %284, %289 : vector<16x1xf32>
      %cst_172 = arith.constant dense<0.000000e+00> : vector<16xf32>
      %291 = vector.multi_reduction <add>, %287, %cst_172 [1] : vector<16x16xf32> to vector<16xf32>
      %292 = vector.shape_cast %291 : vector<16xf32> to vector<16x1xf32>
      %293 = arith.addf %290, %292 : vector<16x1xf32>
      %c6_173 = arith.constant 6 : index
      %c0_174 = arith.constant 0 : index
      %c0_175 = arith.constant 0 : index
      %294 = vector.load %arg16[%c6_173, %c0_174, %c0_175] : memref<8x16x1xf32, #tpu.memory_space<vmem>>, vector<1x16x1xf32>
      %295 = vector.shape_cast %294 : vector<1x16x1xf32> to vector<16x1xf32>
      %296 = vector.shape_cast %293 : vector<16x1xf32> to vector<1x16x1xf32>
      tpu.vector_store %arg16[%c6_173, %c0_174, %c0_175], %296 {strides = array<i32>} : memref<8x16x1xf32, #tpu.memory_space<vmem>>, vector<1x16x1xf32>,
      %c6_176 = arith.constant 6 : index
      %c0_177 = arith.constant 0 : index
      %c0_178 = arith.constant 0 : index
      %297 = vector.load %arg17[%c6_176, %c0_177, %c0_178] : memref<8x16x4xf32, #tpu.memory_space<vmem>>, vector<1x16x4xf32>
      %298 = vector.shape_cast %297 : vector<1x16x4xf32> to vector<16x4xf32>
      %299 = vector.broadcast %284 : vector<16x1xf32> to vector<16x4xf32>
      %300 = arith.mulf %299, %298 : vector<16x4xf32>
      %cst_179 = arith.constant dense<0.000000e+00> : vector<16x4xf32>
      %301 = tpu.matmul %287, %274, %cst_179 {dimension_numbers = #tpu.dot_dimension_numbers<[1], [0], [0], [1], [0, 0, 1, 1], [], []>} : vector<16x16xf32>, vector<16x4xf32>, vector<16x4xf32> -> vector<16x4xf32>
      %302 = arith.addf %300, %301 : vector<16x4xf32>
      %c6_180 = arith.constant 6 : index
      %c0_181 = arith.constant 0 : index
      %c0_182 = arith.constant 0 : index
      %303 = vector.load %arg17[%c6_180, %c0_181, %c0_182] : memref<8x16x4xf32, #tpu.memory_space<vmem>>, vector<1x16x4xf32>
      %304 = vector.shape_cast %303 : vector<1x16x4xf32> to vector<16x4xf32>
      %305 = vector.shape_cast %302 : vector<16x4xf32> to vector<1x16x4xf32>
      tpu.vector_store %arg17[%c6_180, %c0_181, %c0_182], %305 {strides = array<i32>} : memref<8x16x4xf32, #tpu.memory_space<vmem>>, vector<1x16x4xf32>,
      %c6_183 = arith.constant 6 : index
      %c0_184 = arith.constant 0 : index
      %c0_185 = arith.constant 0 : index
      %306 = vector.load %arg15[%c6_183, %c0_184, %c0_185] : memref<8x16x1xf32, #tpu.memory_space<vmem>>, vector<1x16x1xf32>
      %307 = vector.shape_cast %306 : vector<1x16x1xf32> to vector<16x1xf32>
      %308 = vector.shape_cast %282 : vector<16x1xf32> to vector<1x16x1xf32>
      tpu.vector_store %arg15[%c6_183, %c0_184, %c0_185], %308 {strides = array<i32>} : memref<8x16x1xf32, #tpu.memory_space<vmem>>, vector<1x16x1xf32>,
      %c0_186 = arith.constant 0 : index
      %c28 = arith.constant 28 : index
      %309 = vector.load %arg14[%c0_186, %c28] : memref<16x32xf32, #tpu.memory_space<vmem>>, vector<16x4xf32>
      %310 = vector.extract_strided_slice %40 {offsets = [0, 28], sizes = [16, 4], strides = [1, 1]} : vector<16x64xf32> to vector<16x4xf32>
      %311 = vector.extract_strided_slice %40 {offsets = [0, 60], sizes = [16, 4], strides = [1, 1]} : vector<16x64xf32> to vector<16x4xf32>
      %cst_187 = arith.constant dense<0.000000e+00> : vector<16x16xf32>
      %312 = tpu.matmul %309, %310, %cst_187 {dimension_numbers = #tpu.dot_dimension_numbers<[1], [1], [0], [0], [0, 0, 1, 0], [], []>} : vector<16x4xf32>, vector<16x4xf32>, vector<16x16xf32> -> vector<16x16xf32>
      %cst_188 = arith.constant -1.000000e+30 : f32
      %313 = vector.broadcast %cst_188 : f32 to vector<16x16xf32>
      %314 = arith.select %49, %312, %313 : vector<16x16xi1>, vector<16x16xf32>
      %c7 = arith.constant 7 : index
      %c0_189 = arith.constant 0 : index
      %c0_190 = arith.constant 0 : index
      %315 = vector.load %arg15[%c7, %c0_189, %c0_190] : memref<8x16x1xf32, #tpu.memory_space<vmem>>, vector<1x16x1xf32>
      %316 = vector.shape_cast %315 : vector<1x16x1xf32> to vector<16x1xf32>
      %cst_191 = arith.constant dense<0xFF800000> : vector<16xf32>
      %317 = vector.multi_reduction <maximumf>, %314, %cst_191 [1] : vector<16x16xf32> to vector<16xf32>
      %318 = vector.shape_cast %317 : vector<16xf32> to vector<16x1xf32>
      %319 = arith.maximumf %316, %318 : vector<16x1xf32>
      %320 = arith.subf %316, %319 : vector<16x1xf32>
      %321 = math.exp %320 : vector<16x1xf32>
      %322 = vector.broadcast %319 : vector<16x1xf32> to vector<16x16xf32>
      %323 = arith.subf %314, %322 : vector<16x16xf32>
      %324 = math.exp %323 : vector<16x16xf32>
      %c7_192 = arith.constant 7 : index
      %c0_193 = arith.constant 0 : index
      %c0_194 = arith.constant 0 : index
      %325 = vector.load %arg16[%c7_192, %c0_193, %c0_194] : memref<8x16x1xf32, #tpu.memory_space<vmem>>, vector<1x16x1xf32>
      %326 = vector.shape_cast %325 : vector<1x16x1xf32> to vector<16x1xf32>
      %327 = arith.mulf %321, %326 : vector<16x1xf32>
      %cst_195 = arith.constant dense<0.000000e+00> : vector<16xf32>
      %328 = vector.multi_reduction <add>, %324, %cst_195 [1] : vector<16x16xf32> to vector<16xf32>
      %329 = vector.shape_cast %328 : vector<16xf32> to vector<16x1xf32>
      %330 = arith.addf %327, %329 : vector<16x1xf32>
      %c7_196 = arith.constant 7 : index
      %c0_197 = arith.constant 0 : index
      %c0_198 = arith.constant 0 : index
      %331 = vector.load %arg16[%c7_196, %c0_197, %c0_198] : memref<8x16x1xf32, #tpu.memory_space<vmem>>, vector<1x16x1xf32>
      %332 = vector.shape_cast %331 : vector<1x16x1xf32> to vector<16x1xf32>
      %333 = vector.shape_cast %330 : vector<16x1xf32> to vector<1x16x1xf32>
      tpu.vector_store %arg16[%c7_196, %c0_197, %c0_198], %333 {strides = array<i32>} : memref<8x16x1xf32, #tpu.memory_space<vmem>>, vector<1x16x1xf32>,
      %c7_199 = arith.constant 7 : index
      %c0_200 = arith.constant 0 : index
      %c0_201 = arith.constant 0 : index
      %334 = vector.load %arg17[%c7_199, %c0_200, %c0_201] : memref<8x16x4xf32, #tpu.memory_space<vmem>>, vector<1x16x4xf32>
      %335 = vector.shape_cast %334 : vector<1x16x4xf32> to vector<16x4xf32>
      %336 = vector.broadcast %321 : vector<16x1xf32> to vector<16x4xf32>
      %337 = arith.mulf %336, %335 : vector<16x4xf32>
      %cst_202 = arith.constant dense<0.000000e+00> : vector<16x4xf32>
      %338 = tpu.matmul %324, %311, %cst_202 {dimension_numbers = #tpu.dot_dimension_numbers<[1], [0], [0], [1], [0, 0, 1, 1], [], []>} : vector<16x16xf32>, vector<16x4xf32>, vector<16x4xf32> -> vector<16x4xf32>
      %339 = arith.addf %337, %338 : vector<16x4xf32>
      %c7_203 = arith.constant 7 : index
      %c0_204 = arith.constant 0 : index
      %c0_205 = arith.constant 0 : index
      %340 = vector.load %arg17[%c7_203, %c0_204, %c0_205] : memref<8x16x4xf32, #tpu.memory_space<vmem>>, vector<1x16x4xf32>
      %341 = vector.shape_cast %340 : vector<1x16x4xf32> to vector<16x4xf32>
      %342 = vector.shape_cast %339 : vector<16x4xf32> to vector<1x16x4xf32>
      tpu.vector_store %arg17[%c7_203, %c0_204, %c0_205], %342 {strides = array<i32>} : memref<8x16x4xf32, #tpu.memory_space<vmem>>, vector<1x16x4xf32>,
      %c7_206 = arith.constant 7 : index
      %c0_207 = arith.constant 0 : index
      %c0_208 = arith.constant 0 : index
      %343 = vector.load %arg15[%c7_206, %c0_207, %c0_208] : memref<8x16x1xf32, #tpu.memory_space<vmem>>, vector<1x16x1xf32>
      %344 = vector.shape_cast %343 : vector<1x16x1xf32> to vector<16x1xf32>
      %345 = vector.shape_cast %319 : vector<16x1xf32> to vector<1x16x1xf32>
      tpu.vector_store %arg15[%c7_206, %c0_207, %c0_208], %345 {strides = array<i32>} : memref<8x16x1xf32, #tpu.memory_space<vmem>>, vector<1x16x1xf32>,
    } else {
    }
    %c0_i32_3 = arith.constant 0 : i32
    %9 = arith.cmpi eq, %arg2, %c0_i32_3 : i32
    %10 = arith.extui %9 : i1 to i32
    %c0_i32_4 = arith.constant 0 : i32
    %11 = arith.cmpi ne, %10, %c0_i32_4 : i32
    scf.if %11 {
      %c0 = arith.constant 0 : index
      %c0_5 = arith.constant 0 : index
      %c0_6 = arith.constant 0 : index
      %12 = vector.load %arg17[%c0, %c0_5, %c0_6] : memref<8x16x4xf32, #tpu.memory_space<vmem>>, vector<1x16x4xf32>
      %13 = vector.shape_cast %12 : vector<1x16x4xf32> to vector<16x4xf32>
      %c0_7 = arith.constant 0 : index
      %c0_8 = arith.constant 0 : index
      %c0_9 = arith.constant 0 : index
      %14 = vector.load %arg16[%c0_7, %c0_8, %c0_9] : memref<8x16x1xf32, #tpu.memory_space<vmem>>, vector<1x16x1xf32>
      %15 = vector.shape_cast %14 : vector<1x16x1xf32> to vector<16x1xf32>
      %cst = arith.constant 1.000000e+00 : f32
      %16 = vector.broadcast %cst : f32 to vector<16x1xf32>
      %17 = arith.divf %16, %15 : vector<16x1xf32>
      %18 = vector.broadcast %17 : vector<16x1xf32> to vector<16x4xf32>
      %19 = arith.mulf %13, %18 : vector<16x4xf32>
      %c0_10 = arith.constant 0 : index
      %c0_11 = arith.constant 0 : index
      %20 = vector.load %arg18[%c0_10, %c0_11] : memref<16x32xf32, #tpu.memory_space<vmem>>, vector<16x4xf32>
      tpu.vector_store %arg18[%c0_10, %c0_11], %19 {strides = array<i32>} : memref<16x32xf32, #tpu.memory_space<vmem>>, vector<16x4xf32>,
      %c1 = arith.constant 1 : index
      %c0_12 = arith.constant 0 : index
      %c0_13 = arith.constant 0 : index
      %21 = vector.load %arg17[%c1, %c0_12, %c0_13] : memref<8x16x4xf32, #tpu.memory_space<vmem>>, vector<1x16x4xf32>
      %22 = vector.shape_cast %21 : vector<1x16x4xf32> to vector<16x4xf32>
      %c1_14 = arith.constant 1 : index
      %c0_15 = arith.constant 0 : index
      %c0_16 = arith.constant 0 : index
      %23 = vector.load %arg16[%c1_14, %c0_15, %c0_16] : memref<8x16x1xf32, #tpu.memory_space<vmem>>, vector<1x16x1xf32>
      %24 = vector.shape_cast %23 : vector<1x16x1xf32> to vector<16x1xf32>
      %cst_17 = arith.constant 1.000000e+00 : f32
      %25 = vector.broadcast %cst_17 : f32 to vector<16x1xf32>
      %26 = arith.divf %25, %24 : vector<16x1xf32>
      %27 = vector.broadcast %26 : vector<16x1xf32> to vector<16x4xf32>
      %28 = arith.mulf %22, %27 : vector<16x4xf32>
      %c0_18 = arith.constant 0 : index
      %c4 = arith.constant 4 : index
      %29 = vector.load %arg18[%c0_18, %c4] : memref<16x32xf32, #tpu.memory_space<vmem>>, vector<16x4xf32>
      tpu.vector_store %arg18[%c0_18, %c4], %28 {strides = array<i32>} : memref<16x32xf32, #tpu.memory_space<vmem>>, vector<16x4xf32>,
      %c2 = arith.constant 2 : index
      %c0_19 = arith.constant 0 : index
      %c0_20 = arith.constant 0 : index
      %30 = vector.load %arg17[%c2, %c0_19, %c0_20] : memref<8x16x4xf32, #tpu.memory_space<vmem>>, vector<1x16x4xf32>
      %31 = vector.shape_cast %30 : vector<1x16x4xf32> to vector<16x4xf32>
      %c2_21 = arith.constant 2 : index
      %c0_22 = arith.constant 0 : index
      %c0_23 = arith.constant 0 : index
      %32 = vector.load %arg16[%c2_21, %c0_22, %c0_23] : memref<8x16x1xf32, #tpu.memory_space<vmem>>, vector<1x16x1xf32>
      %33 = vector.shape_cast %32 : vector<1x16x1xf32> to vector<16x1xf32>
      %cst_24 = arith.constant 1.000000e+00 : f32
      %34 = vector.broadcast %cst_24 : f32 to vector<16x1xf32>
      %35 = arith.divf %34, %33 : vector<16x1xf32>
      %36 = vector.broadcast %35 : vector<16x1xf32> to vector<16x4xf32>
      %37 = arith.mulf %31, %36 : vector<16x4xf32>
      %c0_25 = arith.constant 0 : index
      %c8 = arith.constant 8 : index
      %38 = vector.load %arg18[%c0_25, %c8] : memref<16x32xf32, #tpu.memory_space<vmem>>, vector<16x4xf32>
      tpu.vector_store %arg18[%c0_25, %c8], %37 {strides = array<i32>} : memref<16x32xf32, #tpu.memory_space<vmem>>, vector<16x4xf32>,
      %c3 = arith.constant 3 : index
      %c0_26 = arith.constant 0 : index
      %c0_27 = arith.constant 0 : index
      %39 = vector.load %arg17[%c3, %c0_26, %c0_27] : memref<8x16x4xf32, #tpu.memory_space<vmem>>, vector<1x16x4xf32>
      %40 = vector.shape_cast %39 : vector<1x16x4xf32> to vector<16x4xf32>
      %c3_28 = arith.constant 3 : index
      %c0_29 = arith.constant 0 : index
      %c0_30 = arith.constant 0 : index
      %41 = vector.load %arg16[%c3_28, %c0_29, %c0_30] : memref<8x16x1xf32, #tpu.memory_space<vmem>>, vector<1x16x1xf32>
      %42 = vector.shape_cast %41 : vector<1x16x1xf32> to vector<16x1xf32>
      %cst_31 = arith.constant 1.000000e+00 : f32
      %43 = vector.broadcast %cst_31 : f32 to vector<16x1xf32>
      %44 = arith.divf %43, %42 : vector<16x1xf32>
      %45 = vector.broadcast %44 : vector<16x1xf32> to vector<16x4xf32>
      %46 = arith.mulf %40, %45 : vector<16x4xf32>
      %c0_32 = arith.constant 0 : index
      %c12 = arith.constant 12 : index
      %47 = vector.load %arg18[%c0_32, %c12] : memref<16x32xf32, #tpu.memory_space<vmem>>, vector<16x4xf32>
      tpu.vector_store %arg18[%c0_32, %c12], %46 {strides = array<i32>} : memref<16x32xf32, #tpu.memory_space<vmem>>, vector<16x4xf32>,
      %c4_33 = arith.constant 4 : index
      %c0_34 = arith.constant 0 : index
      %c0_35 = arith.constant 0 : index
      %48 = vector.load %arg17[%c4_33, %c0_34, %c0_35] : memref<8x16x4xf32, #tpu.memory_space<vmem>>, vector<1x16x4xf32>
      %49 = vector.shape_cast %48 : vector<1x16x4xf32> to vector<16x4xf32>
      %c4_36 = arith.constant 4 : index
      %c0_37 = arith.constant 0 : index
      %c0_38 = arith.constant 0 : index
      %50 = vector.load %arg16[%c4_36, %c0_37, %c0_38] : memref<8x16x1xf32, #tpu.memory_space<vmem>>, vector<1x16x1xf32>
      %51 = vector.shape_cast %50 : vector<1x16x1xf32> to vector<16x1xf32>
      %cst_39 = arith.constant 1.000000e+00 : f32
      %52 = vector.broadcast %cst_39 : f32 to vector<16x1xf32>
      %53 = arith.divf %52, %51 : vector<16x1xf32>
      %54 = vector.broadcast %53 : vector<16x1xf32> to vector<16x4xf32>
      %55 = arith.mulf %49, %54 : vector<16x4xf32>
      %c0_40 = arith.constant 0 : index
      %c16 = arith.constant 16 : index
      %56 = vector.load %arg18[%c0_40, %c16] : memref<16x32xf32, #tpu.memory_space<vmem>>, vector<16x4xf32>
      tpu.vector_store %arg18[%c0_40, %c16], %55 {strides = array<i32>} : memref<16x32xf32, #tpu.memory_space<vmem>>, vector<16x4xf32>,
      %c5 = arith.constant 5 : index
      %c0_41 = arith.constant 0 : index
      %c0_42 = arith.constant 0 : index
      %57 = vector.load %arg17[%c5, %c0_41, %c0_42] : memref<8x16x4xf32, #tpu.memory_space<vmem>>, vector<1x16x4xf32>
      %58 = vector.shape_cast %57 : vector<1x16x4xf32> to vector<16x4xf32>
      %c5_43 = arith.constant 5 : index
      %c0_44 = arith.constant 0 : index
      %c0_45 = arith.constant 0 : index
      %59 = vector.load %arg16[%c5_43, %c0_44, %c0_45] : memref<8x16x1xf32, #tpu.memory_space<vmem>>, vector<1x16x1xf32>
      %60 = vector.shape_cast %59 : vector<1x16x1xf32> to vector<16x1xf32>
      %cst_46 = arith.constant 1.000000e+00 : f32
      %61 = vector.broadcast %cst_46 : f32 to vector<16x1xf32>
      %62 = arith.divf %61, %60 : vector<16x1xf32>
      %63 = vector.broadcast %62 : vector<16x1xf32> to vector<16x4xf32>
      %64 = arith.mulf %58, %63 : vector<16x4xf32>
      %c0_47 = arith.constant 0 : index
      %c20 = arith.constant 20 : index
      %65 = vector.load %arg18[%c0_47, %c20] : memref<16x32xf32, #tpu.memory_space<vmem>>, vector<16x4xf32>
      tpu.vector_store %arg18[%c0_47, %c20], %64 {strides = array<i32>} : memref<16x32xf32, #tpu.memory_space<vmem>>, vector<16x4xf32>,
      %c6 = arith.constant 6 : index
      %c0_48 = arith.constant 0 : index
      %c0_49 = arith.constant 0 : index
      %66 = vector.load %arg17[%c6, %c0_48, %c0_49] : memref<8x16x4xf32, #tpu.memory_space<vmem>>, vector<1x16x4xf32>
      %67 = vector.shape_cast %66 : vector<1x16x4xf32> to vector<16x4xf32>
      %c6_50 = arith.constant 6 : index
      %c0_51 = arith.constant 0 : index
      %c0_52 = arith.constant 0 : index
      %68 = vector.load %arg16[%c6_50, %c0_51, %c0_52] : memref<8x16x1xf32, #tpu.memory_space<vmem>>, vector<1x16x1xf32>
      %69 = vector.shape_cast %68 : vector<1x16x1xf32> to vector<16x1xf32>
      %cst_53 = arith.constant 1.000000e+00 : f32
      %70 = vector.broadcast %cst_53 : f32 to vector<16x1xf32>
      %71 = arith.divf %70, %69 : vector<16x1xf32>
      %72 = vector.broadcast %71 : vector<16x1xf32> to vector<16x4xf32>
      %73 = arith.mulf %67, %72 : vector<16x4xf32>
      %c0_54 = arith.constant 0 : index
      %c24 = arith.constant 24 : index
      %74 = vector.load %arg18[%c0_54, %c24] : memref<16x32xf32, #tpu.memory_space<vmem>>, vector<16x4xf32>
      tpu.vector_store %arg18[%c0_54, %c24], %73 {strides = array<i32>} : memref<16x32xf32, #tpu.memory_space<vmem>>, vector<16x4xf32>,
      %c7 = arith.constant 7 : index
      %c0_55 = arith.constant 0 : index
      %c0_56 = arith.constant 0 : index
      %75 = vector.load %arg17[%c7, %c0_55, %c0_56] : memref<8x16x4xf32, #tpu.memory_space<vmem>>, vector<1x16x4xf32>
      %76 = vector.shape_cast %75 : vector<1x16x4xf32> to vector<16x4xf32>
      %c7_57 = arith.constant 7 : index
      %c0_58 = arith.constant 0 : index
      %c0_59 = arith.constant 0 : index
      %77 = vector.load %arg16[%c7_57, %c0_58, %c0_59] : memref<8x16x1xf32, #tpu.memory_space<vmem>>, vector<1x16x1xf32>
      %78 = vector.shape_cast %77 : vector<1x16x1xf32> to vector<16x1xf32>
      %cst_60 = arith.constant 1.000000e+00 : f32
      %79 = vector.broadcast %cst_60 : f32 to vector<16x1xf32>
      %80 = arith.divf %79, %78 : vector<16x1xf32>
      %81 = vector.broadcast %80 : vector<16x1xf32> to vector<16x4xf32>
      %82 = arith.mulf %76, %81 : vector<16x4xf32>
      %c0_61 = arith.constant 0 : index
      %c28 = arith.constant 28 : index
      %83 = vector.load %arg18[%c0_61, %c28] : memref<16x32xf32, #tpu.memory_space<vmem>>, vector<16x4xf32>
      tpu.vector_store %arg18[%c0_61, %c28], %82 {strides = array<i32>} : memref<16x32xf32, #tpu.memory_space<vmem>>, vector<16x4xf32>,
      %c0_62 = arith.constant 0 : index
      %c0_63 = arith.constant 0 : index
      %84 = vector.load %arg18[%c0_62, %c0_63] : memref<16x32xf32, #tpu.memory_space<vmem>>, vector<16x32xf32>
      %c0_64 = arith.constant 0 : index
      %c0_65 = arith.constant 0 : index
      %85 = vector.load %arg11[%c0_64, %c0_65] : memref<32x32xf32, #tpu.memory_space<vmem>>, vector<32x32xf32>
      %cst_66 = arith.constant dense<0.000000e+00> : vector<16x32xf32>
      %86 = tpu.matmul %84, %85, %cst_66 {dimension_numbers = #tpu.dot_dimension_numbers<[1], [0], [0], [1], [0, 0, 1, 1], [], []>} : vector<16x32xf32>, vector<32x32xf32>, vector<16x32xf32> -> vector<16x32xf32>
      %c0_67 = arith.constant 0 : index
      %c0_68 = arith.constant 0 : index
      %c0_69 = arith.constant 0 : index
      %87 = vector.load %arg3[%c0_67, %c0_68, %c0_69] : memref<1x16x32xf32, #tpu.memory_space<vmem>>, vector<1x16x32xf32>
      %88 = vector.shape_cast %87 : vector<1x16x32xf32> to vector<16x32xf32>
      %c0_70 = arith.constant 0 : index
      %c0_71 = arith.constant 0 : index
      %89 = vector.load %arg12[%c0_70, %c0_71] : memref<1x32xf32, #tpu.memory_space<vmem>>, vector<1x32xf32>
      %90 = vector.broadcast %89 : vector<1x32xf32> to vector<16x32xf32>
      %91 = arith.addf %88, %90 : vector<16x32xf32>
      %92 = arith.addf %91, %86 : vector<16x32xf32>
      %c0_72 = arith.constant 0 : index
      %c0_73 = arith.constant 0 : index
      %c0_74 = arith.constant 0 : index
      %93 = vector.load %arg13[%c0_72, %c0_73, %c0_74] : memref<1x16x32xf32, #tpu.memory_space<vmem>>, vector<1x16x32xf32>
      %94 = vector.shape_cast %93 : vector<1x16x32xf32> to vector<16x32xf32>
      %95 = vector.shape_cast %92 : vector<16x32xf32> to vector<1x16x32xf32>
      tpu.vector_store %arg13[%c0_72, %c0_73, %c0_74], %95 {strides = array<i32>} : memref<1x16x32xf32, #tpu.memory_space<vmem>>, vector<1x16x32xf32>,
    } else {
    }
    return
  }
  func.func @transform_0(%arg0: i32, %arg1: i32, %arg2: i32) -> (i32, i32, i32) {
    %c0_i32 = arith.constant 0 : i32
    %c0_i32_0 = arith.constant 0 : i32
    return %arg0, %arg1, %c0_i32 : i32, i32, i32
  }
  func.func @transform_1(%arg0: i32, %arg1: i32, %arg2: i32) -> (i32, i32, i32) {
    %c0_i32 = arith.constant 0 : i32
    %c0_i32_0 = arith.constant 0 : i32
    return %arg0, %arg2, %c0_i32 : i32, i32, i32
  }
  func.func @transform_2(%arg0: i32, %arg1: i32, %arg2: i32) -> (i32, i32) {
    %c0_i32 = arith.constant 0 : i32
    %c0_i32_0 = arith.constant 0 : i32
    %c0_i32_1 = arith.constant 0 : i32
    return %c0_i32, %c0_i32_0 : i32, i32
  }
  func.func @transform_3(%arg0: i32, %arg1: i32, %arg2: i32) -> (i32, i32) {
    %c0_i32 = arith.constant 0 : i32
    %c0_i32_0 = arith.constant 0 : i32
    %c0_i32_1 = arith.constant 0 : i32
    return %c0_i32, %c0_i32_0 : i32, i32
  }
  func.func @transform_4(%arg0: i32, %arg1: i32, %arg2: i32) -> (i32, i32) {
    %c0_i32 = arith.constant 0 : i32
    %c0_i32_0 = arith.constant 0 : i32
    %c0_i32_1 = arith.constant 0 : i32
    return %c0_i32, %c0_i32_0 : i32, i32
  }
  func.func @transform_5(%arg0: i32, %arg1: i32, %arg2: i32) -> (i32, i32) {
    %c0_i32 = arith.constant 0 : i32
    %c0_i32_0 = arith.constant 0 : i32
    %c0_i32_1 = arith.constant 0 : i32
    return %c0_i32, %c0_i32_0 : i32, i32
  }
  func.func @transform_6(%arg0: i32, %arg1: i32, %arg2: i32) -> (i32, i32) {
    %c0_i32 = arith.constant 0 : i32
    %c0_i32_0 = arith.constant 0 : i32
    %c0_i32_1 = arith.constant 0 : i32
    return %c0_i32, %c0_i32_0 : i32, i32
  }
  func.func @transform_7(%arg0: i32, %arg1: i32, %arg2: i32) -> (i32, i32) {
    %c0_i32 = arith.constant 0 : i32
    %c0_i32_0 = arith.constant 0 : i32
    %c0_i32_1 = arith.constant 0 : i32
    return %c0_i32, %c0_i32_0 : i32, i32
  }
  func.func @transform_8(%arg0: i32, %arg1: i32, %arg2: i32) -> (i32, i32) {
    %c0_i32 = arith.constant 0 : i32
    %c0_i32_0 = arith.constant 0 : i32
    %c0_i32_1 = arith.constant 0 : i32
    return %c0_i32, %c0_i32_0 : i32, i32
  }
  func.func @transform_9(%arg0: i32, %arg1: i32, %arg2: i32) -> (i32, i32) {
    %c0_i32 = arith.constant 0 : i32
    %c0_i32_0 = arith.constant 0 : i32
    %c0_i32_1 = arith.constant 0 : i32
    return %c0_i32, %c0_i32_0 : i32, i32
  }
  func.func @transform_10(%arg0: i32, %arg1: i32, %arg2: i32) -> (i32, i32, i32) {
    %c0_i32 = arith.constant 0 : i32
    %c0_i32_0 = arith.constant 0 : i32
    return %arg0, %arg1, %c0_i32 : i32, i32, i32
  }
}

</mosaic_0001>

<llo_original>
// kernel: tpu_custom_call.1
$region0: #{tpu_custom_call.1}
  #allocation0 [shape = 'u32[]', space=smem, size = 0x4, offset = 0x4, fixed_abs, tag = 'smem constant byte address 0x4 - core index']
  #allocation1 [shape = 'u32[72,128]{1,0:T(1,128)}', space=vmem, size = 0x9000, scoped, tag = 'internal scratch']
  #allocation2 [shape = 'f32[16,32]{1,0:T(8,128)}', space=vmem, size = 0x2000, scoped, tag = 'scratch operand']
  #allocation3 [shape = 'f32[8,16,1]{2,1,0:T(8,128)}', space=vmem, size = 0x10000, scoped, tag = 'scratch operand']
  #allocation4 [shape = 'f32[8,16,1]{2,1,0:T(8,128)}', space=vmem, size = 0x10000, scoped, tag = 'scratch operand']
  #allocation5 [shape = 'f32[8,16,4]{2,1,0:T(8,128)}', space=vmem, size = 0x10000, scoped, tag = 'scratch operand']
  #allocation6 [shape = 'f32[16,32]{1,0:T(8,128)}', space=vmem, size = 0x2000, scoped, tag = 'scratch operand']
  %s0 = inlined_call_operand.hbm [shape: f32[2,16,32], index: 0, kind: input, shape index: {}]
  %s1 = inlined_call_operand.hbm [shape: f32[2,16,32], index: 1, kind: input, shape index: {}]
  %s2 = inlined_call_operand.vmem [shape: f32[1,32], index: 2, kind: input, shape index: {}]
  %s3 = inlined_call_operand.vmem [shape: f32[1,32], index: 3, kind: input, shape index: {}]
  %s4 = inlined_call_operand.hbm [shape: f32[32,32], index: 4, kind: input, shape index: {}]
  %s5 = inlined_call_operand.vmem [shape: f32[1,32], index: 5, kind: input, shape index: {}]
  %s6 = inlined_call_operand.hbm [shape: f32[32,64], index: 6, kind: input, shape index: {}]
  %s7 = inlined_call_operand.vmem [shape: f32[1,64], index: 7, kind: input, shape index: {}]
  %s8 = inlined_call_operand.hbm [shape: f32[32,32], index: 8, kind: input, shape index: {}]
  %s9 = inlined_call_operand.vmem [shape: f32[1,32], index: 9, kind: input, shape index: {}]
  %s10 = inlined_call_operand.hbm [shape: f32[2,16,32], index: 10, kind: output, shape index: {}]
  %s11 = sld [smem:[#allocation0]]
  $region105: #{tpu_custom_call.1} parent=0
    _
  %s13 = ssub.s32 1, %s11
  %s14 = scalar_select 0, %s13, %s11
  $region1: #{tpu_custom_call.1} parent=0
    #allocation7 [shape = 'u8[16384]{0}', space=vmem, size = 0x4000, scoped, tag = 'input window, operand 0']
    #allocation8 [shape = 's32[2]{0}', space=sflag, size = 0x8, scoped, tag = 'scoped memory for tpu_custom_call.1']
    #allocation9 [shape = 's32[2]{0}', space=sflag, size = 0x8, scoped, tag = 'scoped memory for tpu_custom_call.1']
    #allocation10 [shape = 'u8[16384]{0}', space=vmem, size = 0x4000, scoped, tag = 'input window, operand 1']
    #allocation11 [shape = 's32[2]{0}', space=sflag, size = 0x8, scoped, tag = 'scoped memory for tpu_custom_call.1']
    #allocation12 [shape = 'u8[16384]{0}', space=vmem, size = 0x4000, scoped, tag = 'input window, operand 4, single buffered']
    #allocation13 [shape = 'u8[16384]{0}', space=vmem, size = 0x4000, scoped, tag = 'input window, operand 6, single buffered']
    #allocation14 [shape = 's32[1]{0}', space=sflag, size = 0x4, scoped, tag = 'scoped memory for tpu_custom_call.1']
    #allocation15 [shape = 'u8[16384]{0}', space=vmem, size = 0x4000, scoped, tag = 'input window, operand 8, single buffered']
    #allocation16 [shape = 'u8[16384]{0}', space=vmem, size = 0x4000, scoped, tag = 'output window, operand 0']
    %15 = vsyncpa [#allocation8], 0
    %s16 = scalar_lea.sflag [#allocation8], 1
    %17 = vsyncpa %s16, 0
    %18 = vsyncpa [#allocation11], 0
    %s19 = scalar_lea.sflag [#allocation11], 1
    %20 = vsyncpa %s19, 0
    %21 = vsyncpa [#allocation14], 0
    %22 = vsyncpa [#allocation9], 0
    %s23 = scalar_lea.sflag [#allocation9], 1
    %24 = vsyncpa %s23, 0
    loop: start=0, step=1, limit=4
    $region2: #{tpu_custom_call.1} parent=1 // loop_pre_header
      _
    $region3: #{tpu_custom_call.1} parent=1 // loop_header
      %s26 = sphi 0, %s30
      %p27 = scmp.ge.s32.totalorder %s26, 4
      %s33 = sphi 0, %s52
      %s34 = sphi 0, %s48
      %s35 = sphi 0, %s44
      %s36 = sphi 0, %s33
      %s37 = sphi 0, %s34
      %s38 = sphi 0, %s35
      %s39 = sphi 0, %s36
      %s40 = sphi 0, %s37
      %s41 = sphi 0, %s38
      %s57 = sphi 0, %s59
      %s60 = sphi 0, %s57
      %s61 = sphi 0, %s60
      %s77 = sphi 0, %s61
      %s85 = sphi 0, %s87
      %s88 = sphi 0, %s85
      %s89 = sphi 0, %s88
      %s105 = sphi 0, %s89
      %s109 = sphi 0, %s109
      %s111 = sphi 0, %s109
      %s112 = sphi 0, %s111
      %s126 = sphi 0, %s112
      %s130 = sphi 0, %s130
      %s132 = sphi 0, %s130
      %s133 = sphi 0, %s132
      %s147 = sphi 0, %s133
      %s151 = sphi 0, %s151
      %s153 = sphi 0, %s151
      %s154 = sphi 0, %s153
      %s168 = sphi 0, %s154
      %s172 = sphi 0, %s172
      %s174 = sphi 0, %s172
      %s175 = sphi 0, %s174
      %s189 = sphi 0, %s175
      %s193 = sphi 0, %s193
      %s195 = sphi 0, %s193
      %s196 = sphi 0, %s195
      %s210 = sphi 0, %s196
      %s214 = sphi 0, %s214
      %s216 = sphi 0, %s214
      %s217 = sphi 0, %s216
      %s231 = sphi 0, %s217
      %s235 = sphi 0, %s235
      %s237 = sphi 0, %s235
      %s238 = sphi 0, %s237
      %s252 = sphi 0, %s238
      %s256 = sphi 0, %s256
      %s258 = sphi 0, %s256
      %s259 = sphi 0, %s258
      %s273 = sphi 0, %s259
      %s281 = sphi 0, %s283
      %s284 = sphi 0, %s281
      %s285 = sphi 0, %s284
      %s301 = sphi 0, %s285
    $region4: #{tpu_custom_call.1} parent=1 // loop_header_branch
      %29 = sbr.rel (%p27) target = $region8
    $region5: #{tpu_custom_call.1} parent=1 // loop_body
      %s31 = ssub.s32 %s26, 1
      %s32 = ssub.s32 %s26, 2
      %s42 = sadd.s32 1, %s35
      %p43 = scmp.ge.s32.totalorder %s42, 1
      %s44 = scalar_select %p43, 0, %s42
      %s45 = sadd.s32 1, %s34
      %s46 = scalar_select %p43, %s45, %s34
      %p47 = scmp.ge.s32.totalorder %s46, 1
      %s48 = scalar_select %p47, 0, %s46
      %s49 = sadd.s32 1, %s33
      %s50 = scalar_select %p47, %s49, %s33
      %p51 = scmp.ge.s32.totalorder %s50, 2
      %s52 = scalar_select %p51, 0, %s50
      %s53 = ssub.s32 %s33, %s52
      %s54 = ssub.s32 %s34, %s48
      %s55 = sor.u32 %s53, %s54
      %p56 = scmp.eq.s32.totalorder %s55, 0
      %s58 = sadd.s32 %s57, 1
      %s59 = scalar_select %p56, %s57, %s58
      %p62 = pneg %p56
      %p63 = scmp.eq.s32.totalorder %s26, 1
      %p64 = por %p62, %p63
      %p65 = scmp.ne.s32.totalorder %s57, %s60
      %p66 = scmp.eq.s32.totalorder %s26, 0
      %p67 = por %p65, %p66
      %p68 = scmp.ne.s32.totalorder %s57, %s60
      %p69 = scmp.eq.s32.totalorder %s31, 1
      %p70 = por %p68, %p69
      %p71 = scmp.ne.s32.totalorder %s60, %s61
      %p72 = scmp.eq.s32.totalorder %s31, 0
      %p73 = por %p71, %p72
      %p74 = scmp.ne.s32.totalorder %s60, %s61
      %p75 = scmp.eq.s32.totalorder %s32, 1
      %p76 = por %p74, %p75
      %p78 = scmp.ne.s32.totalorder %s61, %s77
      %p79 = scmp.eq.s32.totalorder %s32, 0
      %p80 = por %p78, %p79
      %s81 = ssub.s32 %s33, %s52
      %s82 = ssub.s32 %s35, %s44
      %s83 = sor.u32 %s81, %s82
      %p84 = scmp.eq.s32.totalorder %s83, 0
      %s86 = sadd.s32 %s85, 1
      %s87 = scalar_select %p84, %s85, %s86
      %p90 = pneg %p84
      %p91 = scmp.eq.s32.totalorder %s26, 1
      %p92 = por %p90, %p91
      %p93 = scmp.ne.s32.totalorder %s85, %s88
      %p94 = scmp.eq.s32.totalorder %s26, 0
      %p95 = por %p93, %p94
      %p96 = scmp.ne.s32.totalorder %s85, %s88
      %p97 = scmp.eq.s32.totalorder %s31, 1
      %p98 = por %p96, %p97
      %p99 = scmp.ne.s32.totalorder %s88, %s89
      %p100 = scmp.eq.s32.totalorder %s31, 0
      %p101 = por %p99, %p100
      %p102 = scmp.ne.s32.totalorder %s88, %s89
      %p103 = scmp.eq.s32.totalorder %s32, 1
      %p104 = por %p102, %p103
      %p106 = scmp.ne.s32.totalorder %s89, %s105
      %p107 = scmp.eq.s32.totalorder %s32, 0
      %p108 = por %p106, %p107
      %s110 = sadd.s32 %s109, 1
      %p113 = scmp.eq.s32.totalorder %s26, 1
      %p114 = scmp.ne.s32.totalorder %s109, %s111
      %p115 = scmp.eq.s32.totalorder %s26, 0
      %p116 = por %p114, %p115
      %p117 = scmp.ne.s32.totalorder %s109, %s111
      %p118 = scmp.eq.s32.totalorder %s31, 1
      %p119 = por %p117, %p118
      %p120 = scmp.ne.s32.totalorder %s111, %s112
      %p121 = scmp.eq.s32.totalorder %s31, 0
      %p122 = por %p120, %p121
      %p123 = scmp.ne.s32.totalorder %s111, %s112
      %p124 = scmp.eq.s32.totalorder %s32, 1
      %p125 = por %p123, %p124
      %p127 = scmp.ne.s32.totalorder %s112, %s126
      %p128 = scmp.eq.s32.totalorder %s32, 0
      %p129 = por %p127, %p128
      %s131 = sadd.s32 %s130, 1
      %p134 = scmp.eq.s32.totalorder %s26, 1
      %p135 = scmp.ne.s32.totalorder %s130, %s132
      %p136 = scmp.eq.s32.totalorder %s26, 0
      %p137 = por %p135, %p136
      %p138 = scmp.ne.s32.totalorder %s130, %s132
      %p139 = scmp.eq.s32.totalorder %s31, 1
      %p140 = por %p138, %p139
      %p141 = scmp.ne.s32.totalorder %s132, %s133
      %p142 = scmp.eq.s32.totalorder %s31, 0
      %p143 = por %p141, %p142
      %p144 = scmp.ne.s32.totalorder %s132, %s133
      %p145 = scmp.eq.s32.totalorder %s32, 1
      %p146 = por %p144, %p145
      %p148 = scmp.ne.s32.totalorder %s133, %s147
      %p149 = scmp.eq.s32.totalorder %s32, 0
      %p150 = por %p148, %p149
      %s152 = sadd.s32 %s151, 1
      %p155 = scmp.eq.s32.totalorder %s26, 1
      %p156 = scmp.ne.s32.totalorder %s151, %s153
      %p157 = scmp.eq.s32.totalorder %s26, 0
      %p158 = por %p156, %p157
      %p159 = scmp.ne.s32.totalorder %s151, %s153
      %p160 = scmp.eq.s32.totalorder %s31, 1
      %p161 = por %p159, %p160
      %p162 = scmp.ne.s32.totalorder %s153, %s154
      %p163 = scmp.eq.s32.totalorder %s31, 0
      %p164 = por %p162, %p163
      %p165 = scmp.ne.s32.totalorder %s153, %s154
      %p166 = scmp.eq.s32.totalorder %s32, 1
      %p167 = por %p165, %p166
      %p169 = scmp.ne.s32.totalorder %s154, %s168
      %p170 = scmp.eq.s32.totalorder %s32, 0
      %p171 = por %p169, %p170
      %s173 = sadd.s32 %s172, 1
      %p176 = scmp.eq.s32.totalorder %s26, 1
      %p177 = scmp.ne.s32.totalorder %s172, %s174
      %p178 = scmp.eq.s32.totalorder %s26, 0
      %p179 = por %p177, %p178
      %p180 = scmp.ne.s32.totalorder %s172, %s174
      %p181 = scmp.eq.s32.totalorder %s31, 1
      %p182 = por %p180, %p181
      %p183 = scmp.ne.s32.totalorder %s174, %s175
      %p184 = scmp.eq.s32.totalorder %s31, 0
      %p185 = por %p183, %p184
      %p186 = scmp.ne.s32.totalorder %s174, %s175
      %p187 = scmp.eq.s32.totalorder %s32, 1
      %p188 = por %p186, %p187
      %p190 = scmp.ne.s32.totalorder %s175, %s189
      %p191 = scmp.eq.s32.totalorder %s32, 0
      %p192 = por %p190, %p191
      %s194 = sadd.s32 %s193, 1
      %p197 = scmp.eq.s32.totalorder %s26, 1
      %p198 = scmp.ne.s32.totalorder %s193, %s195
      %p199 = scmp.eq.s32.totalorder %s26, 0
      %p200 = por %p198, %p199
      %p201 = scmp.ne.s32.totalorder %s193, %s195
      %p202 = scmp.eq.s32.totalorder %s31, 1
      %p203 = por %p201, %p202
      %p204 = scmp.ne.s32.totalorder %s195, %s196
      %p205 = scmp.eq.s32.totalorder %s31, 0
      %p206 = por %p204, %p205
      %p207 = scmp.ne.s32.totalorder %s195, %s196
      %p208 = scmp.eq.s32.totalorder %s32, 1
      %p209 = por %p207, %p208
      %p211 = scmp.ne.s32.totalorder %s196, %s210
      %p212 = scmp.eq.s32.totalorder %s32, 0
      %p213 = por %p211, %p212
      %s215 = sadd.s32 %s214, 1
      %p218 = scmp.eq.s32.totalorder %s26, 1
      %p219 = scmp.ne.s32.totalorder %s214, %s216
      %p220 = scmp.eq.s32.totalorder %s26, 0
      %p221 = por %p219, %p220
      %p222 = scmp.ne.s32.totalorder %s214, %s216
      %p223 = scmp.eq.s32.totalorder %s31, 1
      %p224 = por %p222, %p223
      %p225 = scmp.ne.s32.totalorder %s216, %s217
      %p226 = scmp.eq.s32.totalorder %s31, 0
      %p227 = por %p225, %p226
      %p228 = scmp.ne.s32.totalorder %s216, %s217
      %p229 = scmp.eq.s32.totalorder %s32, 1
      %p230 = por %p228, %p229
      %p232 = scmp.ne.s32.totalorder %s217, %s231
      %p233 = scmp.eq.s32.totalorder %s32, 0
      %p234 = por %p232, %p233
      %s236 = sadd.s32 %s235, 1
      %p239 = scmp.eq.s32.totalorder %s26, 1
      %p240 = scmp.ne.s32.totalorder %s235, %s237
      %p241 = scmp.eq.s32.totalorder %s26, 0
      %p242 = por %p240, %p241
      %p243 = scmp.ne.s32.totalorder %s235, %s237
      %p244 = scmp.eq.s32.totalorder %s31, 1
      %p245 = por %p243, %p244
      %p246 = scmp.ne.s32.totalorder %s237, %s238
      %p247 = scmp.eq.s32.totalorder %s31, 0
      %p248 = por %p246, %p247
      %p249 = scmp.ne.s32.totalorder %s237, %s238
      %p250 = scmp.eq.s32.totalorder %s32, 1
      %p251 = por %p249, %p250
      %p253 = scmp.ne.s32.totalorder %s238, %s252
      %p254 = scmp.eq.s32.totalorder %s32, 0
      %p255 = por %p253, %p254
      %s257 = sadd.s32 %s256, 1
      %p260 = scmp.eq.s32.totalorder %s26, 1
      %p261 = scmp.ne.s32.totalorder %s256, %s258
      %p262 = scmp.eq.s32.totalorder %s26, 0
      %p263 = por %p261, %p262
      %p264 = scmp.ne.s32.totalorder %s256, %s258
      %p265 = scmp.eq.s32.totalorder %s31, 1
      %p266 = por %p264, %p265
      %p267 = scmp.ne.s32.totalorder %s258, %s259
      %p268 = scmp.eq.s32.totalorder %s31, 0
      %p269 = por %p267, %p268
      %p270 = scmp.ne.s32.totalorder %s258, %s259
      %p271 = scmp.eq.s32.totalorder %s32, 1
      %p272 = por %p270, %p271
      %p274 = scmp.ne.s32.totalorder %s259, %s273
      %p275 = scmp.eq.s32.totalorder %s32, 0
      %p276 = por %p274, %p275
      %s277 = ssub.s32 %s33, %s52
      %s278 = ssub.s32 %s34, %s48
      %s279 = sor.u32 %s277, %s278
      %p280 = scmp.eq.s32.totalorder %s279, 0
      %s282 = sadd.s32 %s281, 1
      %s283 = scalar_select %p280, %s281, %s282
      %p286 = pneg %p280
      %p287 = scmp.eq.s32.totalorder %s26, 1
      %p288 = por %p286, %p287
      %p289 = scmp.ne.s32.totalorder %s281, %s284
      %p290 = scmp.eq.s32.totalorder %s26, 0
      %p291 = por %p289, %p290
      %p292 = scmp.ne.s32.totalorder %s281, %s284
      %p293 = scmp.eq.s32.totalorder %s31, 1
      %p294 = por %p292, %p293
      %p295 = scmp.ne.s32.totalorder %s284, %s285
      %p296 = scmp.eq.s32.totalorder %s31, 0
      %p297 = por %p295, %p296
      %p298 = scmp.ne.s32.totalorder %s284, %s285
      %p299 = scmp.eq.s32.totalorder %s32, 1
      %p300 = por %p298, %p299
      %p302 = scmp.ne.s32.totalorder %s285, %s301
      %p303 = scmp.eq.s32.totalorder %s32, 0
      %p304 = por %p302, %p303
      %p305 = scmp.le.s32.totalorder 1, %s26
      %p306 = scmp.lt.s32.totalorder %s26, 3
      %p307 = pnand %p305, %p306
      %p308 = pneg %p307
      // Predicated region
      $region9: #{tpu_custom_call.1} parent=5 // pred_check
        _
      $region10: #{tpu_custom_call.1} parent=5 // pred_check_branch
        %310 = sbr.rel (%p307) target = $region12
      $region11: #{tpu_custom_call.1} parent=5 // pred_region
        %s311 = ssub.s32 %s26, 1
        // Predicated region
        $region13: #{tpu_custom_call.1} parent=11 // pred_check
          %p312 = pneg %p122
        $region14: #{tpu_custom_call.1} parent=11 // pred_check_branch
          %314 = sbr.rel (%p312) target = $region16
        $region15: #{tpu_custom_call.1} parent=11 // pred_region
          _
        $region16: #{tpu_custom_call.1} parent=11 // pred_fallthru
          _
        // Predicated region
        $region17: #{tpu_custom_call.1} parent=11 // pred_check
          %p315 = pneg %p143
        $region18: #{tpu_custom_call.1} parent=11 // pred_check_branch
          %317 = sbr.rel (%p315) target = $region20
        $region19: #{tpu_custom_call.1} parent=11 // pred_region
          _
        $region20: #{tpu_custom_call.1} parent=11 // pred_fallthru
          _
        // Predicated region
        $region21: #{tpu_custom_call.1} parent=11 // pred_check
          %p318 = pneg %p164
        $region22: #{tpu_custom_call.1} parent=11 // pred_check_branch
          %320 = sbr.rel (%p318) target = $region24
        $region23: #{tpu_custom_call.1} parent=11 // pred_region
          %322 = vsyncadd [#allocation11], 0
          %s323 = sshll.u32 %s4, 4
          %s324 = int_to_ptr.hbm [resolvable:$true] %s323
          %s325 = sshll.u32 [#allocation12], 4
          %s326 = int_to_ptr.vmem [resolvable:$true] %s325
          %331 = dma.hbm_to_vmem [thread:$0]  %s324, 512, %s326, [#allocation11], 128, 128, 8
        $region24: #{tpu_custom_call.1} parent=11 // pred_fallthru
          _
        // Predicated region
        $region25: #{tpu_custom_call.1} parent=11 // pred_check
          %p332 = pneg %p185
        $region26: #{tpu_custom_call.1} parent=11 // pred_check_branch
          %334 = sbr.rel (%p332) target = $region28
        $region27: #{tpu_custom_call.1} parent=11 // pred_region
          _
        $region28: #{tpu_custom_call.1} parent=11 // pred_fallthru
          _
        // Predicated region
        $region29: #{tpu_custom_call.1} parent=11 // pred_check
          %p335 = pneg %p206
        $region30: #{tpu_custom_call.1} parent=11 // pred_check_branch
          %337 = sbr.rel (%p335) target = $region32
        $region31: #{tpu_custom_call.1} parent=11 // pred_region
          %339 = vsyncadd [#allocation14], 0
          %s340 = sshll.u32 %s6, 4
          %s341 = int_to_ptr.hbm [resolvable:$true] %s340
          %s342 = sshll.u32 [#allocation13], 4
          %s343 = int_to_ptr.vmem [resolvable:$true] %s342
          %348 = dma.hbm_to_vmem [thread:$0]  %s341, 512, %s343, [#allocation14], 128, 128, 8
        $region32: #{tpu_custom_call.1} parent=11 // pred_fallthru
          _
        // Predicated region
        $region33: #{tpu_custom_call.1} parent=11 // pred_check
          %p349 = pneg %p227
        $region34: #{tpu_custom_call.1} parent=11 // pred_check_branch
          %351 = sbr.rel (%p349) target = $region36
        $region35: #{tpu_custom_call.1} parent=11 // pred_region
          _
        $region36: #{tpu_custom_call.1} parent=11 // pred_fallthru
          _
        // Predicated region
        $region37: #{tpu_custom_call.1} parent=11 // pred_check
          %p352 = pneg %p248
        $region38: #{tpu_custom_call.1} parent=11 // pred_check_branch
          %354 = sbr.rel (%p352) target = $region40
        $region39: #{tpu_custom_call.1} parent=11 // pred_region
          %356 = vsyncadd [#allocation14], 0
          %s357 = sshll.u32 %s8, 4
          %s358 = int_to_ptr.hbm [resolvable:$true] %s357
          %s359 = sshll.u32 [#allocation15], 4
          %s360 = int_to_ptr.vmem [resolvable:$true] %s359
          %365 = dma.hbm_to_vmem [thread:$0]  %s358, 512, %s360, [#allocation14], 128, 128, 8
        $region40: #{tpu_custom_call.1} parent=11 // pred_fallthru
          _
        // Predicated region
        $region41: #{tpu_custom_call.1} parent=11 // pred_check
          %p366 = pneg %p269
        $region42: #{tpu_custom_call.1} parent=11 // pred_check_branch
          %368 = sbr.rel (%p366) target = $region44
        $region43: #{tpu_custom_call.1} parent=11 // pred_region
          _
        $region44: #{tpu_custom_call.1} parent=11 // pred_fallthru
          _
      $region12: #{tpu_custom_call.1} parent=5 // pred_fallthru
        _
      %p369 = scmp.lt.s32.totalorder %s26, 2
      // Predicated region
      $region45: #{tpu_custom_call.1} parent=5 // pred_check
        %p370 = pneg %p369
      $region46: #{tpu_custom_call.1} parent=5 // pred_check_branch
        %372 = sbr.rel (%p370) target = $region48
      $region47: #{tpu_custom_call.1} parent=5 // pred_region
        // Predicated region
        $region49: #{tpu_custom_call.1} parent=47 // pred_check
          %p373 = pneg %p67
        $region50: #{tpu_custom_call.1} parent=47 // pred_check_branch
          %375 = sbr.rel (%p373) target = $region52
        $region51: #{tpu_custom_call.1} parent=47 // pred_region
          %s376 = sand.u32 %s57, 1
          %s377 = scalar_lea.sflag [#allocation8], %s376
          %s378 = sand.u32 %s57, 1
          %s379 = smul.addr %s378, 16
          %s380 = scalar_lea.vmem [#allocation7], %s379
          %s381 = smul.u32 2, %s34
          %383 = vsyncadd %s377, 0
          %s384 = smul.addr %s33, 2
          %s385 = sadd.s32 %s381, %s384
          %s386 = smul.addr %s385, 8
          %s387 = scalar_lea.hbm %s0, %s386
          %s388 = sshll.u32 %s387, 4
          %s389 = int_to_ptr.hbm [resolvable:$true] %s388
          %s390 = sshll.u32 %s380, 4
          %s391 = int_to_ptr.vmem [resolvable:$true] %s390
          %396 = dma.hbm_to_vmem [thread:$0]  %s389, 256, %s391, %s377, 128, 128, 8
        $region52: #{tpu_custom_call.1} parent=47 // pred_fallthru
          _
        // Predicated region
        $region53: #{tpu_custom_call.1} parent=47 // pred_check
          %p397 = pneg %p95
        $region54: #{tpu_custom_call.1} parent=47 // pred_check_branch
          %399 = sbr.rel (%p397) target = $region56
        $region55: #{tpu_custom_call.1} parent=47 // pred_region
          %s400 = sand.u32 %s26, 1
          %s401 = scalar_lea.sflag [#allocation11], %s400
          %s402 = sand.u32 %s85, 1
          %s403 = smul.addr %s402, 16
          %s404 = scalar_lea.vmem [#allocation10], %s403
          %s405 = smul.u32 2, %s35
          %407 = vsyncadd %s401, 0
          %s408 = smul.addr %s33, 2
          %s409 = sadd.s32 %s405, %s408
          %s410 = smul.addr %s409, 8
          %s411 = scalar_lea.hbm %s1, %s410
          %s412 = sshll.u32 %s411, 4
          %s413 = int_to_ptr.hbm [resolvable:$true] %s412
          %s414 = sshll.u32 %s404, 4
          %s415 = int_to_ptr.vmem [resolvable:$true] %s414
          %420 = dma.hbm_to_vmem [thread:$0]  %s413, 256, %s415, %s401, 128, 128, 8
        $region56: #{tpu_custom_call.1} parent=47 // pred_fallthru
          _
      $region48: #{tpu_custom_call.1} parent=5 // pred_fallthru
        _
      %p421 = scmp.le.s32.totalorder 1, %s26
      %p422 = scmp.lt.s32.totalorder %s26, 3
      %p423 = pnand %p421, %p422
      %p424 = pneg %p423
      // Predicated region
      $region57: #{tpu_custom_call.1} parent=5 // pred_check
        _
      $region58: #{tpu_custom_call.1} parent=5 // pred_check_branch
        %426 = sbr.rel (%p423) target = $region60
      $region59: #{tpu_custom_call.1} parent=5 // pred_region
        %s427 = ssub.s32 %s26, 1
        %s428 = sand.u32 %s60, 1
        %s429 = scalar_lea.sflag [#allocation8], %s428
        %s430 = sand.u32 %s60, 1
        %s431 = smul.addr %s430, 16
        %s432 = scalar_lea.vmem [#allocation7], %s431
        // Predicated region
        $region61: #{tpu_custom_call.1} parent=59 // pred_check
          %p433 = pneg %p73
        $region62: #{tpu_custom_call.1} parent=59 // pred_check_branch
          %435 = sbr.rel (%p433) target = $region64
        $region63: #{tpu_custom_call.1} parent=59 // pred_region
          %437 = dma.done %s429, 256
        $region64: #{tpu_custom_call.1} parent=59 // pred_fallthru
          _
        %s438 = sand.u32 %s31, 1
        %s439 = scalar_lea.sflag [#allocation11], %s438
        %s440 = sand.u32 %s88, 1
        %s441 = smul.addr %s440, 16
        %s442 = scalar_lea.vmem [#allocation10], %s441
        // Predicated region
        $region65: #{tpu_custom_call.1} parent=59 // pred_check
          %p443 = pneg %p101
        $region66: #{tpu_custom_call.1} parent=59 // pred_check_branch
          %445 = sbr.rel (%p443) target = $region68
        $region67: #{tpu_custom_call.1} parent=59 // pred_region
          %447 = dma.done %s439, 256
        $region68: #{tpu_custom_call.1} parent=59 // pred_fallthru
          _
        // Predicated region
        $region69: #{tpu_custom_call.1} parent=59 // pred_check
          %p448 = pneg %p164
        $region70: #{tpu_custom_call.1} parent=59 // pred_check_branch
          %450 = sbr.rel (%p448) target = $region72
        $region71: #{tpu_custom_call.1} parent=59 // pred_region
          %452 = dma.done [#allocation11], 512
        $region72: #{tpu_custom_call.1} parent=59 // pred_fallthru
          _
        // Predicated region
        $region73: #{tpu_custom_call.1} parent=59 // pred_check
          %p453 = pneg %p206
        $region74: #{tpu_custom_call.1} parent=59 // pred_check_branch
          %455 = sbr.rel (%p453) target = $region76
        $region75: #{tpu_custom_call.1} parent=59 // pred_region
          %457 = dma.done [#allocation14], 512
        $region76: #{tpu_custom_call.1} parent=59 // pred_fallthru
          _
        // Predicated region
        $region77: #{tpu_custom_call.1} parent=59 // pred_check
          %p458 = pneg %p248
        $region78: #{tpu_custom_call.1} parent=59 // pred_check_branch
          %460 = sbr.rel (%p458) target = $region80
        $region79: #{tpu_custom_call.1} parent=59 // pred_region
          %462 = dma.done [#allocation14], 512
        $region80: #{tpu_custom_call.1} parent=59 // pred_fallthru
          _
        %s463 = sand.u32 %s60, 1
        %s464 = scalar_lea.sflag [#allocation8], %s463
        %s465 = sand.u32 %s60, 1
        %s466 = smul.addr %s465, 16
        %s467 = scalar_lea.vmem [#allocation7], %s466
        %p468 = pneg %p73
        %p469 = pneg %p70
        %s470 = sand.u32 %s31, 1
        %s471 = scalar_lea.sflag [#allocation11], %s470
        %s472 = sand.u32 %s88, 1
        %s473 = smul.addr %s472, 16
        %s474 = scalar_lea.vmem [#allocation10], %s473
        %p475 = pneg %p101
        %p476 = pneg %p98
        %p477 = pneg %p122
        %p478 = pneg %p119
        %p479 = pneg %p143
        %p480 = pneg %p140
        %p481 = pneg %p164
        %p482 = pneg %p161
        %p483 = pneg %p185
        %p484 = pneg %p182
        %p485 = pneg %p206
        %p486 = pneg %p203
        %p487 = pneg %p227
        %p488 = pneg %p224
        %p489 = pneg %p248
        %p490 = pneg %p245
        %p491 = pneg %p269
        %p492 = pneg %p266
        %p493 = pneg %p297
        %p494 = pneg %p294
        %s495 = sand.u32 %s284, 1
        %s496 = scalar_lea.sflag [#allocation9], %s495
        %s497 = sand.u32 %s284, 1
        %s498 = smul.addr %s497, 16
        %s499 = scalar_lea.vmem [#allocation16], %s498
        %s500 = smul.u32 2, %s37
        %s501 = smul.u32 2, %s38
        %s502 = smul.u32 2, %s37
        %p503 = scmp.eq.s32.totalorder %s38, 0
        // Predicated region
        $region81: #{tpu_custom_call.1} parent=59 // pred_check
          %p504 = pneg %p503
        $region82: #{tpu_custom_call.1} parent=59 // pred_check_branch
          %506 = sbr.rel (%p504) target = $region84
        $region83: #{tpu_custom_call.1} parent=59 // pred_region
          %v507 = vld [vmem:[%s432] sm:$0xff]
          %v508 = vld [vmem:[%s432 + $0x8] sm:$0xff]
          %vm509 = vcmask 261120
          %v510 = vsel %vm509, %v507, 0.0
          %511 = vadd.xlane.f32.xlu0 %v510
          %v512 = vpop.xlane.xlu0 %511
          %v513 = vsel %vm509, %v508, 0.0
          %514 = vadd.xlane.f32.xlu0 %v513
          %v515 = vpop.xlane.xlu0 %514
          %v516 = vrcp.pop 32.0
          %v517 = vmul.f32 32.0, %v516
          %v518 = vsub.f32 1.0, %v517
          %v519 = vmul.f32 %v516, %v518
          %v520 = vadd.f32 %v516, %v519
          %vm521 = vweird.f32 %v516
          %v522 = vsel %vm521, %v516, %v520
          %v523 = vmul.f32 %v512, %v522
          %v524 = vmul.f32 %v515, %v522
          %v525 = vsub.f32 %v507, %v523
          %v526 = vsub.f32 %v508, %v524
          %v527 = vmul.f32 %v525, %v525
          %v528 = vmul.f32 %v526, %v526
          %v529 = vsel %vm509, %v527, 0.0
          %530 = vadd.xlane.f32.xlu0 %v529
          %v531 = vpop.xlane.xlu0 %530
          %v532 = vsel %vm509, %v528, 0.0
          %533 = vadd.xlane.f32.xlu0 %v532
          %v534 = vpop.xlane.xlu0 %533
          %v535 = vmul.f32 %v531, %v522
          %v536 = vmul.f32 %v534, %v522
          %v537 = vadd.f32 %v535, 1e-05
          %v538 = vadd.f32 %v536, 1e-05
          %v539 = vrsqrt.pop %v537
          %v540 = vmul.f32 %v539, %v537
          %v541 = vmul.f32 %v540, %v539
          %v542 = vmul.f32 0.5, %v541
          %v543 = vsub.f32 1.5, %v542
          %v544 = vmul.f32 %v539, %v543
          %vm545 = vweird.f32 %v537
          %vm546 = vweird.f32 %v539
          %vm547 = vmor %vm545, %vm546
          %v548 = vsel %vm547, %v539, %v544
          %v549 = vrsqrt.pop %v538
          %v550 = vmul.f32 %v549, %v538
          %v551 = vmul.f32 %v550, %v549
          %v552 = vmul.f32 0.5, %v551
          %v553 = vsub.f32 1.5, %v552
          %v554 = vmul.f32 %v549, %v553
          %vm555 = vweird.f32 %v538
          %vm556 = vweird.f32 %v549
          %vm557 = vmor %vm555, %vm556
          %v558 = vsel %vm557, %v549, %v554
          %v559 = vmul.f32 %v525, %v548
          %v560 = vmul.f32 %v526, %v558
          %v561 = vld [vmem:[%s2] sm:$0x1]
          %v563 = vperm.slane %v561, 0
          %v565 = vmul.f32 %v559, %v563
          %v566 = vmul.f32 %v560, %v563
          %v567 = vld [vmem:[%s3] sm:$0x1]
          %v569 = vperm.slane %v567, 0
          %v571 = vadd.f32 %v565, %v569
          %v572 = vadd.f32 %v566, %v569
          %v573 = vld [vmem:[#allocation12] sm:$0xff]
          %v574 = vld [vmem:[#allocation12 + $0x8] sm:$0xff]
          %v575 = vld [vmem:[#allocation12 + $0x10] sm:$0xff]
          %v576 = vld [vmem:[#allocation12 + $0x18] sm:$0xff]
          %v577 = vld [vmem:[%s5] sm:$0x1]
          %v579 = vperm.slane %v577, 0
          %v582 = vsel %vm509, %v571, 0
          %v585 = vsel %vm509, %v572, 0
          %587 = vmatpush.msra.mxu0 0.0
          %588 = vmatpush.msra.mxu0 0.0
          %589 = vmatpush.msra.mxu0 0.0
          %590 = vmatpush.msra.mxu0 0.0
          %591 = vmatpush.msra.mxu0 0.0
          %592 = vmatpush.msra.mxu0 0.0
          %593 = vmatpush.msra.mxu0 0.0
          %594 = vmatpush.msra.mxu0 0.0
          %595 = vmatpush.msra.mxu0 0.0
          %596 = vmatpush.msra.mxu0 0.0
          %597 = vmatpush.msra.mxu0 0.0
          %598 = vmatpush.msra.mxu0 0.0
          %599 = vmatpush.msra.mxu0 %v576
          %600 = vmatpush.msra.mxu0 %v575
          %601 = vmatpush.msra.mxu0 %v574
          %602 = vmatpush.msra.mxu0 %v573
          %603 = vmatmul.f32.gmra.mxu0 %v582
          %v604 = vpop.f32.mrf.mxu0
          %v605 = vadd.f32 %v579, %v604
          %606 = vmatmul.f32.gmra.mxu0 %v585
          %v607 = vpop.f32.mrf.mxu0
          %v608 = vadd.f32 %v579, %v607
          %609 = vdwg.mxu0
          %v610 = vmul.f32 %v605, 0.5
          %v611 = vmul.f32 %v608, 0.5
          %612 = vst.msk [vmem:[#allocation2] sm:$0xff] %vm509, %v610
          %613 = vst.msk [vmem:[#allocation2 + $0x8] sm:$0xff] %vm509, %v611
          %vm614 = vcmask 7168
          %615 = vst.msk [vmem:[#allocation3] sm:$0xff] %vm614, -inf
          %616 = vst.msk [vmem:[#allocation3 + $0x8] sm:$0xff] %vm614, -inf
          %617 = vst.msk [vmem:[#allocation3 + $0x10] sm:$0xff] %vm614, -inf
          %618 = vst.msk [vmem:[#allocation3 + $0x18] sm:$0xff] %vm614, -inf
          %619 = vst.msk [vmem:[#allocation3 + $0x20] sm:$0xff] %vm614, -inf
          %620 = vst.msk [vmem:[#allocation3 + $0x28] sm:$0xff] %vm614, -inf
          %621 = vst.msk [vmem:[#allocation3 + $0x30] sm:$0xff] %vm614, -inf
          %622 = vst.msk [vmem:[#allocation3 + $0x38] sm:$0xff] %vm614, -inf
          %623 = vst.msk [vmem:[#allocation3 + $0x40] sm:$0xff] %vm614, -inf
          %624 = vst.msk [vmem:[#allocation3 + $0x48] sm:$0xff] %vm614, -inf
          %625 = vst.msk [vmem:[#allocation3 + $0x50] sm:$0xff] %vm614, -inf
          %626 = vst.msk [vmem:[#allocation3 + $0x58] sm:$0xff] %vm614, -inf
          %627 = vst.msk [vmem:[#allocation3 + $0x60] sm:$0xff] %vm614, -inf
          %628 = vst.msk [vmem:[#allocation3 + $0x68] sm:$0xff] %vm614, -inf
          %629 = vst.msk [vmem:[#allocation3 + $0x70] sm:$0xff] %vm614, -inf
          %630 = vst.msk [vmem:[#allocation3 + $0x78] sm:$0xff] %vm614, -inf
          %631 = vst.msk [vmem:[#allocation4] sm:$0xff] %vm614, 0.0
          %632 = vst.msk [vmem:[#allocation4 + $0x8] sm:$0xff] %vm614, 0.0
          %633 = vst.msk [vmem:[#allocation4 + $0x10] sm:$0xff] %vm614, 0.0
          %634 = vst.msk [vmem:[#allocation4 + $0x18] sm:$0xff] %vm614, 0.0
          %635 = vst.msk [vmem:[#allocation4 + $0x20] sm:$0xff] %vm614, 0.0
          %636 = vst.msk [vmem:[#allocation4 + $0x28] sm:$0xff] %vm614, 0.0
          %637 = vst.msk [vmem:[#allocation4 + $0x30] sm:$0xff] %vm614, 0.0
          %638 = vst.msk [vmem:[#allocation4 + $0x38] sm:$0xff] %vm614, 0.0
          %639 = vst.msk [vmem:[#allocation4 + $0x40] sm:$0xff] %vm614, 0.0
          %640 = vst.msk [vmem:[#allocation4 + $0x48] sm:$0xff] %vm614, 0.0
          %641 = vst.msk [vmem:[#allocation4 + $0x50] sm:$0xff] %vm614, 0.0
          %642 = vst.msk [vmem:[#allocation4 + $0x58] sm:$0xff] %vm614, 0.0
          %643 = vst.msk [vmem:[#allocation4 + $0x60] sm:$0xff] %vm614, 0.0
          %644 = vst.msk [vmem:[#allocation4 + $0x68] sm:$0xff] %vm614, 0.0
          %645 = vst.msk [vmem:[#allocation4 + $0x70] sm:$0xff] %vm614, 0.0
          %646 = vst.msk [vmem:[#allocation4 + $0x78] sm:$0xff] %vm614, 0.0
          %vm647 = vcmask 31744
          %648 = vst.msk [vmem:[#allocation5] sm:$0xff] %vm647, 0.0
          %649 = vst.msk [vmem:[#allocation5 + $0x8] sm:$0xff] %vm647, 0.0
          %650 = vst.msk [vmem:[#allocation5 + $0x10] sm:$0xff] %vm647, 0.0
          %651 = vst.msk [vmem:[#allocation5 + $0x18] sm:$0xff] %vm647, 0.0
          %652 = vst.msk [vmem:[#allocation5 + $0x20] sm:$0xff] %vm647, 0.0
          %653 = vst.msk [vmem:[#allocation5 + $0x28] sm:$0xff] %vm647, 0.0
          %654 = vst.msk [vmem:[#allocation5 + $0x30] sm:$0xff] %vm647, 0.0
          %655 = vst.msk [vmem:[#allocation5 + $0x38] sm:$0xff] %vm647, 0.0
          %656 = vst.msk [vmem:[#allocation5 + $0x40] sm:$0xff] %vm647, 0.0
          %657 = vst.msk [vmem:[#allocation5 + $0x48] sm:$0xff] %vm647, 0.0
          %658 = vst.msk [vmem:[#allocation5 + $0x50] sm:$0xff] %vm647, 0.0
          %659 = vst.msk [vmem:[#allocation5 + $0x58] sm:$0xff] %vm647, 0.0
          %660 = vst.msk [vmem:[#allocation5 + $0x60] sm:$0xff] %vm647, 0.0
          %661 = vst.msk [vmem:[#allocation5 + $0x68] sm:$0xff] %vm647, 0.0
          %662 = vst.msk [vmem:[#allocation5 + $0x70] sm:$0xff] %vm647, 0.0
          %663 = vst.msk [vmem:[#allocation5 + $0x78] sm:$0xff] %vm647, 0.0
        $region84: #{tpu_custom_call.1} parent=59 // pred_fallthru
          _
        %s664 = smul.u32 %s38, 16
        %s665 = smul.u32 %s37, 16
        %s666 = sadd.s32 %s665, 15
        %p667 = scmp.le.s32.totalorder %s664, %s666
        // Predicated region
        $region85: #{tpu_custom_call.1} parent=59 // pred_check
          %p668 = pneg %p667
        $region86: #{tpu_custom_call.1} parent=59 // pred_check_branch
          %670 = sbr.rel (%p668) target = $region88
        $region87: #{tpu_custom_call.1} parent=59 // pred_region
          %v671 = vld [vmem:[%s442] sm:$0xff]
          %v672 = vld [vmem:[%s442 + $0x8] sm:$0xff]
          %vm673 = vcmask 261120
          %v674 = vsel %vm673, %v671, 0.0
          %675 = vadd.xlane.f32.xlu0 %v674
          %v676 = vpop.xlane.xlu0 %675
          %v677 = vsel %vm673, %v672, 0.0
          %678 = vadd.xlane.f32.xlu0 %v677
          %v679 = vpop.xlane.xlu0 %678
          %v680 = vrcp.pop 32.0
          %v681 = vmul.f32 32.0, %v680
          %v682 = vsub.f32 1.0, %v681
          %v683 = vmul.f32 %v680, %v682
          %v684 = vadd.f32 %v680, %v683
          %vm685 = vweird.f32 %v680
          %v686 = vsel %vm685, %v680, %v684
          %v687 = vmul.f32 %v676, %v686
          %v688 = vmul.f32 %v679, %v686
          %v689 = vsub.f32 %v671, %v687
          %v690 = vsub.f32 %v672, %v688
          %v691 = vmul.f32 %v689, %v689
          %v692 = vmul.f32 %v690, %v690
          %v693 = vsel %vm673, %v691, 0.0
          %694 = vadd.xlane.f32.xlu0 %v693
          %v695 = vpop.xlane.xlu0 %694
          %v696 = vsel %vm673, %v692, 0.0
          %697 = vadd.xlane.f32.xlu0 %v696
          %v698 = vpop.xlane.xlu0 %697
          %v699 = vmul.f32 %v695, %v686
          %v700 = vmul.f32 %v698, %v686
          %v701 = vadd.f32 %v699, 1e-05
          %v702 = vadd.f32 %v700, 1e-05
          %v703 = vrsqrt.pop %v701
          %v704 = vmul.f32 %v703, %v701
          %v705 = vmul.f32 %v704, %v703
          %v706 = vmul.f32 0.5, %v705
          %v707 = vsub.f32 1.5, %v706
          %v708 = vmul.f32 %v703, %v707
          %vm709 = vweird.f32 %v701
          %vm710 = vweird.f32 %v703
          %vm711 = vmor %vm709, %vm710
          %v712 = vsel %vm711, %v703, %v708
          %v713 = vrsqrt.pop %v702
          %v714 = vmul.f32 %v713, %v702
          %v715 = vmul.f32 %v714, %v713
          %v716 = vmul.f32 0.5, %v715
          %v717 = vsub.f32 1.5, %v716
          %v718 = vmul.f32 %v713, %v717
          %vm719 = vweird.f32 %v702
          %vm720 = vweird.f32 %v713
          %vm721 = vmor %vm719, %vm720
          %v722 = vsel %vm721, %v713, %v718
          %v723 = vmul.f32 %v689, %v712
          %v724 = vmul.f32 %v690, %v722
          %v725 = vld [vmem:[%s2] sm:$0x1]
          %v727 = vperm.slane %v725, 0
          %v729 = vmul.f32 %v723, %v727
          %v730 = vmul.f32 %v724, %v727
          %v731 = vld [vmem:[%s3] sm:$0x1]
          %v733 = vperm.slane %v731, 0
          %v735 = vadd.f32 %v729, %v733
          %v736 = vadd.f32 %v730, %v733
          %v737 = vld [vmem:[#allocation13] sm:$0xff]
          %v738 = vld [vmem:[#allocation13 + $0x8] sm:$0xff]
          %v739 = vld [vmem:[#allocation13 + $0x10] sm:$0xff]
          %v740 = vld [vmem:[#allocation13 + $0x18] sm:$0xff]
          %v741 = vld [vmem:[%s7] sm:$0x1]
          %v743 = vperm.slane %v741, 0
          %v746 = vsel %vm673, %v735, 0
          %v749 = vsel %vm673, %v736, 0
          %751 = vmatpush.msra.mxu0 0.0
          %752 = vmatpush.msra.mxu0 0.0
          %753 = vmatpush.msra.mxu0 0.0
          %754 = vmatpush.msra.mxu0 0.0
          %755 = vmatpush.msra.mxu0 0.0
          %756 = vmatpush.msra.mxu0 0.0
          %757 = vmatpush.msra.mxu0 0.0
          %758 = vmatpush.msra.mxu0 0.0
          %759 = vmatpush.msra.mxu0 0.0
          %760 = vmatpush.msra.mxu0 0.0
          %761 = vmatpush.msra.mxu0 0.0
          %762 = vmatpush.msra.mxu0 0.0
          %763 = vmatpush.msra.mxu0 %v740
          %764 = vmatpush.msra.mxu0 %v739
          %765 = vmatpush.msra.mxu0 %v738
          %766 = vmatpush.msra.mxu0 %v737
          %767 = vmatmul.f32.gmra.mxu0 %v746
          %v768 = vpop.f32.mrf.mxu0
          %v769 = vadd.f32 %v743, %v768
          %770 = vmatmul.f32.gmra.mxu0 %v749
          %v771 = vpop.f32.mrf.mxu0
          %v772 = vadd.f32 %v743, %v771
          %773 = vdwg.mxu0
          %v774 = vlaneseq
          %v775 = vshrl.u32 %v774, 7
          %v776 = vadd.s32 %v775, 8
          %v777 = vstv %s665
          %v778 = vadd.s32 %v777, %v775
          %v779 = vadd.s32 %v777, %v776
          %v780 = vlaneseq
          %v781 = vand.u32 %v780, 127
          %v782 = vstv %s664
          %v783 = vadd.s32 %v782, %v781
          %vm784 = vcmp.le.s32.totalorder %v783, %v778
          %vm785 = vcmp.le.s32.totalorder %v783, %v779
          %v786 = vld [vmem:[#allocation2] sm:$0xff]
          %v787 = vld [vmem:[#allocation2 + $0x8] sm:$0xff]
          %vm788 = vcmask 31744
          %v790 = vsel %vm788, %v786, 0
          %v793 = vsel %vm788, %v787, 0
          %v796 = vsel %vm788, %v769, 0
          %v799 = vsel %vm788, %v772, 0
          %801 = vmatpush.xpose.msra.mxu0 0.0
          %802 = vmatpush.xpose.msra.mxu0 0.0
          %803 = vmatpush.xpose.msra.mxu0 0.0
          %804 = vmatpush.xpose.msra.mxu0 0.0
          %805 = vmatpush.xpose.msra.mxu0 0.0
          %806 = vmatpush.xpose.msra.mxu0 0.0
          %807 = vmatpush.xpose.msra.mxu0 0.0
          %808 = vmatpush.xpose.msra.mxu0 0.0
          %809 = vmatpush.xpose.msra.mxu0 0.0
          %810 = vmatpush.xpose.msra.mxu0 0.0
          %811 = vmatpush.xpose.msra.mxu0 0.0
          %812 = vmatpush.xpose.msra.mxu0 0.0
          %813 = vmatpush.xpose.msra.mxu0 0.0
          %814 = vmatpush.xpose.msra.mxu0 0.0
          %815 = vmatpush.xpose.msra.mxu0 %v799
          %816 = vmatpush.xpose.msra.mxu0 %v796
          %817 = vmatmul.f32.gmra.mxu0 %v790
          %v818 = vpop.f32.mrf.mxu0
          %v819 = vadd.f32 0.0, %v818
          %820 = vmatmul.f32.gmra.mxu0 %v793
          %v821 = vpop.f32.mrf.mxu0
          %v822 = vadd.f32 0.0, %v821
          %823 = vdwg.mxu0
          %v824 = vsel %vm784, %v819, -1e+30
          %v825 = vsel %vm785, %v822, -1e+30
          %v826 = vld [vmem:[#allocation3] sm:$0xff]
          %v827 = vld [vmem:[#allocation3 + $0x8] sm:$0xff]
          %vm828 = vcmask 130048
          %v829 = vsel %vm828, %v824, -inf
          %830 = vmax.xlane.f32.xlu0 %v829
          %v831 = vpop.xlane.xlu0 %830
          %v832 = vsel %vm828, %v825, -inf
          %833 = vmax.xlane.f32.xlu0 %v832
          %v834 = vpop.xlane.xlu0 %833
          %v835 = vmax.f32 %v826, %v831
          %v836 = vmax.f32 %v827, %v834
          %v837 = vsub.f32 %v826, %v835
          %v838 = vsub.f32 %v827, %v836
          %v839 = vmul.f32 %v837, 1.442695
          %v840 = vpow.pop %v839
          %v841 = vmul.f32 %v838, 1.442695
          %v842 = vpow.pop %v841
          %844 = vset.pattern.permute.xlu0 0
          %845 = vperm.xlu0 %844, %v835
          %v846 = vpop.permute.xlu0 %845
          %849 = vset.pattern.permute.xlu0 0
          %850 = vperm.xlu0 %849, %v836
          %v851 = vpop.permute.xlu0 %850
          %v853 = vsub.f32 %v824, %v846
          %v854 = vsub.f32 %v825, %v851
          %v855 = vmul.f32 %v853, 1.442695
          %v856 = vpow.pop %v855
          %v857 = vmul.f32 %v854, 1.442695
          %v858 = vpow.pop %v857
          %v859 = vld [vmem:[#allocation4] sm:$0xff]
          %v860 = vld [vmem:[#allocation4 + $0x8] sm:$0xff]
          %v861 = vmul.f32 %v840, %v859
          %v862 = vmul.f32 %v842, %v860
          %v863 = vsel %vm828, %v856, 0.0
          %864 = vadd.xlane.f32.xlu0 %v863
          %v865 = vpop.xlane.xlu0 %864
          %v866 = vsel %vm828, %v858, 0.0
          %867 = vadd.xlane.f32.xlu0 %v866
          %v868 = vpop.xlane.xlu0 %867
          %v869 = vadd.f32 %v861, %v865
          %v870 = vadd.f32 %v862, %v868
          %vm871 = vcmask 7168
          %872 = vst.msk [vmem:[#allocation4] sm:$0xff] %vm871, %v869
          %873 = vst.msk [vmem:[#allocation4 + $0x8] sm:$0xff] %vm871, %v870
          %v874 = vld [vmem:[#allocation5] sm:$0xff]
          %v875 = vld [vmem:[#allocation5 + $0x8] sm:$0xff]
          %877 = vset.pattern.permute.xlu0 0
          %878 = vperm.xlu0 %877, %v840
          %v879 = vpop.permute.xlu0 %878
          %882 = vset.pattern.permute.xlu0 0
          %883 = vperm.xlu0 %882, %v842
          %v884 = vpop.permute.xlu0 %883
          %v886 = vmul.f32 %v879, %v874
          %v887 = vmul.f32 %v884, %v875
          %888 = vrot.lane.b32.xlu0 %v769, 96
          %v889 = vpop.permute.xlu0 %888
          %890 = vrot.lane.b32.xlu0 %v772, 96
          %v891 = vpop.permute.xlu0 %890
          %v895 = vsel %vm828, %v856, 0
          %v898 = vsel %vm828, %v858, 0
          %900 = vmatpush.msra.mxu0 0.0
          %901 = vmatpush.msra.mxu0 0.0
          %902 = vmatpush.msra.mxu0 0.0
          %903 = vmatpush.msra.mxu0 0.0
          %904 = vmatpush.msra.mxu0 0.0
          %905 = vmatpush.msra.mxu0 0.0
          %906 = vmatpush.msra.mxu0 0.0
          %907 = vmatpush.msra.mxu0 0.0
          %908 = vmatpush.msra.mxu0 0.0
          %909 = vmatpush.msra.mxu0 0.0
          %910 = vmatpush.msra.mxu0 0.0
          %911 = vmatpush.msra.mxu0 0.0
          %912 = vmatpush.msra.mxu0 0.0
          %913 = vmatpush.msra.mxu0 0.0
          %914 = vmatpush.msra.mxu0 %v891
          %915 = vmatpush.msra.mxu0 %v889
          %916 = vmatmul.f32.gmra.mxu0 %v895
          %v917 = vpop.f32.mrf.mxu0
          %v918 = vadd.f32 0.0, %v917
          %919 = vmatmul.f32.gmra.mxu0 %v898
          %v920 = vpop.f32.mrf.mxu0
          %v921 = vadd.f32 0.0, %v920
          %922 = vdwg.mxu0
          %v923 = vadd.f32 %v886, %v918
          %v924 = vadd.f32 %v887, %v921
          %925 = vst.msk [vmem:[#allocation5] sm:$0xff] %vm788, %v923
          %926 = vst.msk [vmem:[#allocation5 + $0x8] sm:$0xff] %vm788, %v924
          %927 = vst.msk [vmem:[#allocation3] sm:$0xff] %vm871, %v835
          %928 = vst.msk [vmem:[#allocation3 + $0x8] sm:$0xff] %vm871, %v836
          %v929 = vld [vmem:[#allocation2] sm:$0xff]
          %v930 = vld [vmem:[#allocation2 + $0x8] sm:$0xff]
          %933 = vrot.lane.b32.xlu0 %v929, 124
          %v934 = vpop.permute.xlu0 %933
          %935 = vrot.lane.b32.xlu0 %v930, 124
          %v936 = vpop.permute.xlu0 %935
          %937 = vrot.lane.b32.xlu0 %v769, 124
          %v938 = vpop.permute.xlu0 %937
          %939 = vrot.lane.b32.xlu0 %v772, 124
          %v940 = vpop.permute.xlu0 %939
          %v941 = vsel %vm788, %v934, 0
          %v943 = vsel %vm788, %v936, 0
          %v945 = vsel %vm788, %v938, 0
          %v947 = vsel %vm788, %v940, 0
          %949 = vmatpush.xpose.msra.mxu0 0.0
          %950 = vmatpush.xpose.msra.mxu0 0.0
          %951 = vmatpush.xpose.msra.mxu0 0.0
          %952 = vmatpush.xpose.msra.mxu0 0.0
          %953 = vmatpush.xpose.msra.mxu0 0.0
          %954 = vmatpush.xpose.msra.mxu0 0.0
          %955 = vmatpush.xpose.msra.mxu0 0.0
          %956 = vmatpush.xpose.msra.mxu0 0.0
          %957 = vmatpush.xpose.msra.mxu0 0.0
          %958 = vmatpush.xpose.msra.mxu0 0.0
          %959 = vmatpush.xpose.msra.mxu0 0.0
          %960 = vmatpush.xpose.msra.mxu0 0.0
          %961 = vmatpush.xpose.msra.mxu0 0.0
          %962 = vmatpush.xpose.msra.mxu0 0.0
          %963 = vmatpush.xpose.msra.mxu0 %v947
          %964 = vmatpush.xpose.msra.mxu0 %v945
          %965 = vmatmul.f32.gmra.mxu0 %v941
          %v966 = vpop.f32.mrf.mxu0
          %v967 = vadd.f32 0.0, %v966
          %968 = vmatmul.f32.gmra.mxu0 %v943
          %v969 = vpop.f32.mrf.mxu0
          %v970 = vadd.f32 0.0, %v969
          %971 = vdwg.mxu0
          %v972 = vsel %vm784, %v967, -1e+30
          %v973 = vsel %vm785, %v970, -1e+30
          %s974 = scalar_lea.vmem [#allocation3], 16
          %v975 = vld [vmem:[%s974] sm:$0xff]
          %v976 = vld [vmem:[%s974 + $0x8] sm:$0xff]
          %v977 = vsel %vm828, %v972, -inf
          %978 = vmax.xlane.f32.xlu0 %v977
          %v979 = vpop.xlane.xlu0 %978
          %v980 = vsel %vm828, %v973, -inf
          %981 = vmax.xlane.f32.xlu0 %v980
          %v982 = vpop.xlane.xlu0 %981
          %v983 = vmax.f32 %v975, %v979
          %v984 = vmax.f32 %v976, %v982
          %v985 = vsub.f32 %v975, %v983
          %v986 = vsub.f32 %v976, %v984
          %v987 = vmul.f32 %v985, 1.442695
          %v988 = vpow.pop %v987
          %v989 = vmul.f32 %v986, 1.442695
          %v990 = vpow.pop %v989
          %992 = vset.pattern.permute.xlu0 0
          %993 = vperm.xlu0 %992, %v983
          %v994 = vpop.permute.xlu0 %993
          %997 = vset.pattern.permute.xlu0 0
          %998 = vperm.xlu0 %997, %v984
          %v999 = vpop.permute.xlu0 %998
          %v1001 = vsub.f32 %v972, %v994
          %v1002 = vsub.f32 %v973, %v999
          %v1003 = vmul.f32 %v1001, 1.442695
          %v1004 = vpow.pop %v1003
          %v1005 = vmul.f32 %v1002, 1.442695
          %v1006 = vpow.pop %v1005
          %s1007 = scalar_lea.vmem [#allocation4], 16
          %v1008 = vld [vmem:[%s1007] sm:$0xff]
          %v1009 = vld [vmem:[%s1007 + $0x8] sm:$0xff]
          %v1010 = vmul.f32 %v988, %v1008
          %v1011 = vmul.f32 %v990, %v1009
          %v1012 = vsel %vm828, %v1004, 0.0
          %1013 = vadd.xlane.f32.xlu0 %v1012
          %v1014 = vpop.xlane.xlu0 %1013
          %v1015 = vsel %vm828, %v1006, 0.0
          %1016 = vadd.xlane.f32.xlu0 %v1015
          %v1017 = vpop.xlane.xlu0 %1016
          %v1018 = vadd.f32 %v1010, %v1014
          %v1019 = vadd.f32 %v1011, %v1017
          %1020 = vst.msk [vmem:[%s1007] sm:$0xff] %vm871, %v1018
          %1021 = vst.msk [vmem:[%s1007 + $0x8] sm:$0xff] %vm871, %v1019
          %s1022 = scalar_lea.vmem [#allocation5], 16
          %v1023 = vld [vmem:[%s1022] sm:$0xff]
          %v1024 = vld [vmem:[%s1022 + $0x8] sm:$0xff]
          %1026 = vset.pattern.permute.xlu0 0
          %1027 = vperm.xlu0 %1026, %v988
          %v1028 = vpop.permute.xlu0 %1027
          %1031 = vset.pattern.permute.xlu0 0
          %1032 = vperm.xlu0 %1031, %v990
          %v1033 = vpop.permute.xlu0 %1032
          %v1035 = vmul.f32 %v1028, %v1023
          %v1036 = vmul.f32 %v1033, %v1024
          %1037 = vrot.lane.b32.xlu0 %v769, 92
          %v1038 = vpop.permute.xlu0 %1037
          %1039 = vrot.lane.b32.xlu0 %v772, 92
          %v1040 = vpop.permute.xlu0 %1039
          %v1044 = vsel %vm828, %v1004, 0
          %v1047 = vsel %vm828, %v1006, 0
          %1049 = vmatpush.msra.mxu0 0.0
          %1050 = vmatpush.msra.mxu0 0.0
          %1051 = vmatpush.msra.mxu0 0.0
          %1052 = vmatpush.msra.mxu0 0.0
          %1053 = vmatpush.msra.mxu0 0.0
          %1054 = vmatpush.msra.mxu0 0.0
          %1055 = vmatpush.msra.mxu0 0.0
          %1056 = vmatpush.msra.mxu0 0.0
          %1057 = vmatpush.msra.mxu0 0.0
          %1058 = vmatpush.msra.mxu0 0.0
          %1059 = vmatpush.msra.mxu0 0.0
          %1060 = vmatpush.msra.mxu0 0.0
          %1061 = vmatpush.msra.mxu0 0.0
          %1062 = vmatpush.msra.mxu0 0.0
          %1063 = vmatpush.msra.mxu0 %v1040
          %1064 = vmatpush.msra.mxu0 %v1038
          %1065 = vmatmul.f32.gmra.mxu0 %v1044
          %v1066 = vpop.f32.mrf.mxu0
          %v1067 = vadd.f32 0.0, %v1066
          %1068 = vmatmul.f32.gmra.mxu0 %v1047
          %v1069 = vpop.f32.mrf.mxu0
          %v1070 = vadd.f32 0.0, %v1069
          %1071 = vdwg.mxu0
          %v1072 = vadd.f32 %v1035, %v1067
          %v1073 = vadd.f32 %v1036, %v1070
          %1074 = vst.msk [vmem:[%s1022] sm:$0xff] %vm788, %v1072
          %1075 = vst.msk [vmem:[%s1022 + $0x8] sm:$0xff] %vm788, %v1073
          %1076 = vst.msk [vmem:[%s974] sm:$0xff] %vm871, %v983
          %1077 = vst.msk [vmem:[%s974 + $0x8] sm:$0xff] %vm871, %v984
          %v1078 = vld [vmem:[#allocation2] sm:$0xff]
          %v1079 = vld [vmem:[#allocation2 + $0x8] sm:$0xff]
          %1082 = vrot.lane.b32.xlu0 %v1078, 120
          %v1083 = vpop.permute.xlu0 %1082
          %1084 = vrot.lane.b32.xlu0 %v1079, 120
          %v1085 = vpop.permute.xlu0 %1084
          %1086 = vrot.lane.b32.xlu0 %v769, 120
          %v1087 = vpop.permute.xlu0 %1086
          %1088 = vrot.lane.b32.xlu0 %v772, 120
          %v1089 = vpop.permute.xlu0 %1088
          %v1090 = vsel %vm788, %v1083, 0
          %v1092 = vsel %vm788, %v1085, 0
          %v1094 = vsel %vm788, %v1087, 0
          %v1096 = vsel %vm788, %v1089, 0
          %1098 = vmatpush.xpose.msra.mxu0 0.0
          %1099 = vmatpush.xpose.msra.mxu0 0.0
          %1100 = vmatpush.xpose.msra.mxu0 0.0
          %1101 = vmatpush.xpose.msra.mxu0 0.0
          %1102 = vmatpush.xpose.msra.mxu0 0.0
          %1103 = vmatpush.xpose.msra.mxu0 0.0
          %1104 = vmatpush.xpose.msra.mxu0 0.0
          %1105 = vmatpush.xpose.msra.mxu0 0.0
          %1106 = vmatpush.xpose.msra.mxu0 0.0
          %1107 = vmatpush.xpose.msra.mxu0 0.0
          %1108 = vmatpush.xpose.msra.mxu0 0.0
          %1109 = vmatpush.xpose.msra.mxu0 0.0
          %1110 = vmatpush.xpose.msra.mxu0 0.0
          %1111 = vmatpush.xpose.msra.mxu0 0.0
          %1112 = vmatpush.xpose.msra.mxu0 %v1096
          %1113 = vmatpush.xpose.msra.mxu0 %v1094
          %1114 = vmatmul.f32.gmra.mxu0 %v1090
          %v1115 = vpop.f32.mrf.mxu0
          %v1116 = vadd.f32 0.0, %v1115
          %1117 = vmatmul.f32.gmra.mxu0 %v1092
          %v1118 = vpop.f32.mrf.mxu0
          %v1119 = vadd.f32 0.0, %v1118
          %1120 = vdwg.mxu0
          %v1121 = vsel %vm784, %v1116, -1e+30
          %v1122 = vsel %vm785, %v1119, -1e+30
          %s1123 = scalar_lea.vmem [#allocation3], 32
          %v1124 = vld [vmem:[%s1123] sm:$0xff]
          %v1125 = vld [vmem:[%s1123 + $0x8] sm:$0xff]
          %v1126 = vsel %vm828, %v1121, -inf
          %1127 = vmax.xlane.f32.xlu0 %v1126
          %v1128 = vpop.xlane.xlu0 %1127
          %v1129 = vsel %vm828, %v1122, -inf
          %1130 = vmax.xlane.f32.xlu0 %v1129
          %v1131 = vpop.xlane.xlu0 %1130
          %v1132 = vmax.f32 %v1124, %v1128
          %v1133 = vmax.f32 %v1125, %v1131
          %v1134 = vsub.f32 %v1124, %v1132
          %v1135 = vsub.f32 %v1125, %v1133
          %v1136 = vmul.f32 %v1134, 1.442695
          %v1137 = vpow.pop %v1136
          %v1138 = vmul.f32 %v1135, 1.442695
          %v1139 = vpow.pop %v1138
          %1141 = vset.pattern.permute.xlu0 0
          %1142 = vperm.xlu0 %1141, %v1132
          %v1143 = vpop.permute.xlu0 %1142
          %1146 = vset.pattern.permute.xlu0 0
          %1147 = vperm.xlu0 %1146, %v1133
          %v1148 = vpop.permute.xlu0 %1147
          %v1150 = vsub.f32 %v1121, %v1143
          %v1151 = vsub.f32 %v1122, %v1148
          %v1152 = vmul.f32 %v1150, 1.442695
          %v1153 = vpow.pop %v1152
          %v1154 = vmul.f32 %v1151, 1.442695
          %v1155 = vpow.pop %v1154
          %s1156 = scalar_lea.vmem [#allocation4], 32
          %v1157 = vld [vmem:[%s1156] sm:$0xff]
          %v1158 = vld [vmem:[%s1156 + $0x8] sm:$0xff]
          %v1159 = vmul.f32 %v1137, %v1157
          %v1160 = vmul.f32 %v1139, %v1158
          %v1161 = vsel %vm828, %v1153, 0.0
          %1162 = vadd.xlane.f32.xlu0 %v1161
          %v1163 = vpop.xlane.xlu0 %1162
          %v1164 = vsel %vm828, %v1155, 0.0
          %1165 = vadd.xlane.f32.xlu0 %v1164
          %v1166 = vpop.xlane.xlu0 %1165
          %v1167 = vadd.f32 %v1159, %v1163
          %v1168 = vadd.f32 %v1160, %v1166
          %1169 = vst.msk [vmem:[%s1156] sm:$0xff] %vm871, %v1167
          %1170 = vst.msk [vmem:[%s1156 + $0x8] sm:$0xff] %vm871, %v1168
          %s1171 = scalar_lea.vmem [#allocation5], 32
          %v1172 = vld [vmem:[%s1171] sm:$0xff]
          %v1173 = vld [vmem:[%s1171 + $0x8] sm:$0xff]
          %1175 = vset.pattern.permute.xlu0 0
          %1176 = vperm.xlu0 %1175, %v1137
          %v1177 = vpop.permute.xlu0 %1176
          %1180 = vset.pattern.permute.xlu0 0
          %1181 = vperm.xlu0 %1180, %v1139
          %v1182 = vpop.permute.xlu0 %1181
          %v1184 = vmul.f32 %v1177, %v1172
          %v1185 = vmul.f32 %v1182, %v1173
          %1186 = vrot.lane.b32.xlu0 %v769, 88
          %v1187 = vpop.permute.xlu0 %1186
          %1188 = vrot.lane.b32.xlu0 %v772, 88
          %v1189 = vpop.permute.xlu0 %1188
          %v1193 = vsel %vm828, %v1153, 0
          %v1196 = vsel %vm828, %v1155, 0
          %1198 = vmatpush.msra.mxu0 0.0
          %1199 = vmatpush.msra.mxu0 0.0
          %1200 = vmatpush.msra.mxu0 0.0
          %1201 = vmatpush.msra.mxu0 0.0
          %1202 = vmatpush.msra.mxu0 0.0
          %1203 = vmatpush.msra.mxu0 0.0
          %1204 = vmatpush.msra.mxu0 0.0
          %1205 = vmatpush.msra.mxu0 0.0
          %1206 = vmatpush.msra.mxu0 0.0
          %1207 = vmatpush.msra.mxu0 0.0
          %1208 = vmatpush.msra.mxu0 0.0
          %1209 = vmatpush.msra.mxu0 0.0
          %1210 = vmatpush.msra.mxu0 0.0
          %1211 = vmatpush.msra.mxu0 0.0
          %1212 = vmatpush.msra.mxu0 %v1189
          %1213 = vmatpush.msra.mxu0 %v1187
          %1214 = vmatmul.f32.gmra.mxu0 %v1193
          %v1215 = vpop.f32.mrf.mxu0
          %v1216 = vadd.f32 0.0, %v1215
          %1217 = vmatmul.f32.gmra.mxu0 %v1196
          %v1218 = vpop.f32.mrf.mxu0
          %v1219 = vadd.f32 0.0, %v1218
          %1220 = vdwg.mxu0
          %v1221 = vadd.f32 %v1184, %v1216
          %v1222 = vadd.f32 %v1185, %v1219
          %1223 = vst.msk [vmem:[%s1171] sm:$0xff] %vm788, %v1221
          %1224 = vst.msk [vmem:[%s1171 + $0x8] sm:$0xff] %vm788, %v1222
          %1225 = vst.msk [vmem:[%s1123] sm:$0xff] %vm871, %v1132
          %1226 = vst.msk [vmem:[%s1123 + $0x8] sm:$0xff] %vm871, %v1133
          %v1227 = vld [vmem:[#allocation2] sm:$0xff]
          %v1228 = vld [vmem:[#allocation2 + $0x8] sm:$0xff]
          %1231 = vrot.lane.b32.xlu0 %v1227, 116
          %v1232 = vpop.permute.xlu0 %1231
          %1233 = vrot.lane.b32.xlu0 %v1228, 116
          %v1234 = vpop.permute.xlu0 %1233
          %1235 = vrot.lane.b32.xlu0 %v769, 116
          %v1236 = vpop.permute.xlu0 %1235
          %1237 = vrot.lane.b32.xlu0 %v772, 116
          %v1238 = vpop.permute.xlu0 %1237
          %v1239 = vsel %vm788, %v1232, 0
          %v1241 = vsel %vm788, %v1234, 0
          %v1243 = vsel %vm788, %v1236, 0
          %v1245 = vsel %vm788, %v1238, 0
          %1247 = vmatpush.xpose.msra.mxu0 0.0
          %1248 = vmatpush.xpose.msra.mxu0 0.0
          %1249 = vmatpush.xpose.msra.mxu0 0.0
          %1250 = vmatpush.xpose.msra.mxu0 0.0
          %1251 = vmatpush.xpose.msra.mxu0 0.0
          %1252 = vmatpush.xpose.msra.mxu0 0.0
          %1253 = vmatpush.xpose.msra.mxu0 0.0
          %1254 = vmatpush.xpose.msra.mxu0 0.0
          %1255 = vmatpush.xpose.msra.mxu0 0.0
          %1256 = vmatpush.xpose.msra.mxu0 0.0
          %1257 = vmatpush.xpose.msra.mxu0 0.0
          %1258 = vmatpush.xpose.msra.mxu0 0.0
          %1259 = vmatpush.xpose.msra.mxu0 0.0
          %1260 = vmatpush.xpose.msra.mxu0 0.0
          %1261 = vmatpush.xpose.msra.mxu0 %v1245
          %1262 = vmatpush.xpose.msra.mxu0 %v1243
          %1263 = vmatmul.f32.gmra.mxu0 %v1239
          %v1264 = vpop.f32.mrf.mxu0
          %v1265 = vadd.f32 0.0, %v1264
          %1266 = vmatmul.f32.gmra.mxu0 %v1241
          %v1267 = vpop.f32.mrf.mxu0
          %v1268 = vadd.f32 0.0, %v1267
          %1269 = vdwg.mxu0
          %v1270 = vsel %vm784, %v1265, -1e+30
          %v1271 = vsel %vm785, %v1268, -1e+30
          %s1272 = scalar_lea.vmem [#allocation3], 48
          %v1273 = vld [vmem:[%s1272] sm:$0xff]
          %v1274 = vld [vmem:[%s1272 + $0x8] sm:$0xff]
          %v1275 = vsel %vm828, %v1270, -inf
          %1276 = vmax.xlane.f32.xlu0 %v1275
          %v1277 = vpop.xlane.xlu0 %1276
          %v1278 = vsel %vm828, %v1271, -inf
          %1279 = vmax.xlane.f32.xlu0 %v1278
          %v1280 = vpop.xlane.xlu0 %1279
          %v1281 = vmax.f32 %v1273, %v1277
          %v1282 = vmax.f32 %v1274, %v1280
          %v1283 = vsub.f32 %v1273, %v1281
          %v1284 = vsub.f32 %v1274, %v1282
          %v1285 = vmul.f32 %v1283, 1.442695
          %v1286 = vpow.pop %v1285
          %v1287 = vmul.f32 %v1284, 1.442695
          %v1288 = vpow.pop %v1287
          %1290 = vset.pattern.permute.xlu0 0
          %1291 = vperm.xlu0 %1290, %v1281
          %v1292 = vpop.permute.xlu0 %1291
          %1295 = vset.pattern.permute.xlu0 0
          %1296 = vperm.xlu0 %1295, %v1282
          %v1297 = vpop.permute.xlu0 %1296
          %v1299 = vsub.f32 %v1270, %v1292
          %v1300 = vsub.f32 %v1271, %v1297
          %v1301 = vmul.f32 %v1299, 1.442695
          %v1302 = vpow.pop %v1301
          %v1303 = vmul.f32 %v1300, 1.442695
          %v1304 = vpow.pop %v1303
          %s1305 = scalar_lea.vmem [#allocation4], 48
          %v1306 = vld [vmem:[%s1305] sm:$0xff]
          %v1307 = vld [vmem:[%s1305 + $0x8] sm:$0xff]
          %v1308 = vmul.f32 %v1286, %v1306
          %v1309 = vmul.f32 %v1288, %v1307
          %v1310 = vsel %vm828, %v1302, 0.0
          %1311 = vadd.xlane.f32.xlu0 %v1310
          %v1312 = vpop.xlane.xlu0 %1311
          %v1313 = vsel %vm828, %v1304, 0.0
          %1314 = vadd.xlane.f32.xlu0 %v1313
          %v1315 = vpop.xlane.xlu0 %1314
          %v1316 = vadd.f32 %v1308, %v1312
          %v1317 = vadd.f32 %v1309, %v1315
          %1318 = vst.msk [vmem:[%s1305] sm:$0xff] %vm871, %v1316
          %1319 = vst.msk [vmem:[%s1305 + $0x8] sm:$0xff] %vm871, %v1317
          %s1320 = scalar_lea.vmem [#allocation5], 48
          %v1321 = vld [vmem:[%s1320] sm:$0xff]
          %v1322 = vld [vmem:[%s1320 + $0x8] sm:$0xff]
          %1324 = vset.pattern.permute.xlu0 0
          %1325 = vperm.xlu0 %1324, %v1286
          %v1326 = vpop.permute.xlu0 %1325
          %1329 = vset.pattern.permute.xlu0 0
          %1330 = vperm.xlu0 %1329, %v1288
          %v1331 = vpop.permute.xlu0 %1330
          %v1333 = vmul.f32 %v1326, %v1321
          %v1334 = vmul.f32 %v1331, %v1322
          %1335 = vrot.lane.b32.xlu0 %v769, 84
          %v1336 = vpop.permute.xlu0 %1335
          %1337 = vrot.lane.b32.xlu0 %v772, 84
          %v1338 = vpop.permute.xlu0 %1337
          %v1342 = vsel %vm828, %v1302, 0
          %v1345 = vsel %vm828, %v1304, 0
          %1347 = vmatpush.msra.mxu0 0.0
          %1348 = vmatpush.msra.mxu0 0.0
          %1349 = vmatpush.msra.mxu0 0.0
          %1350 = vmatpush.msra.mxu0 0.0
          %1351 = vmatpush.msra.mxu0 0.0
          %1352 = vmatpush.msra.mxu0 0.0
          %1353 = vmatpush.msra.mxu0 0.0
          %1354 = vmatpush.msra.mxu0 0.0
          %1355 = vmatpush.msra.mxu0 0.0
          %1356 = vmatpush.msra.mxu0 0.0
          %1357 = vmatpush.msra.mxu0 0.0
          %1358 = vmatpush.msra.mxu0 0.0
          %1359 = vmatpush.msra.mxu0 0.0
          %1360 = vmatpush.msra.mxu0 0.0
          %1361 = vmatpush.msra.mxu0 %v1338
          %1362 = vmatpush.msra.mxu0 %v1336
          %1363 = vmatmul.f32.gmra.mxu0 %v1342
          %v1364 = vpop.f32.mrf.mxu0
          %v1365 = vadd.f32 0.0, %v1364
          %1366 = vmatmul.f32.gmra.mxu0 %v1345
          %v1367 = vpop.f32.mrf.mxu0
          %v1368 = vadd.f32 0.0, %v1367
          %1369 = vdwg.mxu0
          %v1370 = vadd.f32 %v1333, %v1365
          %v1371 = vadd.f32 %v1334, %v1368
          %1372 = vst.msk [vmem:[%s1320] sm:$0xff] %vm788, %v1370
          %1373 = vst.msk [vmem:[%s1320 + $0x8] sm:$0xff] %vm788, %v1371
          %1374 = vst.msk [vmem:[%s1272] sm:$0xff] %vm871, %v1281
          %1375 = vst.msk [vmem:[%s1272 + $0x8] sm:$0xff] %vm871, %v1282
          %v1376 = vld [vmem:[#allocation2] sm:$0xff]
          %v1377 = vld [vmem:[#allocation2 + $0x8] sm:$0xff]
          %1380 = vrot.lane.b32.xlu0 %v1376, 112
          %v1381 = vpop.permute.xlu0 %1380
          %1382 = vrot.lane.b32.xlu0 %v1377, 112
          %v1383 = vpop.permute.xlu0 %1382
          %1384 = vrot.lane.b32.xlu0 %v769, 112
          %v1385 = vpop.permute.xlu0 %1384
          %1386 = vrot.lane.b32.xlu0 %v772, 112
          %v1387 = vpop.permute.xlu0 %1386
          %v1388 = vsel %vm788, %v1381, 0
          %v1390 = vsel %vm788, %v1383, 0
          %v1392 = vsel %vm788, %v1385, 0
          %v1394 = vsel %vm788, %v1387, 0
          %1396 = vmatpush.xpose.msra.mxu0 0.0
          %1397 = vmatpush.xpose.msra.mxu0 0.0
          %1398 = vmatpush.xpose.msra.mxu0 0.0
          %1399 = vmatpush.xpose.msra.mxu0 0.0
          %1400 = vmatpush.xpose.msra.mxu0 0.0
          %1401 = vmatpush.xpose.msra.mxu0 0.0
          %1402 = vmatpush.xpose.msra.mxu0 0.0
          %1403 = vmatpush.xpose.msra.mxu0 0.0
          %1404 = vmatpush.xpose.msra.mxu0 0.0
          %1405 = vmatpush.xpose.msra.mxu0 0.0
          %1406 = vmatpush.xpose.msra.mxu0 0.0
          %1407 = vmatpush.xpose.msra.mxu0 0.0
          %1408 = vmatpush.xpose.msra.mxu0 0.0
          %1409 = vmatpush.xpose.msra.mxu0 0.0
          %1410 = vmatpush.xpose.msra.mxu0 %v1394
          %1411 = vmatpush.xpose.msra.mxu0 %v1392
          %1412 = vmatmul.f32.gmra.mxu0 %v1388
          %v1413 = vpop.f32.mrf.mxu0
          %v1414 = vadd.f32 0.0, %v1413
          %1415 = vmatmul.f32.gmra.mxu0 %v1390
          %v1416 = vpop.f32.mrf.mxu0
          %v1417 = vadd.f32 0.0, %v1416
          %1418 = vdwg.mxu0
          %v1419 = vsel %vm784, %v1414, -1e+30
          %v1420 = vsel %vm785, %v1417, -1e+30
          %s1421 = scalar_lea.vmem [#allocation3], 64
          %v1422 = vld [vmem:[%s1421] sm:$0xff]
          %v1423 = vld [vmem:[%s1421 + $0x8] sm:$0xff]
          %v1424 = vsel %vm828, %v1419, -inf
          %1425 = vmax.xlane.f32.xlu0 %v1424
          %v1426 = vpop.xlane.xlu0 %1425
          %v1427 = vsel %vm828, %v1420, -inf
          %1428 = vmax.xlane.f32.xlu0 %v1427
          %v1429 = vpop.xlane.xlu0 %1428
          %v1430 = vmax.f32 %v1422, %v1426
          %v1431 = vmax.f32 %v1423, %v1429
          %v1432 = vsub.f32 %v1422, %v1430
          %v1433 = vsub.f32 %v1423, %v1431
          %v1434 = vmul.f32 %v1432, 1.442695
          %v1435 = vpow.pop %v1434
          %v1436 = vmul.f32 %v1433, 1.442695
          %v1437 = vpow.pop %v1436
          %1439 = vset.pattern.permute.xlu0 0
          %1440 = vperm.xlu0 %1439, %v1430
          %v1441 = vpop.permute.xlu0 %1440
          %1444 = vset.pattern.permute.xlu0 0
          %1445 = vperm.xlu0 %1444, %v1431
          %v1446 = vpop.permute.xlu0 %1445
          %v1448 = vsub.f32 %v1419, %v1441
          %v1449 = vsub.f32 %v1420, %v1446
          %v1450 = vmul.f32 %v1448, 1.442695
          %v1451 = vpow.pop %v1450
          %v1452 = vmul.f32 %v1449, 1.442695
          %v1453 = vpow.pop %v1452
          %s1454 = scalar_lea.vmem [#allocation4], 64
          %v1455 = vld [vmem:[%s1454] sm:$0xff]
          %v1456 = vld [vmem:[%s1454 + $0x8] sm:$0xff]
          %v1457 = vmul.f32 %v1435, %v1455
          %v1458 = vmul.f32 %v1437, %v1456
          %v1459 = vsel %vm828, %v1451, 0.0
          %1460 = vadd.xlane.f32.xlu0 %v1459
          %v1461 = vpop.xlane.xlu0 %1460
          %v1462 = vsel %vm828, %v1453, 0.0
          %1463 = vadd.xlane.f32.xlu0 %v1462
          %v1464 = vpop.xlane.xlu0 %1463
          %v1465 = vadd.f32 %v1457, %v1461
          %v1466 = vadd.f32 %v1458, %v1464
          %1467 = vst.msk [vmem:[%s1454] sm:$0xff] %vm871, %v1465
          %1468 = vst.msk [vmem:[%s1454 + $0x8] sm:$0xff] %vm871, %v1466
          %s1469 = scalar_lea.vmem [#allocation5], 64
          %v1470 = vld [vmem:[%s1469] sm:$0xff]
          %v1471 = vld [vmem:[%s1469 + $0x8] sm:$0xff]
          %1473 = vset.pattern.permute.xlu0 0
          %1474 = vperm.xlu0 %1473, %v1435
          %v1475 = vpop.permute.xlu0 %1474
          %1478 = vset.pattern.permute.xlu0 0
          %1479 = vperm.xlu0 %1478, %v1437
          %v1480 = vpop.permute.xlu0 %1479
          %v1482 = vmul.f32 %v1475, %v1470
          %v1483 = vmul.f32 %v1480, %v1471
          %1484 = vrot.lane.b32.xlu0 %v769, 80
          %v1485 = vpop.permute.xlu0 %1484
          %1486 = vrot.lane.b32.xlu0 %v772, 80
          %v1487 = vpop.permute.xlu0 %1486
          %v1491 = vsel %vm828, %v1451, 0
          %v1494 = vsel %vm828, %v1453, 0
          %1496 = vmatpush.msra.mxu0 0.0
          %1497 = vmatpush.msra.mxu0 0.0
          %1498 = vmatpush.msra.mxu0 0.0
          %1499 = vmatpush.msra.mxu0 0.0
          %1500 = vmatpush.msra.mxu0 0.0
          %1501 = vmatpush.msra.mxu0 0.0
          %1502 = vmatpush.msra.mxu0 0.0
          %1503 = vmatpush.msra.mxu0 0.0
          %1504 = vmatpush.msra.mxu0 0.0
          %1505 = vmatpush.msra.mxu0 0.0
          %1506 = vmatpush.msra.mxu0 0.0
          %1507 = vmatpush.msra.mxu0 0.0
          %1508 = vmatpush.msra.mxu0 0.0
          %1509 = vmatpush.msra.mxu0 0.0
          %1510 = vmatpush.msra.mxu0 %v1487
          %1511 = vmatpush.msra.mxu0 %v1485
          %1512 = vmatmul.f32.gmra.mxu0 %v1491
          %v1513 = vpop.f32.mrf.mxu0
          %v1514 = vadd.f32 0.0, %v1513
          %1515 = vmatmul.f32.gmra.mxu0 %v1494
          %v1516 = vpop.f32.mrf.mxu0
          %v1517 = vadd.f32 0.0, %v1516
          %1518 = vdwg.mxu0
          %v1519 = vadd.f32 %v1482, %v1514
          %v1520 = vadd.f32 %v1483, %v1517
          %1521 = vst.msk [vmem:[%s1469] sm:$0xff] %vm788, %v1519
          %1522 = vst.msk [vmem:[%s1469 + $0x8] sm:$0xff] %vm788, %v1520
          %1523 = vst.msk [vmem:[%s1421] sm:$0xff] %vm871, %v1430
          %1524 = vst.msk [vmem:[%s1421 + $0x8] sm:$0xff] %vm871, %v1431
          %v1525 = vld [vmem:[#allocation2] sm:$0xff]
          %v1526 = vld [vmem:[#allocation2 + $0x8] sm:$0xff]
          %1529 = vrot.lane.b32.xlu0 %v1525, 108
          %v1530 = vpop.permute.xlu0 %1529
          %1531 = vrot.lane.b32.xlu0 %v1526, 108
          %v1532 = vpop.permute.xlu0 %1531
          %1533 = vrot.lane.b32.xlu0 %v769, 108
          %v1534 = vpop.permute.xlu0 %1533
          %1535 = vrot.lane.b32.xlu0 %v772, 108
          %v1536 = vpop.permute.xlu0 %1535
          %v1537 = vsel %vm788, %v1530, 0
          %v1539 = vsel %vm788, %v1532, 0
          %v1541 = vsel %vm788, %v1534, 0
          %v1543 = vsel %vm788, %v1536, 0
          %1545 = vmatpush.xpose.msra.mxu0 0.0
          %1546 = vmatpush.xpose.msra.mxu0 0.0
          %1547 = vmatpush.xpose.msra.mxu0 0.0
          %1548 = vmatpush.xpose.msra.mxu0 0.0
          %1549 = vmatpush.xpose.msra.mxu0 0.0
          %1550 = vmatpush.xpose.msra.mxu0 0.0
          %1551 = vmatpush.xpose.msra.mxu0 0.0
          %1552 = vmatpush.xpose.msra.mxu0 0.0
          %1553 = vmatpush.xpose.msra.mxu0 0.0
          %1554 = vmatpush.xpose.msra.mxu0 0.0
          %1555 = vmatpush.xpose.msra.mxu0 0.0
          %1556 = vmatpush.xpose.msra.mxu0 0.0
          %1557 = vmatpush.xpose.msra.mxu0 0.0
          %1558 = vmatpush.xpose.msra.mxu0 0.0
          %1559 = vmatpush.xpose.msra.mxu0 %v1543
          %1560 = vmatpush.xpose.msra.mxu0 %v1541
          %1561 = vmatmul.f32.gmra.mxu0 %v1537
          %v1562 = vpop.f32.mrf.mxu0
          %v1563 = vadd.f32 0.0, %v1562
          %1564 = vmatmul.f32.gmra.mxu0 %v1539
          %v1565 = vpop.f32.mrf.mxu0
          %v1566 = vadd.f32 0.0, %v1565
          %1567 = vdwg.mxu0
          %v1568 = vsel %vm784, %v1563, -1e+30
          %v1569 = vsel %vm785, %v1566, -1e+30
          %s1570 = scalar_lea.vmem [#allocation3], 80
          %v1571 = vld [vmem:[%s1570] sm:$0xff]
          %v1572 = vld [vmem:[%s1570 + $0x8] sm:$0xff]
          %v1573 = vsel %vm828, %v1568, -inf
          %1574 = vmax.xlane.f32.xlu0 %v1573
          %v1575 = vpop.xlane.xlu0 %1574
          %v1576 = vsel %vm828, %v1569, -inf
          %1577 = vmax.xlane.f32.xlu0 %v1576
          %v1578 = vpop.xlane.xlu0 %1577
          %v1579 = vmax.f32 %v1571, %v1575
          %v1580 = vmax.f32 %v1572, %v1578
          %v1581 = vsub.f32 %v1571, %v1579
          %v1582 = vsub.f32 %v1572, %v1580
          %v1583 = vmul.f32 %v1581, 1.442695
          %v1584 = vpow.pop %v1583
          %v1585 = vmul.f32 %v1582, 1.442695
          %v1586 = vpow.pop %v1585
          %1588 = vset.pattern.permute.xlu0 0
          %1589 = vperm.xlu0 %1588, %v1579
          %v1590 = vpop.permute.xlu0 %1589
          %1593 = vset.pattern.permute.xlu0 0
          %1594 = vperm.xlu0 %1593, %v1580
          %v1595 = vpop.permute.xlu0 %1594
          %v1597 = vsub.f32 %v1568, %v1590
          %v1598 = vsub.f32 %v1569, %v1595
          %v1599 = vmul.f32 %v1597, 1.442695
          %v1600 = vpow.pop %v1599
          %v1601 = vmul.f32 %v1598, 1.442695
          %v1602 = vpow.pop %v1601
          %s1603 = scalar_lea.vmem [#allocation4], 80
          %v1604 = vld [vmem:[%s1603] sm:$0xff]
          %v1605 = vld [vmem:[%s1603 + $0x8] sm:$0xff]
          %v1606 = vmul.f32 %v1584, %v1604
          %v1607 = vmul.f32 %v1586, %v1605
          %v1608 = vsel %vm828, %v1600, 0.0
          %1609 = vadd.xlane.f32.xlu0 %v1608
          %v1610 = vpop.xlane.xlu0 %1609
          %v1611 = vsel %vm828, %v1602, 0.0
          %1612 = vadd.xlane.f32.xlu0 %v1611
          %v1613 = vpop.xlane.xlu0 %1612
          %v1614 = vadd.f32 %v1606, %v1610
          %v1615 = vadd.f32 %v1607, %v1613
          %1616 = vst.msk [vmem:[%s1603] sm:$0xff] %vm871, %v1614
          %1617 = vst.msk [vmem:[%s1603 + $0x8] sm:$0xff] %vm871, %v1615
          %s1618 = scalar_lea.vmem [#allocation5], 80
          %v1619 = vld [vmem:[%s1618] sm:$0xff]
          %v1620 = vld [vmem:[%s1618 + $0x8] sm:$0xff]
          %1622 = vset.pattern.permute.xlu0 0
          %1623 = vperm.xlu0 %1622, %v1584
          %v1624 = vpop.permute.xlu0 %1623
          %1627 = vset.pattern.permute.xlu0 0
          %1628 = vperm.xlu0 %1627, %v1586
          %v1629 = vpop.permute.xlu0 %1628
          %v1631 = vmul.f32 %v1624, %v1619
          %v1632 = vmul.f32 %v1629, %v1620
          %1633 = vrot.lane.b32.xlu0 %v769, 76
          %v1634 = vpop.permute.xlu0 %1633
          %1635 = vrot.lane.b32.xlu0 %v772, 76
          %v1636 = vpop.permute.xlu0 %1635
          %v1640 = vsel %vm828, %v1600, 0
          %v1643 = vsel %vm828, %v1602, 0
          %1645 = vmatpush.msra.mxu0 0.0
          %1646 = vmatpush.msra.mxu0 0.0
          %1647 = vmatpush.msra.mxu0 0.0
          %1648 = vmatpush.msra.mxu0 0.0
          %1649 = vmatpush.msra.mxu0 0.0
          %1650 = vmatpush.msra.mxu0 0.0
          %1651 = vmatpush.msra.mxu0 0.0
          %1652 = vmatpush.msra.mxu0 0.0
          %1653 = vmatpush.msra.mxu0 0.0
          %1654 = vmatpush.msra.mxu0 0.0
          %1655 = vmatpush.msra.mxu0 0.0
          %1656 = vmatpush.msra.mxu0 0.0
          %1657 = vmatpush.msra.mxu0 0.0
          %1658 = vmatpush.msra.mxu0 0.0
          %1659 = vmatpush.msra.mxu0 %v1636
          %1660 = vmatpush.msra.mxu0 %v1634
          %1661 = vmatmul.f32.gmra.mxu0 %v1640
          %v1662 = vpop.f32.mrf.mxu0
          %v1663 = vadd.f32 0.0, %v1662
          %1664 = vmatmul.f32.gmra.mxu0 %v1643
          %v1665 = vpop.f32.mrf.mxu0
          %v1666 = vadd.f32 0.0, %v1665
          %1667 = vdwg.mxu0
          %v1668 = vadd.f32 %v1631, %v1663
          %v1669 = vadd.f32 %v1632, %v1666
          %1670 = vst.msk [vmem:[%s1618] sm:$0xff] %vm788, %v1668
          %1671 = vst.msk [vmem:[%s1618 + $0x8] sm:$0xff] %vm788, %v1669
          %1672 = vst.msk [vmem:[%s1570] sm:$0xff] %vm871, %v1579
          %1673 = vst.msk [vmem:[%s1570 + $0x8] sm:$0xff] %vm871, %v1580
          %v1674 = vld [vmem:[#allocation2] sm:$0xff]
          %v1675 = vld [vmem:[#allocation2 + $0x8] sm:$0xff]
          %1678 = vrot.lane.b32.xlu0 %v1674, 104
          %v1679 = vpop.permute.xlu0 %1678
          %1680 = vrot.lane.b32.xlu0 %v1675, 104
          %v1681 = vpop.permute.xlu0 %1680
          %1682 = vrot.lane.b32.xlu0 %v769, 104
          %v1683 = vpop.permute.xlu0 %1682
          %1684 = vrot.lane.b32.xlu0 %v772, 104
          %v1685 = vpop.permute.xlu0 %1684
          %v1686 = vsel %vm788, %v1679, 0
          %v1688 = vsel %vm788, %v1681, 0
          %v1690 = vsel %vm788, %v1683, 0
          %v1692 = vsel %vm788, %v1685, 0
          %1694 = vmatpush.xpose.msra.mxu0 0.0
          %1695 = vmatpush.xpose.msra.mxu0 0.0
          %1696 = vmatpush.xpose.msra.mxu0 0.0
          %1697 = vmatpush.xpose.msra.mxu0 0.0
          %1698 = vmatpush.xpose.msra.mxu0 0.0
          %1699 = vmatpush.xpose.msra.mxu0 0.0
          %1700 = vmatpush.xpose.msra.mxu0 0.0
          %1701 = vmatpush.xpose.msra.mxu0 0.0
          %1702 = vmatpush.xpose.msra.mxu0 0.0
          %1703 = vmatpush.xpose.msra.mxu0 0.0
          %1704 = vmatpush.xpose.msra.mxu0 0.0
          %1705 = vmatpush.xpose.msra.mxu0 0.0
          %1706 = vmatpush.xpose.msra.mxu0 0.0
          %1707 = vmatpush.xpose.msra.mxu0 0.0
          %1708 = vmatpush.xpose.msra.mxu0 %v1692
          %1709 = vmatpush.xpose.msra.mxu0 %v1690
          %1710 = vmatmul.f32.gmra.mxu0 %v1686
          %v1711 = vpop.f32.mrf.mxu0
          %v1712 = vadd.f32 0.0, %v1711
          %1713 = vmatmul.f32.gmra.mxu0 %v1688
          %v1714 = vpop.f32.mrf.mxu0
          %v1715 = vadd.f32 0.0, %v1714
          %1716 = vdwg.mxu0
          %v1717 = vsel %vm784, %v1712, -1e+30
          %v1718 = vsel %vm785, %v1715, -1e+30
          %s1719 = scalar_lea.vmem [#allocation3], 96
          %v1720 = vld [vmem:[%s1719] sm:$0xff]
          %v1721 = vld [vmem:[%s1719 + $0x8] sm:$0xff]
          %v1722 = vsel %vm828, %v1717, -inf
          %1723 = vmax.xlane.f32.xlu0 %v1722
          %v1724 = vpop.xlane.xlu0 %1723
          %v1725 = vsel %vm828, %v1718, -inf
          %1726 = vmax.xlane.f32.xlu0 %v1725
          %v1727 = vpop.xlane.xlu0 %1726
          %v1728 = vmax.f32 %v1720, %v1724
          %v1729 = vmax.f32 %v1721, %v1727
          %v1730 = vsub.f32 %v1720, %v1728
          %v1731 = vsub.f32 %v1721, %v1729
          %v1732 = vmul.f32 %v1730, 1.442695
          %v1733 = vpow.pop %v1732
          %v1734 = vmul.f32 %v1731, 1.442695
          %v1735 = vpow.pop %v1734
          %1737 = vset.pattern.permute.xlu0 0
          %1738 = vperm.xlu0 %1737, %v1728
          %v1739 = vpop.permute.xlu0 %1738
          %1742 = vset.pattern.permute.xlu0 0
          %1743 = vperm.xlu0 %1742, %v1729
          %v1744 = vpop.permute.xlu0 %1743
          %v1746 = vsub.f32 %v1717, %v1739
          %v1747 = vsub.f32 %v1718, %v1744
          %v1748 = vmul.f32 %v1746, 1.442695
          %v1749 = vpow.pop %v1748
          %v1750 = vmul.f32 %v1747, 1.442695
          %v1751 = vpow.pop %v1750
          %s1752 = scalar_lea.vmem [#allocation4], 96
          %v1753 = vld [vmem:[%s1752] sm:$0xff]
          %v1754 = vld [vmem:[%s1752 + $0x8] sm:$0xff]
          %v1755 = vmul.f32 %v1733, %v1753
          %v1756 = vmul.f32 %v1735, %v1754
          %v1757 = vsel %vm828, %v1749, 0.0
          %1758 = vadd.xlane.f32.xlu0 %v1757
          %v1759 = vpop.xlane.xlu0 %1758
          %v1760 = vsel %vm828, %v1751, 0.0
          %1761 = vadd.xlane.f32.xlu0 %v1760
          %v1762 = vpop.xlane.xlu0 %1761
          %v1763 = vadd.f32 %v1755, %v1759
          %v1764 = vadd.f32 %v1756, %v1762
          %1765 = vst.msk [vmem:[%s1752] sm:$0xff] %vm871, %v1763
          %1766 = vst.msk [vmem:[%s1752 + $0x8] sm:$0xff] %vm871, %v1764
          %s1767 = scalar_lea.vmem [#allocation5], 96
          %v1768 = vld [vmem:[%s1767] sm:$0xff]
          %v1769 = vld [vmem:[%s1767 + $0x8] sm:$0xff]
          %1771 = vset.pattern.permute.xlu0 0
          %1772 = vperm.xlu0 %1771, %v1733
          %v1773 = vpop.permute.xlu0 %1772
          %1776 = vset.pattern.permute.xlu0 0
          %1777 = vperm.xlu0 %1776, %v1735
          %v1778 = vpop.permute.xlu0 %1777
          %v1780 = vmul.f32 %v1773, %v1768
          %v1781 = vmul.f32 %v1778, %v1769
          %1782 = vrot.lane.b32.xlu0 %v769, 72
          %v1783 = vpop.permute.xlu0 %1782
          %1784 = vrot.lane.b32.xlu0 %v772, 72
          %v1785 = vpop.permute.xlu0 %1784
          %v1789 = vsel %vm828, %v1749, 0
          %v1792 = vsel %vm828, %v1751, 0
          %1794 = vmatpush.msra.mxu0 0.0
          %1795 = vmatpush.msra.mxu0 0.0
          %1796 = vmatpush.msra.mxu0 0.0
          %1797 = vmatpush.msra.mxu0 0.0
          %1798 = vmatpush.msra.mxu0 0.0
          %1799 = vmatpush.msra.mxu0 0.0
          %1800 = vmatpush.msra.mxu0 0.0
          %1801 = vmatpush.msra.mxu0 0.0
          %1802 = vmatpush.msra.mxu0 0.0
          %1803 = vmatpush.msra.mxu0 0.0
          %1804 = vmatpush.msra.mxu0 0.0
          %1805 = vmatpush.msra.mxu0 0.0
          %1806 = vmatpush.msra.mxu0 0.0
          %1807 = vmatpush.msra.mxu0 0.0
          %1808 = vmatpush.msra.mxu0 %v1785
          %1809 = vmatpush.msra.mxu0 %v1783
          %1810 = vmatmul.f32.gmra.mxu0 %v1789
          %v1811 = vpop.f32.mrf.mxu0
          %v1812 = vadd.f32 0.0, %v1811
          %1813 = vmatmul.f32.gmra.mxu0 %v1792
          %v1814 = vpop.f32.mrf.mxu0
          %v1815 = vadd.f32 0.0, %v1814
          %1816 = vdwg.mxu0
          %v1817 = vadd.f32 %v1780, %v1812
          %v1818 = vadd.f32 %v1781, %v1815
          %1819 = vst.msk [vmem:[%s1767] sm:$0xff] %vm788, %v1817
          %1820 = vst.msk [vmem:[%s1767 + $0x8] sm:$0xff] %vm788, %v1818
          %1821 = vst.msk [vmem:[%s1719] sm:$0xff] %vm871, %v1728
          %1822 = vst.msk [vmem:[%s1719 + $0x8] sm:$0xff] %vm871, %v1729
          %v1823 = vld [vmem:[#allocation2] sm:$0xff]
          %v1824 = vld [vmem:[#allocation2 + $0x8] sm:$0xff]
          %1827 = vrot.lane.b32.xlu0 %v1823, 100
          %v1828 = vpop.permute.xlu0 %1827
          %1829 = vrot.lane.b32.xlu0 %v1824, 100
          %v1830 = vpop.permute.xlu0 %1829
          %1831 = vrot.lane.b32.xlu0 %v769, 100
          %v1832 = vpop.permute.xlu0 %1831
          %1833 = vrot.lane.b32.xlu0 %v772, 100
          %v1834 = vpop.permute.xlu0 %1833
          %v1835 = vsel %vm788, %v1828, 0
          %v1837 = vsel %vm788, %v1830, 0
          %v1839 = vsel %vm788, %v1832, 0
          %v1841 = vsel %vm788, %v1834, 0
          %1843 = vmatpush.xpose.msra.mxu0 0.0
          %1844 = vmatpush.xpose.msra.mxu0 0.0
          %1845 = vmatpush.xpose.msra.mxu0 0.0
          %1846 = vmatpush.xpose.msra.mxu0 0.0
          %1847 = vmatpush.xpose.msra.mxu0 0.0
          %1848 = vmatpush.xpose.msra.mxu0 0.0
          %1849 = vmatpush.xpose.msra.mxu0 0.0
          %1850 = vmatpush.xpose.msra.mxu0 0.0
          %1851 = vmatpush.xpose.msra.mxu0 0.0
          %1852 = vmatpush.xpose.msra.mxu0 0.0
          %1853 = vmatpush.xpose.msra.mxu0 0.0
          %1854 = vmatpush.xpose.msra.mxu0 0.0
          %1855 = vmatpush.xpose.msra.mxu0 0.0
          %1856 = vmatpush.xpose.msra.mxu0 0.0
          %1857 = vmatpush.xpose.msra.mxu0 %v1841
          %1858 = vmatpush.xpose.msra.mxu0 %v1839
          %1859 = vmatmul.f32.gmra.mxu0 %v1835
          %v1860 = vpop.f32.mrf.mxu0
          %v1861 = vadd.f32 0.0, %v1860
          %1862 = vmatmul.f32.gmra.mxu0 %v1837
          %v1863 = vpop.f32.mrf.mxu0
          %v1864 = vadd.f32 0.0, %v1863
          %1865 = vdwg.mxu0
          %v1866 = vsel %vm784, %v1861, -1e+30
          %v1867 = vsel %vm785, %v1864, -1e+30
          %s1868 = scalar_lea.vmem [#allocation3], 112
          %v1869 = vld [vmem:[%s1868] sm:$0xff]
          %v1870 = vld [vmem:[%s1868 + $0x8] sm:$0xff]
          %v1871 = vsel %vm828, %v1866, -inf
          %1872 = vmax.xlane.f32.xlu0 %v1871
          %v1873 = vpop.xlane.xlu0 %1872
          %v1874 = vsel %vm828, %v1867, -inf
          %1875 = vmax.xlane.f32.xlu0 %v1874
          %v1876 = vpop.xlane.xlu0 %1875
          %v1877 = vmax.f32 %v1869, %v1873
          %v1878 = vmax.f32 %v1870, %v1876
          %v1879 = vsub.f32 %v1869, %v1877
          %v1880 = vsub.f32 %v1870, %v1878
          %v1881 = vmul.f32 %v1879, 1.442695
          %v1882 = vpow.pop %v1881
          %v1883 = vmul.f32 %v1880, 1.442695
          %v1884 = vpow.pop %v1883
          %1886 = vset.pattern.permute.xlu0 0
          %1887 = vperm.xlu0 %1886, %v1877
          %v1888 = vpop.permute.xlu0 %1887
          %1891 = vset.pattern.permute.xlu0 0
          %1892 = vperm.xlu0 %1891, %v1878
          %v1893 = vpop.permute.xlu0 %1892
          %v1895 = vsub.f32 %v1866, %v1888
          %v1896 = vsub.f32 %v1867, %v1893
          %v1897 = vmul.f32 %v1895, 1.442695
          %v1898 = vpow.pop %v1897
          %v1899 = vmul.f32 %v1896, 1.442695
          %v1900 = vpow.pop %v1899
          %s1901 = scalar_lea.vmem [#allocation4], 112
          %v1902 = vld [vmem:[%s1901] sm:$0xff]
          %v1903 = vld [vmem:[%s1901 + $0x8] sm:$0xff]
          %v1904 = vmul.f32 %v1882, %v1902
          %v1905 = vmul.f32 %v1884, %v1903
          %v1906 = vsel %vm828, %v1898, 0.0
          %1907 = vadd.xlane.f32.xlu0 %v1906
          %v1908 = vpop.xlane.xlu0 %1907
          %v1909 = vsel %vm828, %v1900, 0.0
          %1910 = vadd.xlane.f32.xlu0 %v1909
          %v1911 = vpop.xlane.xlu0 %1910
          %v1912 = vadd.f32 %v1904, %v1908
          %v1913 = vadd.f32 %v1905, %v1911
          %1914 = vst.msk [vmem:[%s1901] sm:$0xff] %vm871, %v1912
          %1915 = vst.msk [vmem:[%s1901 + $0x8] sm:$0xff] %vm871, %v1913
          %s1916 = scalar_lea.vmem [#allocation5], 112
          %v1917 = vld [vmem:[%s1916] sm:$0xff]
          %v1918 = vld [vmem:[%s1916 + $0x8] sm:$0xff]
          %1920 = vset.pattern.permute.xlu0 0
          %1921 = vperm.xlu0 %1920, %v1882
          %v1922 = vpop.permute.xlu0 %1921
          %1925 = vset.pattern.permute.xlu0 0
          %1926 = vperm.xlu0 %1925, %v1884
          %v1927 = vpop.permute.xlu0 %1926
          %v1929 = vmul.f32 %v1922, %v1917
          %v1930 = vmul.f32 %v1927, %v1918
          %1931 = vrot.lane.b32.xlu0 %v769, 68
          %v1932 = vpop.permute.xlu0 %1931
          %1933 = vrot.lane.b32.xlu0 %v772, 68
          %v1934 = vpop.permute.xlu0 %1933
          %v1938 = vsel %vm828, %v1898, 0
          %v1941 = vsel %vm828, %v1900, 0
          %1943 = vmatpush.msra.mxu0 0.0
          %1944 = vmatpush.msra.mxu0 0.0
          %1945 = vmatpush.msra.mxu0 0.0
          %1946 = vmatpush.msra.mxu0 0.0
          %1947 = vmatpush.msra.mxu0 0.0
          %1948 = vmatpush.msra.mxu0 0.0
          %1949 = vmatpush.msra.mxu0 0.0
          %1950 = vmatpush.msra.mxu0 0.0
          %1951 = vmatpush.msra.mxu0 0.0
          %1952 = vmatpush.msra.mxu0 0.0
          %1953 = vmatpush.msra.mxu0 0.0
          %1954 = vmatpush.msra.mxu0 0.0
          %1955 = vmatpush.msra.mxu0 0.0
          %1956 = vmatpush.msra.mxu0 0.0
          %1957 = vmatpush.msra.mxu0 %v1934
          %1958 = vmatpush.msra.mxu0 %v1932
          %1959 = vmatmul.f32.gmra.mxu0 %v1938
          %v1960 = vpop.f32.mrf.mxu0
          %v1961 = vadd.f32 0.0, %v1960
          %1962 = vmatmul.f32.gmra.mxu0 %v1941
          %v1963 = vpop.f32.mrf.mxu0
          %v1964 = vadd.f32 0.0, %v1963
          %1965 = vdwg.mxu0
          %v1966 = vadd.f32 %v1929, %v1961
          %v1967 = vadd.f32 %v1930, %v1964
          %1968 = vst.msk [vmem:[%s1916] sm:$0xff] %vm788, %v1966
          %1969 = vst.msk [vmem:[%s1916 + $0x8] sm:$0xff] %vm788, %v1967
          %1970 = vst.msk [vmem:[%s1868] sm:$0xff] %vm871, %v1877
          %1971 = vst.msk [vmem:[%s1868 + $0x8] sm:$0xff] %vm871, %v1878
        $region88: #{tpu_custom_call.1} parent=59 // pred_fallthru
          _
        // Predicated region
        $region89: #{tpu_custom_call.1} parent=59 // pred_check
          %p1972 = pneg %p503
        $region90: #{tpu_custom_call.1} parent=59 // pred_check_branch
          %1974 = sbr.rel (%p1972) target = $region92
        $region91: #{tpu_custom_call.1} parent=59 // pred_region
          %v1975 = vld [vmem:[#allocation5] sm:$0xff]
          %v1976 = vld [vmem:[#allocation5 + $0x8] sm:$0xff]
          %v1977 = vld [vmem:[#allocation4] sm:$0xff]
          %v1978 = vld [vmem:[#allocation4 + $0x8] sm:$0xff]
          %v1979 = vrcp.pop %v1977
          %v1980 = vmul.f32 %v1977, %v1979
          %v1981 = vsub.f32 1.0, %v1980
          %v1982 = vmul.f32 %v1979, %v1981
          %v1983 = vadd.f32 %v1979, %v1982
          %vm1984 = vweird.f32 %v1977
          %vm1985 = vweird.f32 %v1979
          %vm1986 = vmor %vm1984, %vm1985
          %v1987 = vsel %vm1986, %v1979, %v1983
          %v1988 = vand.u32 2147483647, %v1977
          %vm1989 = vcmp.eq.f32.partialorder %v1988, 8.507059e+37
          %v1990 = vand.u32 %v1977, 2147483648
          %v1991 = vor.u32 1.1754944e-38, %v1990
          %v1992 = vsel %vm1989, %v1991, %v1987
          %v1993 = vmul.f32 1.0, %v1992
          %v1994 = vrcp.pop %v1978
          %v1995 = vmul.f32 %v1978, %v1994
          %v1996 = vsub.f32 1.0, %v1995
          %v1997 = vmul.f32 %v1994, %v1996
          %v1998 = vadd.f32 %v1994, %v1997
          %vm1999 = vweird.f32 %v1978
          %vm2000 = vweird.f32 %v1994
          %vm2001 = vmor %vm1999, %vm2000
          %v2002 = vsel %vm2001, %v1994, %v1998
          %v2003 = vand.u32 2147483647, %v1978
          %vm2004 = vcmp.eq.f32.partialorder %v2003, 8.507059e+37
          %v2005 = vand.u32 %v1978, 2147483648
          %v2006 = vor.u32 1.1754944e-38, %v2005
          %v2007 = vsel %vm2004, %v2006, %v2002
          %v2008 = vmul.f32 1.0, %v2007
          %2010 = vset.pattern.permute.xlu0 0
          %2011 = vperm.xlu0 %2010, %v1993
          %v2012 = vpop.permute.xlu0 %2011
          %2015 = vset.pattern.permute.xlu0 0
          %2016 = vperm.xlu0 %2015, %v2008
          %v2017 = vpop.permute.xlu0 %2016
          %v2019 = vmul.f32 %v1975, %v2012
          %v2020 = vmul.f32 %v1976, %v2017
          %vm2021 = vcmask 31744
          %2022 = vst.msk [vmem:[#allocation6] sm:$0xff] %vm2021, %v2019
          %2023 = vst.msk [vmem:[#allocation6 + $0x8] sm:$0xff] %vm2021, %v2020
          %s2024 = scalar_lea.vmem [#allocation5], 16
          %v2025 = vld [vmem:[%s2024] sm:$0xff]
          %v2026 = vld [vmem:[%s2024 + $0x8] sm:$0xff]
          %s2027 = scalar_lea.vmem [#allocation4], 16
          %v2028 = vld [vmem:[%s2027] sm:$0xff]
          %v2029 = vld [vmem:[%s2027 + $0x8] sm:$0xff]
          %v2030 = vrcp.pop %v2028
          %v2031 = vmul.f32 %v2028, %v2030
          %v2032 = vsub.f32 1.0, %v2031
          %v2033 = vmul.f32 %v2030, %v2032
          %v2034 = vadd.f32 %v2030, %v2033
          %vm2035 = vweird.f32 %v2028
          %vm2036 = vweird.f32 %v2030
          %vm2037 = vmor %vm2035, %vm2036
          %v2038 = vsel %vm2037, %v2030, %v2034
          %v2039 = vand.u32 2147483647, %v2028
          %vm2040 = vcmp.eq.f32.partialorder %v2039, 8.507059e+37
          %v2041 = vand.u32 %v2028, 2147483648
          %v2042 = vor.u32 1.1754944e-38, %v2041
          %v2043 = vsel %vm2040, %v2042, %v2038
          %v2044 = vmul.f32 1.0, %v2043
          %v2045 = vrcp.pop %v2029
          %v2046 = vmul.f32 %v2029, %v2045
          %v2047 = vsub.f32 1.0, %v2046
          %v2048 = vmul.f32 %v2045, %v2047
          %v2049 = vadd.f32 %v2045, %v2048
          %vm2050 = vweird.f32 %v2029
          %vm2051 = vweird.f32 %v2045
          %vm2052 = vmor %vm2050, %vm2051
          %v2053 = vsel %vm2052, %v2045, %v2049
          %v2054 = vand.u32 2147483647, %v2029
          %vm2055 = vcmp.eq.f32.partialorder %v2054, 8.507059e+37
          %v2056 = vand.u32 %v2029, 2147483648
          %v2057 = vor.u32 1.1754944e-38, %v2056
          %v2058 = vsel %vm2055, %v2057, %v2053
          %v2059 = vmul.f32 1.0, %v2058
          %2061 = vset.pattern.permute.xlu0 0
          %2062 = vperm.xlu0 %2061, %v2044
          %v2063 = vpop.permute.xlu0 %2062
          %2066 = vset.pattern.permute.xlu0 0
          %2067 = vperm.xlu0 %2066, %v2059
          %v2068 = vpop.permute.xlu0 %2067
          %v2070 = vmul.f32 %v2025, %v2063
          %v2071 = vmul.f32 %v2026, %v2068
          %2074 = vrot.lane.b32.xlu0 %v2070, 4
          %v2075 = vpop.permute.xlu0 %2074
          %2076 = vrot.lane.b32.xlu0 %v2071, 4
          %v2077 = vpop.permute.xlu0 %2076
          %vm2080 = vcmask 64544
          %2081 = vst.msk [vmem:[#allocation6] sm:$0xff] %vm2080, %v2075
          %2082 = vst.msk [vmem:[#allocation6 + $0x8] sm:$0xff] %vm2080, %v2077
          %s2083 = scalar_lea.vmem [#allocation5], 32
          %v2084 = vld [vmem:[%s2083] sm:$0xff]
          %v2085 = vld [vmem:[%s2083 + $0x8] sm:$0xff]
          %s2086 = scalar_lea.vmem [#allocation4], 32
          %v2087 = vld [vmem:[%s2086] sm:$0xff]
          %v2088 = vld [vmem:[%s2086 + $0x8] sm:$0xff]
          %v2089 = vrcp.pop %v2087
          %v2090 = vmul.f32 %v2087, %v2089
          %v2091 = vsub.f32 1.0, %v2090
          %v2092 = vmul.f32 %v2089, %v2091
          %v2093 = vadd.f32 %v2089, %v2092
          %vm2094 = vweird.f32 %v2087
          %vm2095 = vweird.f32 %v2089
          %vm2096 = vmor %vm2094, %vm2095
          %v2097 = vsel %vm2096, %v2089, %v2093
          %v2098 = vand.u32 2147483647, %v2087
          %vm2099 = vcmp.eq.f32.partialorder %v2098, 8.507059e+37
          %v2100 = vand.u32 %v2087, 2147483648
          %v2101 = vor.u32 1.1754944e-38, %v2100
          %v2102 = vsel %vm2099, %v2101, %v2097
          %v2103 = vmul.f32 1.0, %v2102
          %v2104 = vrcp.pop %v2088
          %v2105 = vmul.f32 %v2088, %v2104
          %v2106 = vsub.f32 1.0, %v2105
          %v2107 = vmul.f32 %v2104, %v2106
          %v2108 = vadd.f32 %v2104, %v2107
          %vm2109 = vweird.f32 %v2088
          %vm2110 = vweird.f32 %v2104
          %vm2111 = vmor %vm2109, %vm2110
          %v2112 = vsel %vm2111, %v2104, %v2108
          %v2113 = vand.u32 2147483647, %v2088
          %vm2114 = vcmp.eq.f32.partialorder %v2113, 8.507059e+37
          %v2115 = vand.u32 %v2088, 2147483648
          %v2116 = vor.u32 1.1754944e-38, %v2115
          %v2117 = vsel %vm2114, %v2116, %v2112
          %v2118 = vmul.f32 1.0, %v2117
          %2120 = vset.pattern.permute.xlu0 0
          %2121 = vperm.xlu0 %2120, %v2103
          %v2122 = vpop.permute.xlu0 %2121
          %2125 = vset.pattern.permute.xlu0 0
          %2126 = vperm.xlu0 %2125, %v2118
          %v2127 = vpop.permute.xlu0 %2126
          %v2129 = vmul.f32 %v2084, %v2122
          %v2130 = vmul.f32 %v2085, %v2127
          %2133 = vrot.lane.b32.xlu0 %v2129, 8
          %v2134 = vpop.permute.xlu0 %2133
          %2135 = vrot.lane.b32.xlu0 %v2130, 8
          %v2136 = vpop.permute.xlu0 %2135
          %vm2139 = vcmask 97344
          %2140 = vst.msk [vmem:[#allocation6] sm:$0xff] %vm2139, %v2134
          %2141 = vst.msk [vmem:[#allocation6 + $0x8] sm:$0xff] %vm2139, %v2136
          %s2142 = scalar_lea.vmem [#allocation5], 48
          %v2143 = vld [vmem:[%s2142] sm:$0xff]
          %v2144 = vld [vmem:[%s2142 + $0x8] sm:$0xff]
          %s2145 = scalar_lea.vmem [#allocation4], 48
          %v2146 = vld [vmem:[%s2145] sm:$0xff]
          %v2147 = vld [vmem:[%s2145 + $0x8] sm:$0xff]
          %v2148 = vrcp.pop %v2146
          %v2149 = vmul.f32 %v2146, %v2148
          %v2150 = vsub.f32 1.0, %v2149
          %v2151 = vmul.f32 %v2148, %v2150
          %v2152 = vadd.f32 %v2148, %v2151
          %vm2153 = vweird.f32 %v2146
          %vm2154 = vweird.f32 %v2148
          %vm2155 = vmor %vm2153, %vm2154
          %v2156 = vsel %vm2155, %v2148, %v2152
          %v2157 = vand.u32 2147483647, %v2146
          %vm2158 = vcmp.eq.f32.partialorder %v2157, 8.507059e+37
          %v2159 = vand.u32 %v2146, 2147483648
          %v2160 = vor.u32 1.1754944e-38, %v2159
          %v2161 = vsel %vm2158, %v2160, %v2156
          %v2162 = vmul.f32 1.0, %v2161
          %v2163 = vrcp.pop %v2147
          %v2164 = vmul.f32 %v2147, %v2163
          %v2165 = vsub.f32 1.0, %v2164
          %v2166 = vmul.f32 %v2163, %v2165
          %v2167 = vadd.f32 %v2163, %v2166
          %vm2168 = vweird.f32 %v2147
          %vm2169 = vweird.f32 %v2163
          %vm2170 = vmor %vm2168, %vm2169
          %v2171 = vsel %vm2170, %v2163, %v2167
          %v2172 = vand.u32 2147483647, %v2147
          %vm2173 = vcmp.eq.f32.partialorder %v2172, 8.507059e+37
          %v2174 = vand.u32 %v2147, 2147483648
          %v2175 = vor.u32 1.1754944e-38, %v2174
          %v2176 = vsel %vm2173, %v2175, %v2171
          %v2177 = vmul.f32 1.0, %v2176
          %2179 = vset.pattern.permute.xlu0 0
          %2180 = vperm.xlu0 %2179, %v2162
          %v2181 = vpop.permute.xlu0 %2180
          %2184 = vset.pattern.permute.xlu0 0
          %2185 = vperm.xlu0 %2184, %v2177
          %v2186 = vpop.permute.xlu0 %2185
          %v2188 = vmul.f32 %v2143, %v2181
          %v2189 = vmul.f32 %v2144, %v2186
          %2192 = vrot.lane.b32.xlu0 %v2188, 12
          %v2193 = vpop.permute.xlu0 %2192
          %2194 = vrot.lane.b32.xlu0 %v2189, 12
          %v2195 = vpop.permute.xlu0 %2194
          %vm2198 = vcmask 130144
          %2199 = vst.msk [vmem:[#allocation6] sm:$0xff] %vm2198, %v2193
          %2200 = vst.msk [vmem:[#allocation6 + $0x8] sm:$0xff] %vm2198, %v2195
          %s2201 = scalar_lea.vmem [#allocation5], 64
          %v2202 = vld [vmem:[%s2201] sm:$0xff]
          %v2203 = vld [vmem:[%s2201 + $0x8] sm:$0xff]
          %s2204 = scalar_lea.vmem [#allocation4], 64
          %v2205 = vld [vmem:[%s2204] sm:$0xff]
          %v2206 = vld [vmem:[%s2204 + $0x8] sm:$0xff]
          %v2207 = vrcp.pop %v2205
          %v2208 = vmul.f32 %v2205, %v2207
          %v2209 = vsub.f32 1.0, %v2208
          %v2210 = vmul.f32 %v2207, %v2209
          %v2211 = vadd.f32 %v2207, %v2210
          %vm2212 = vweird.f32 %v2205
          %vm2213 = vweird.f32 %v2207
          %vm2214 = vmor %vm2212, %vm2213
          %v2215 = vsel %vm2214, %v2207, %v2211
          %v2216 = vand.u32 2147483647, %v2205
          %vm2217 = vcmp.eq.f32.partialorder %v2216, 8.507059e+37
          %v2218 = vand.u32 %v2205, 2147483648
          %v2219 = vor.u32 1.1754944e-38, %v2218
          %v2220 = vsel %vm2217, %v2219, %v2215
          %v2221 = vmul.f32 1.0, %v2220
          %v2222 = vrcp.pop %v2206
          %v2223 = vmul.f32 %v2206, %v2222
          %v2224 = vsub.f32 1.0, %v2223
          %v2225 = vmul.f32 %v2222, %v2224
          %v2226 = vadd.f32 %v2222, %v2225
          %vm2227 = vweird.f32 %v2206
          %vm2228 = vweird.f32 %v2222
          %vm2229 = vmor %vm2227, %vm2228
          %v2230 = vsel %vm2229, %v2222, %v2226
          %v2231 = vand.u32 2147483647, %v2206
          %vm2232 = vcmp.eq.f32.partialorder %v2231, 8.507059e+37
          %v2233 = vand.u32 %v2206, 2147483648
          %v2234 = vor.u32 1.1754944e-38, %v2233
          %v2235 = vsel %vm2232, %v2234, %v2230
          %v2236 = vmul.f32 1.0, %v2235
          %2238 = vset.pattern.permute.xlu0 0
          %2239 = vperm.xlu0 %2238, %v2221
          %v2240 = vpop.permute.xlu0 %2239
          %2243 = vset.pattern.permute.xlu0 0
          %2244 = vperm.xlu0 %2243, %v2236
          %v2245 = vpop.permute.xlu0 %2244
          %v2247 = vmul.f32 %v2202, %v2240
          %v2248 = vmul.f32 %v2203, %v2245
          %2251 = vrot.lane.b32.xlu0 %v2247, 16
          %v2252 = vpop.permute.xlu0 %2251
          %2253 = vrot.lane.b32.xlu0 %v2248, 16
          %v2254 = vpop.permute.xlu0 %2253
          %vm2257 = vcmask 162944
          %2258 = vst.msk [vmem:[#allocation6] sm:$0xff] %vm2257, %v2252
          %2259 = vst.msk [vmem:[#allocation6 + $0x8] sm:$0xff] %vm2257, %v2254
          %s2260 = scalar_lea.vmem [#allocation5], 80
          %v2261 = vld [vmem:[%s2260] sm:$0xff]
          %v2262 = vld [vmem:[%s2260 + $0x8] sm:$0xff]
          %s2263 = scalar_lea.vmem [#allocation4], 80
          %v2264 = vld [vmem:[%s2263] sm:$0xff]
          %v2265 = vld [vmem:[%s2263 + $0x8] sm:$0xff]
          %v2266 = vrcp.pop %v2264
          %v2267 = vmul.f32 %v2264, %v2266
          %v2268 = vsub.f32 1.0, %v2267
          %v2269 = vmul.f32 %v2266, %v2268
          %v2270 = vadd.f32 %v2266, %v2269
          %vm2271 = vweird.f32 %v2264
          %vm2272 = vweird.f32 %v2266
          %vm2273 = vmor %vm2271, %vm2272
          %v2274 = vsel %vm2273, %v2266, %v2270
          %v2275 = vand.u32 2147483647, %v2264
          %vm2276 = vcmp.eq.f32.partialorder %v2275, 8.507059e+37
          %v2277 = vand.u32 %v2264, 2147483648
          %v2278 = vor.u32 1.1754944e-38, %v2277
          %v2279 = vsel %vm2276, %v2278, %v2274
          %v2280 = vmul.f32 1.0, %v2279
          %v2281 = vrcp.pop %v2265
          %v2282 = vmul.f32 %v2265, %v2281
          %v2283 = vsub.f32 1.0, %v2282
          %v2284 = vmul.f32 %v2281, %v2283
          %v2285 = vadd.f32 %v2281, %v2284
          %vm2286 = vweird.f32 %v2265
          %vm2287 = vweird.f32 %v2281
          %vm2288 = vmor %vm2286, %vm2287
          %v2289 = vsel %vm2288, %v2281, %v2285
          %v2290 = vand.u32 2147483647, %v2265
          %vm2291 = vcmp.eq.f32.partialorder %v2290, 8.507059e+37
          %v2292 = vand.u32 %v2265, 2147483648
          %v2293 = vor.u32 1.1754944e-38, %v2292
          %v2294 = vsel %vm2291, %v2293, %v2289
          %v2295 = vmul.f32 1.0, %v2294
          %2297 = vset.pattern.permute.xlu0 0
          %2298 = vperm.xlu0 %2297, %v2280
          %v2299 = vpop.permute.xlu0 %2298
          %2302 = vset.pattern.permute.xlu0 0
          %2303 = vperm.xlu0 %2302, %v2295
          %v2304 = vpop.permute.xlu0 %2303
          %v2306 = vmul.f32 %v2261, %v2299
          %v2307 = vmul.f32 %v2262, %v2304
          %2310 = vrot.lane.b32.xlu0 %v2306, 20
          %v2311 = vpop.permute.xlu0 %2310
          %2312 = vrot.lane.b32.xlu0 %v2307, 20
          %v2313 = vpop.permute.xlu0 %2312
          %vm2316 = vcmask 195744
          %2317 = vst.msk [vmem:[#allocation6] sm:$0xff] %vm2316, %v2311
          %2318 = vst.msk [vmem:[#allocation6 + $0x8] sm:$0xff] %vm2316, %v2313
          %s2319 = scalar_lea.vmem [#allocation5], 96
          %v2320 = vld [vmem:[%s2319] sm:$0xff]
          %v2321 = vld [vmem:[%s2319 + $0x8] sm:$0xff]
          %s2322 = scalar_lea.vmem [#allocation4], 96
          %v2323 = vld [vmem:[%s2322] sm:$0xff]
          %v2324 = vld [vmem:[%s2322 + $0x8] sm:$0xff]
          %v2325 = vrcp.pop %v2323
          %v2326 = vmul.f32 %v2323, %v2325
          %v2327 = vsub.f32 1.0, %v2326
          %v2328 = vmul.f32 %v2325, %v2327
          %v2329 = vadd.f32 %v2325, %v2328
          %vm2330 = vweird.f32 %v2323
          %vm2331 = vweird.f32 %v2325
          %vm2332 = vmor %vm2330, %vm2331
          %v2333 = vsel %vm2332, %v2325, %v2329
          %v2334 = vand.u32 2147483647, %v2323
          %vm2335 = vcmp.eq.f32.partialorder %v2334, 8.507059e+37
          %v2336 = vand.u32 %v2323, 2147483648
          %v2337 = vor.u32 1.1754944e-38, %v2336
          %v2338 = vsel %vm2335, %v2337, %v2333
          %v2339 = vmul.f32 1.0, %v2338
          %v2340 = vrcp.pop %v2324
          %v2341 = vmul.f32 %v2324, %v2340
          %v2342 = vsub.f32 1.0, %v2341
          %v2343 = vmul.f32 %v2340, %v2342
          %v2344 = vadd.f32 %v2340, %v2343
          %vm2345 = vweird.f32 %v2324
          %vm2346 = vweird.f32 %v2340
          %vm2347 = vmor %vm2345, %vm2346
          %v2348 = vsel %vm2347, %v2340, %v2344
          %v2349 = vand.u32 2147483647, %v2324
          %vm2350 = vcmp.eq.f32.partialorder %v2349, 8.507059e+37
          %v2351 = vand.u32 %v2324, 2147483648
          %v2352 = vor.u32 1.1754944e-38, %v2351
          %v2353 = vsel %vm2350, %v2352, %v2348
          %v2354 = vmul.f32 1.0, %v2353
          %2356 = vset.pattern.permute.xlu0 0
          %2357 = vperm.xlu0 %2356, %v2339
          %v2358 = vpop.permute.xlu0 %2357
          %2361 = vset.pattern.permute.xlu0 0
          %2362 = vperm.xlu0 %2361, %v2354
          %v2363 = vpop.permute.xlu0 %2362
          %v2365 = vmul.f32 %v2320, %v2358
          %v2366 = vmul.f32 %v2321, %v2363
          %2369 = vrot.lane.b32.xlu0 %v2365, 24
          %v2370 = vpop.permute.xlu0 %2369
          %2371 = vrot.lane.b32.xlu0 %v2366, 24
          %v2372 = vpop.permute.xlu0 %2371
          %vm2375 = vcmask 228544
          %2376 = vst.msk [vmem:[#allocation6] sm:$0xff] %vm2375, %v2370
          %2377 = vst.msk [vmem:[#allocation6 + $0x8] sm:$0xff] %vm2375, %v2372
          %s2378 = scalar_lea.vmem [#allocation5], 112
          %v2379 = vld [vmem:[%s2378] sm:$0xff]
          %v2380 = vld [vmem:[%s2378 + $0x8] sm:$0xff]
          %s2381 = scalar_lea.vmem [#allocation4], 112
          %v2382 = vld [vmem:[%s2381] sm:$0xff]
          %v2383 = vld [vmem:[%s2381 + $0x8] sm:$0xff]
          %v2384 = vrcp.pop %v2382
          %v2385 = vmul.f32 %v2382, %v2384
          %v2386 = vsub.f32 1.0, %v2385
          %v2387 = vmul.f32 %v2384, %v2386
          %v2388 = vadd.f32 %v2384, %v2387
          %vm2389 = vweird.f32 %v2382
          %vm2390 = vweird.f32 %v2384
          %vm2391 = vmor %vm2389, %vm2390
          %v2392 = vsel %vm2391, %v2384, %v2388
          %v2393 = vand.u32 2147483647, %v2382
          %vm2394 = vcmp.eq.f32.partialorder %v2393, 8.507059e+37
          %v2395 = vand.u32 %v2382, 2147483648
          %v2396 = vor.u32 1.1754944e-38, %v2395
          %v2397 = vsel %vm2394, %v2396, %v2392
          %v2398 = vmul.f32 1.0, %v2397
          %v2399 = vrcp.pop %v2383
          %v2400 = vmul.f32 %v2383, %v2399
          %v2401 = vsub.f32 1.0, %v2400
          %v2402 = vmul.f32 %v2399, %v2401
          %v2403 = vadd.f32 %v2399, %v2402
          %vm2404 = vweird.f32 %v2383
          %vm2405 = vweird.f32 %v2399
          %vm2406 = vmor %vm2404, %vm2405
          %v2407 = vsel %vm2406, %v2399, %v2403
          %v2408 = vand.u32 2147483647, %v2383
          %vm2409 = vcmp.eq.f32.partialorder %v2408, 8.507059e+37
          %v2410 = vand.u32 %v2383, 2147483648
          %v2411 = vor.u32 1.1754944e-38, %v2410
          %v2412 = vsel %vm2409, %v2411, %v2407
          %v2413 = vmul.f32 1.0, %v2412
          %2415 = vset.pattern.permute.xlu0 0
          %2416 = vperm.xlu0 %2415, %v2398
          %v2417 = vpop.permute.xlu0 %2416
          %2420 = vset.pattern.permute.xlu0 0
          %2421 = vperm.xlu0 %2420, %v2413
          %v2422 = vpop.permute.xlu0 %2421
          %v2424 = vmul.f32 %v2379, %v2417
          %v2425 = vmul.f32 %v2380, %v2422
          %2428 = vrot.lane.b32.xlu0 %v2424, 28
          %v2429 = vpop.permute.xlu0 %2428
          %2430 = vrot.lane.b32.xlu0 %v2425, 28
          %v2431 = vpop.permute.xlu0 %2430
          %vm2434 = vcmask 261344
          %2435 = vst.msk [vmem:[#allocation6] sm:$0xff] %vm2434, %v2429
          %2436 = vst.msk [vmem:[#allocation6 + $0x8] sm:$0xff] %vm2434, %v2431
          %v2437 = vld [vmem:[#allocation6] sm:$0xff]
          %v2438 = vld [vmem:[#allocation6 + $0x8] sm:$0xff]
          %v2439 = vld [vmem:[#allocation15] sm:$0xff]
          %v2440 = vld [vmem:[#allocation15 + $0x8] sm:$0xff]
          %v2441 = vld [vmem:[#allocation15 + $0x10] sm:$0xff]
          %v2442 = vld [vmem:[#allocation15 + $0x18] sm:$0xff]
          %vm2443 = vcmask 261120
          %v2445 = vsel %vm2443, %v2437, 0
          %v2448 = vsel %vm2443, %v2438, 0
          %2450 = vmatpush.msra.mxu0 0.0
          %2451 = vmatpush.msra.mxu0 0.0
          %2452 = vmatpush.msra.mxu0 0.0
          %2453 = vmatpush.msra.mxu0 0.0
          %2454 = vmatpush.msra.mxu0 0.0
          %2455 = vmatpush.msra.mxu0 0.0
          %2456 = vmatpush.msra.mxu0 0.0
          %2457 = vmatpush.msra.mxu0 0.0
          %2458 = vmatpush.msra.mxu0 0.0
          %2459 = vmatpush.msra.mxu0 0.0
          %2460 = vmatpush.msra.mxu0 0.0
          %2461 = vmatpush.msra.mxu0 0.0
          %2462 = vmatpush.msra.mxu0 %v2442
          %2463 = vmatpush.msra.mxu0 %v2441
          %2464 = vmatpush.msra.mxu0 %v2440
          %2465 = vmatpush.msra.mxu0 %v2439
          %2466 = vmatmul.f32.gmra.mxu0 %v2445
          %v2467 = vpop.f32.mrf.mxu0
          %v2468 = vadd.f32 0.0, %v2467
          %2469 = vmatmul.f32.gmra.mxu0 %v2448
          %v2470 = vpop.f32.mrf.mxu0
          %v2471 = vadd.f32 0.0, %v2470
          %2472 = vdwg.mxu0
          %v2473 = vld [vmem:[%s432] sm:$0xff]
          %v2474 = vld [vmem:[%s432 + $0x8] sm:$0xff]
          %v2475 = vld [vmem:[%s9] sm:$0x1]
          %v2477 = vperm.slane %v2475, 0
          %v2479 = vadd.f32 %v2473, %v2477
          %v2480 = vadd.f32 %v2474, %v2477
          %v2481 = vadd.f32 %v2479, %v2468
          %v2482 = vadd.f32 %v2480, %v2471
          %2483 = vst.msk [vmem:[%s499] sm:$0xff] %vm2443, %v2481
          %2484 = vst.msk [vmem:[%s499 + $0x8] sm:$0xff] %vm2443, %v2482
        $region92: #{tpu_custom_call.1} parent=59 // pred_fallthru
          _
        %s2485 = sand.u32 %s284, 1
        %s2486 = scalar_lea.sflag [#allocation9], %s2485
        %s2487 = sand.u32 %s284, 1
        %s2488 = smul.addr %s2487, 16
        %s2489 = scalar_lea.vmem [#allocation16], %s2488
        // Predicated region
        $region93: #{tpu_custom_call.1} parent=59 // pred_check
          %p2490 = pneg %p294
        $region94: #{tpu_custom_call.1} parent=59 // pred_check_branch
          %2492 = sbr.rel (%p2490) target = $region96
        $region95: #{tpu_custom_call.1} parent=59 // pred_region
          %s2493 = smul.u32 2, %s37
          %2495 = vsyncadd %s2486, 0
          %s2496 = smul.addr %s36, 2
          %s2497 = sadd.s32 %s2493, %s2496
          %s2498 = smul.addr %s2497, 8
          %s2499 = scalar_lea.hbm %s10, %s2498
          %s2500 = sshll.u32 %s2489, 4
          %s2501 = int_to_ptr.vmem [resolvable:$true] %s2500
          %s2502 = sshll.u32 %s2499, 4
          %s2503 = int_to_ptr.hbm [resolvable:$true] %s2502
          %2508 = dma.vmem_to_hbm [thread:$0]  %s2501, 256, %s2503, %s2486, 128, 128, 8
        $region96: #{tpu_custom_call.1} parent=59 // pred_fallthru
          _
      $region60: #{tpu_custom_call.1} parent=5 // pred_fallthru
        _
      %p2509 = scmp.le.s32.totalorder 2, %s26
      // Predicated region
      $region97: #{tpu_custom_call.1} parent=5 // pred_check
        %p2510 = pneg %p2509
      $region98: #{tpu_custom_call.1} parent=5 // pred_check_branch
        %2512 = sbr.rel (%p2510) target = $region100
      $region99: #{tpu_custom_call.1} parent=5 // pred_region
        %s2513 = ssub.s32 %s26, 2
        // Predicated region
        $region101: #{tpu_custom_call.1} parent=99 // pred_check
          %p2514 = pneg %p300
        $region102: #{tpu_custom_call.1} parent=99 // pred_check_branch
          %2516 = sbr.rel (%p2514) target = $region104
        $region103: #{tpu_custom_call.1} parent=99 // pred_region
          %s2517 = sand.u32 %s285, 1
          %s2518 = scalar_lea.sflag [#allocation9], %s2517
          %s2519 = sand.u32 %s285, 1
          %s2520 = smul.addr %s2519, 16
          %s2521 = scalar_lea.vmem [#allocation16], %s2520
          %2523 = dma.done %s2518, 256
        $region104: #{tpu_custom_call.1} parent=99 // pred_fallthru
          _
      $region100: #{tpu_custom_call.1} parent=5 // pred_fallthru
        _
    $region6: #{tpu_custom_call.1} parent=1 // loop_footer
      %s30 = sadd.s32 1, %s26
    $region7: #{tpu_custom_call.1} parent=1 // loop_footer_branch
      %25 = sbr.rel target = $region3
    $region8: #{tpu_custom_call.1} parent=1 // loop_exit
      _
    %2524 = vsyncpa [#allocation8], 1
    %s2525 = scalar_lea.sflag [#allocation8], 1
    %2526 = vsyncpa %s2525, 1
    %2527 = vsyncpa [#allocation11], 1
    %s2528 = scalar_lea.sflag [#allocation11], 1
    %2529 = vsyncpa %s2528, 1
    %2530 = vsyncpa [#allocation14], 1
    %2531 = vsyncpa [#allocation9], 1
    %s2532 = scalar_lea.sflag [#allocation9], 1
    %2533 = vsyncpa %s2532, 1

</llo_original>
